<compile_context>
chip_gen: v6e
topology: v6e:2x2x1
jax: 0.10.0
libtpu: 0.0.40
codegen_flags: <defaults>
</compile_context>

<pallas_src>
import math
import functools
import numpy as np
import jax
import jax.numpy as jnp
from jax.experimental import pallas as pl
from jax.experimental.pallas import tpu as pltpu


# ---------------------------------------------------------------------------
# Spherical-harmonic transform operators (dense linear maps), built in numpy.
# TODO(synk): s2fft's MW-sampling forward/inverse transforms are replaced by a
# dense spherical-harmonic synthesis matrix and its pseudo-inverse; exact for
# band-limited signals but not bit-identical to s2fft for arbitrary inputs.
# ---------------------------------------------------------------------------
def build_sht_operators(L):
    nth, nph = L, 2 * L - 1
    P = nth * nph
    thetas = np.pi * (2.0 * np.arange(nth) + 1.0) / (2.0 * L - 1.0)  # MW thetas
    phis = 2.0 * np.pi * np.arange(nph) / nph
    x = np.cos(thetas)
    s = np.sqrt(np.maximum(1.0 - x * x, 0.0))

    # associated Legendre P_l^m(cos theta), Condon-Shortley phase
    Plm = np.zeros((L, L, nth))
    Plm[0, 0] = 1.0
    for m in range(1, L):
        Plm[m, m] = -(2 * m - 1) * s * Plm[m - 1, m - 1]
    for m in range(L):
        if m + 1 < L:
            Plm[m + 1, m] = (2 * m + 1) * x * Plm[m, m]
        for l in range(m + 2, L):
            Plm[l, m] = ((2 * l - 1) * x * Plm[l - 1, m]
                         - (l + m - 1) * Plm[l - 2, m]) / (l - m)

    ncoef = L * (2 * L - 1)                         # coefficient grid (L, 2L-1) flattened
    A = np.zeros((P, ncoef), dtype=np.complex128)   # synthesis: coeffs -> pixels
    valid = np.zeros(ncoef, dtype=bool)
    for l in range(L):
        for m in range(0, l + 1):
            norm = math.sqrt((2 * l + 1) / (4.0 * math.pi)
                             * math.factorial(l - m) / math.factorial(l + m))
            Ylm = norm * Plm[l, m][:, None] * np.exp(1j * m * phis)[None, :]
            col = l * (2 * L - 1) + (m + L - 1)
            A[:, col] = Ylm.reshape(-1)
            valid[col] = True
            if m > 0:
                coln = l * (2 * L - 1) + (-m + L - 1)
                A[:, coln] = ((-1) ** m) * np.conj(Ylm).reshape(-1)
                valid[coln] = True

    Fv = np.linalg.pinv(A[:, valid])                # analysis restricted to valid (l, m)
    F = np.zeros((ncoef, P), dtype=np.complex128)
    F[valid, :] = Fv
    return F, A                                     # forward / inverse operators


# ---------------------------------------------------------------------------
# 3x3 zero-padded ("same") conv expressed as a dense pixel->pixel matrix.
# out[b, co, p_out] = sum_{ci, p_in} x[b, ci, p_in] * M[ci, p_in, co, p_out]
# p_in / p_out live on lane-padded grids of width PP (>= H*W), extra lanes zero.
# ---------------------------------------------------------------------------
def conv3x3_as_dense(w, H, W, PP):
    Cout, Cin = int(w.shape[0]), int(w.shape[1])
    M = np.zeros((Cin, PP, Cout, PP), np.float32)
    wnp = np.asarray(w, np.float64)
    for dy in range(3):
        for dx in range(3):
            wtap = wnp[:, :, dy, dx].T              # (Cin, Cout)
            for yo in range(H):
                yi = yo + dy - 1
                if yi < 0 or yi >= H:
                    continue
                for xo in range(W):
                    xi = xo + dx - 1
                    if xi < 0 or xi >= W:
                        continue
                    M[:, yi * W + xi, :, yo * W + xo] += wtap
    return M


# ---------------------------------------------------------------------------
# Fused Pallas kernel.  Grid axis = spherical-conv layer index ("arbitrary").
#   l == 0      : embedder (bf16 matmul + bias + ReLU) writes the activation carry.
#   every l     : forward SHT -> harmonic channel mixing -> inverse SHT -> bias -> ReLU.
#   l == last   : unembedder (single K = C*PP bf16 matmul + bias) writes the output.
# Activations stay resident in the (B, C, PP) f32 VMEM scratch across grid steps.
# ---------------------------------------------------------------------------
def _fused_kernel(x_ref, memb_ref, fcat_ref, icat_ref, wc1_ref, wc2_ref,
                  sphb_ref, mune_ref, embb_ref, uneb_ref, o_ref, h_ref):
    l = pl.program_id(0)
    n_layers = pl.num_programs(0)
    B, C, PP = h_ref.shape
    PCP = fcat_ref.shape[1] // 2

    # ---- embedder (first grid step only) -------------------------------------
    @pl.when(l == 0)
    def _embed():
        hflat = jnp.dot(x_ref[...].astype(jnp.bfloat16), memb_ref[...],
                        preferred_element_type=jnp.float32)           # (B, C*PP)
        hflat = jnp.maximum(hflat + embb_ref[...], 0.0)               # bias row, ReLU (VPU)
        for c in range(C):                                            # lane-aligned scatter into
            h_ref[:, c, :] = hflat[:, c * PP:(c + 1) * PP]            # the (B, C, PP) carry

    # ---- one spherical conv layer (layer-l weights pipelined in via BlockSpec)
    hv2 = h_ref[...].reshape(B * C, PP)                               # tile-preserving merge

    # forward SHT of all (b, c) maps in one merged matmul -> [Xre | Xim]
    X2 = jnp.dot(hv2, fcat_ref[...], preferred_element_type=jnp.float32)   # (B*C, 2*PCP)
    X3 = X2.reshape(B, C, 2 * PCP)
    Xs3 = jnp.concatenate([X3[:, :, PCP:], X3[:, :, :PCP]], axis=2)   # [Xim | Xre] (aligned swap)

    # harmonic channel mixing: Y = sum_i wc1[i]*X[i] + wc2[i]*Xswap[i]
    # with wc1 = [Wre|Wre], wc2 = [-Wim|Wim]; two partial accumulators for VALU ILP.
    Y0 = jnp.zeros((B, C, 2 * PCP), jnp.float32)
    Y1 = jnp.zeros((B, C, 2 * PCP), jnp.float32)
    for i in range(C):
        w1 = wc1_ref[0, i].astype(jnp.float32)[None]                  # (1, C, 2*PCP)
        w2 = wc2_ref[0, i].astype(jnp.float32)[None]
        xi = X3[:, i, :][:, None, :]                                  # (B, 1, 2*PCP)
        xsi = Xs3[:, i, :][:, None, :]
        t = w1 * xi + w2 * xsi
        if i % 2 == 0:
            Y0 = Y0 + t
        else:
            Y1 = Y1 + t
    Y2 = (Y0 + Y1).reshape(B * C, 2 * PCP)

    # inverse SHT (merged real path) + bias + ReLU
    h2 = jnp.dot(Y2, icat_ref[...], preferred_element_type=jnp.float32)    # (B*C, PP)
    h3 = jnp.maximum(h2.reshape(B, C, PP) + sphb_ref[...], 0.0)
    h_ref[...] = h3                                                   # full unmasked store

    # ---- unembedder (last grid step only): one K = C*PP bf16 matmul ----------
    @pl.when(l == n_layers - 1)
    def _unembed():
        hcat = jnp.concatenate([h3[:, c, :] for c in range(C)], axis=1)     # (B, C*PP)
        out = jnp.dot(hcat.astype(jnp.bfloat16), mune_ref[...],
                      preferred_element_type=jnp.float32)
        o_ref[...] = out + uneb_ref[...]


@functools.partial(jax.jit, static_argnames=("H", "W"))
def spherical_cnn_forward(x, memb, fcat, icat, wc1, wc2, sphb, mune, embb, uneb,
                          *, H, W):
    B = x.shape[0]
    P = H * W
    C = sphb.shape[1]
    PP = memb.shape[0]
    PCP = fcat.shape[1] // 2
    n_layers = wc1.shape[0]

    x_flat = jnp.pad(x.reshape(B, P), ((0, 0), (0, PP - P)))         # lane-pad pixels

    out = pl.pallas_call(
        _fused_kernel,
        out_shape=jax.ShapeDtypeStruct((B, PP), jnp.float32),
        grid=(n_layers,),
        in_specs=[
            pl.BlockSpec((B, PP), lambda l: (0, 0)),                  # x (f32)
            pl.BlockSpec((PP, C * PP), lambda l: (0, 0)),             # embedder operator (bf16)
            pl.BlockSpec((PP, 2 * PCP), lambda l: (0, 0)),            # forward SHT (f32)
            pl.BlockSpec((2 * PCP, PP), lambda l: (0, 0)),            # inverse SHT (f32)
            pl.BlockSpec((1, C, C, 2 * PCP), lambda l: (l, 0, 0, 0)), # wc1 (bf16, per layer)
            pl.BlockSpec((1, C, C, 2 * PCP), lambda l: (l, 0, 0, 0)), # wc2 (bf16, per layer)
            pl.BlockSpec((1, C, PP), lambda l: (l, 0, 0)),            # sph bias (f32, per layer)
            pl.BlockSpec((C * PP, PP), lambda l: (0, 0)),             # unembedder operator (bf16)
            pl.BlockSpec((1, C * PP), lambda l: (0, 0)),              # embedder bias row (f32)
            pl.BlockSpec((1, PP), lambda l: (0, 0)),                  # unembedder bias row (f32)
        ],
        out_specs=pl.BlockSpec((B, PP), lambda l: (0, 0)),
        scratch_shapes=[pltpu.VMEM((B, C, PP), jnp.float32)],         # activation carry
        compiler_params=pltpu.CompilerParams(
            dimension_semantics=("arbitrary",)),
    )(x_flat, memb, fcat, icat, wc1, wc2, sphb, mune, embb, uneb)

    return out[:, :P].reshape(B, 1, H, W)


# ---------------------------------------------------------------------------
if __name__ == "__main__":
    L = 8
    C = 16            # intermediate_channels
    B = 2
    H, W = L, 2 * L - 1
    P = H * W         # 120 pixels on the MW grid
    PP = 128          # pixel lanes (padded to a full vreg lane width)
    PCP = 128         # coefficient lanes (padded)
    N_LAYERS = 3

    F, A = build_sht_operators(L)

    key = jax.random.PRNGKey(0)
    ks = jax.random.split(key, 16)
    x = jax.random.normal(ks[0], (B, 1, H, W), jnp.float32)

    emb_w = 0.2 * jax.random.normal(ks[1], (C, 1, 3, 3), jnp.float32)
    emb_b = 0.1 * jax.random.normal(ks[2], (C,), jnp.float32)
    une_w = 0.2 * jax.random.normal(ks[3], (1, C, 3, 3), jnp.float32)
    une_b = 0.1 * jax.random.normal(ks[4], (1,), jnp.float32)

    sph_w, sph_b = [], []
    for layer in range(N_LAYERS):
        sph_w.append(0.1 * jax.random.normal(ks[5 + 2 * layer], (C, C, H, W), jnp.float32))
        sph_b.append(0.1 * jax.random.normal(ks[6 + 2 * layer], (C, 1), jnp.float32))

    # ---- host-side parameter preprocessing (once) ---------------------------
    # merged forward SHT: x(pixels) @ fcat -> [Xre | Xim]
    fcat = np.zeros((PP, 2 * PCP), np.float32)
    fcat[:P, :P] = F.real.T
    fcat[:P, PCP:PCP + P] = F.imag.T
    # merged real inverse SHT: [Yre | Yim] @ icat -> real pixels
    icat = np.zeros((2 * PCP, PP), np.float32)
    icat[:P, :P] = A.real.T
    icat[PCP:PCP + P, :P] = -A.imag.T

    # 3x3 convs as dense, lane-padded matrices
    memb = conv3x3_as_dense(emb_w, H, W, PP)[0].reshape(PP, C * PP)            # (PP, C*PP)
    mune = conv3x3_as_dense(une_w, H, W, PP)[:, :, 0, :].reshape(C * PP, PP)   # (C*PP, PP)

    # biases as lane rows; padded pixel lanes are kept exactly 0 so activations
    # stay 0 on padded lanes through the whole network.
    embb = np.zeros((1, C * PP), np.float32)
    for c in range(C):
        embb[0, c * PP:c * PP + P] = float(emb_b[c])
    uneb = np.full((1, PP), float(une_b[0]), np.float32)

    # spherical kernels to the harmonic domain (s2fft.forward per (o,i) kernel),
    # packed as wc1=[Wre|Wre], wc2=[-Wim|Wim], layout (layer, c_in, c_out, 2*PCP)
    wc1 = np.zeros((N_LAYERS, C, C, 2 * PCP), np.float32)
    wc2 = np.zeros((N_LAYERS, C, C, 2 * PCP), np.float32)
    sphb = np.zeros((N_LAYERS, C, PP), np.float32)
    for layer in range(N_LAYERS):
        w_np = np.asarray(sph_w[layer], np.float64).reshape(C, C, P)
        wlm = np.einsum('qp,oip->oiq', F, w_np)                       # (o, i, q)
        wre = wlm.real.transpose(1, 0, 2)                             # (i, o, q)
        wim = wlm.imag.transpose(1, 0, 2)
        wc1[layer, :, :, :P] = wre
        wc1[layer, :, :, PCP:PCP + P] = wre
        wc2[layer, :, :, :P] = -wim
        wc2[layer, :, :, PCP:PCP + P] = wim
        sphb[layer, :, :P] = np.asarray(sph_b[layer], np.float32)     # (C,1) -> (C,P)

    # bf16 weights (f32 accumulation in-kernel); SHT pinv operators stay f32.
    # TODO(synk): validate the bf16 weight cast against the f32 PyTorch reference tolerance.
    memb = jnp.asarray(memb).astype(jnp.bfloat16)
    mune = jnp.asarray(mune).astype(jnp.bfloat16)
    wc1 = jnp.asarray(wc1).astype(jnp.bfloat16)
    wc2 = jnp.asarray(wc2).astype(jnp.bfloat16)
    fcat = jnp.asarray(fcat); icat = jnp.asarray(icat)
    sphb = jnp.asarray(sphb); embb = jnp.asarray(embb); uneb = jnp.asarray(uneb)

    # ---- forward pass (single fused Pallas kernel, layer-pipelined grid) -----
    out = spherical_cnn_forward(x, memb, fcat, icat, wc1, wc2, sphb, mune,
                                embb, uneb, H=H, W=W)
    out = jax.block_until_ready(out)

    assert out.shape == (B, 1, H, W)
    assert bool(jnp.all(jnp.isfinite(out)))
    print("KERNEL_OK")
</pallas_src>

<mosaic_0001>
module attributes {stable_mosaic.version = 11 : i64} {
  func.func @_fused_kernel(%arg0: i32, %arg1: memref<2x128xf32, #tpu.memory_space<vmem>>, %arg2: memref<128x2048xbf16, #tpu.memory_space<vmem>>, %arg3: memref<128x256xf32, #tpu.memory_space<vmem>>, %arg4: memref<256x128xf32, #tpu.memory_space<vmem>>, %arg5: memref<1x16x16x256xbf16, #tpu.memory_space<vmem>>, %arg6: memref<1x16x16x256xbf16, #tpu.memory_space<vmem>>, %arg7: memref<1x16x128xf32, #tpu.memory_space<vmem>>, %arg8: memref<2048x128xbf16, #tpu.memory_space<vmem>>, %arg9: memref<1x2048xf32, #tpu.memory_space<vmem>>, %arg10: memref<1x128xf32, #tpu.memory_space<vmem>>, %arg11: memref<2x128xf32, #tpu.memory_space<vmem>>, %arg12: memref<2x16x128xf32, #tpu.memory_space<vmem>>) attributes {dimension_semantics = [#tpu.dimension_semantics<arbitrary>], iteration_bounds = array<i64: 3>, scalar_prefetch = 0 : i64, scratch_operands = 1 : i64, tpu.core_type = #tpu.core_type<tc>, window_params = [{pipeline_mode = #tpu.pipeline_mode<synchronous>, transform_indices = @transform_0, window_bounds = array<i64: 2, 128>}, {pipeline_mode = #tpu.pipeline_mode<synchronous>, transform_indices = @transform_1, window_bounds = array<i64: 128, 2048>}, {pipeline_mode = #tpu.pipeline_mode<synchronous>, transform_indices = @transform_2, window_bounds = array<i64: 128, 256>}, {pipeline_mode = #tpu.pipeline_mode<synchronous>, transform_indices = @transform_3, window_bounds = array<i64: 256, 128>}, {transform_indices = @transform_4, window_bounds = array<i64: 1, 16, 16, 256>}, {transform_indices = @transform_5, window_bounds = array<i64: 1, 16, 16, 256>}, {transform_indices = @transform_6, window_bounds = array<i64: 1, 16, 128>}, {pipeline_mode = #tpu.pipeline_mode<synchronous>, transform_indices = @transform_7, window_bounds = array<i64: 2048, 128>}, {pipeline_mode = #tpu.pipeline_mode<synchronous>, transform_indices = @transform_8, window_bounds = array<i64: 1, 2048>}, {pipeline_mode = #tpu.pipeline_mode<synchronous>, transform_indices = @transform_9, window_bounds = array<i64: 1, 128>}, {pipeline_mode = #tpu.pipeline_mode<synchronous>, transform_indices = @transform_10, window_bounds = array<i64: 2, 128>}]} {
    %c0_i32 = arith.constant 0 : i32
    %0 = arith.cmpi eq, %arg0, %c0_i32 : i32
    %1 = arith.extui %0 : i1 to i32
    %c0_i32_0 = arith.constant 0 : i32
    %2 = arith.cmpi ne, %1, %c0_i32_0 : i32
    scf.if %2 {
      %c0_131 = arith.constant 0 : index
      %c0_132 = arith.constant 0 : index
      %379 = vector.load %arg1[%c0_131, %c0_132] : memref<2x128xf32, #tpu.memory_space<vmem>>, vector<2x128xf32>
      %380 = arith.truncf %379 : vector<2x128xf32> to vector<2x128xbf16>
      %c0_133 = arith.constant 0 : index
      %c0_134 = arith.constant 0 : index
      %381 = vector.load %arg2[%c0_133, %c0_134] : memref<128x2048xbf16, #tpu.memory_space<vmem>>, vector<128x2048xbf16>
      %cst_135 = arith.constant dense<0.000000e+00> : vector<2x2048xf32>
      %382 = tpu.matmul %380, %381, %cst_135 {dimension_numbers = #tpu.dot_dimension_numbers<[1], [0], [0], [1], [0, 0, 1, 1], [], []>} : vector<2x128xbf16>, vector<128x2048xbf16>, vector<2x2048xf32> -> vector<2x2048xf32>
      %c0_136 = arith.constant 0 : index
      %c0_137 = arith.constant 0 : index
      %383 = vector.load %arg9[%c0_136, %c0_137] : memref<1x2048xf32, #tpu.memory_space<vmem>>, vector<1x2048xf32>
      %384 = vector.broadcast %383 : vector<1x2048xf32> to vector<2x2048xf32>
      %385 = arith.addf %382, %384 : vector<2x2048xf32>
      %cst_138 = arith.constant 0.000000e+00 : f32
      %386 = vector.broadcast %cst_138 : f32 to vector<2x2048xf32>
      %387 = arith.maximumf %385, %386 : vector<2x2048xf32>
      %388 = vector.extract_strided_slice %387 {offsets = [0, 0], sizes = [2, 128], strides = [1, 1]} : vector<2x2048xf32> to vector<2x128xf32>
      %c0_139 = arith.constant 0 : index
      %c0_140 = arith.constant 0 : index
      %c0_141 = arith.constant 0 : index
      %389 = vector.load %arg12[%c0_139, %c0_140, %c0_141] : memref<2x16x128xf32, #tpu.memory_space<vmem>>, vector<2x1x128xf32>
      %390 = vector.shape_cast %389 : vector<2x1x128xf32> to vector<2x128xf32>
      %391 = vector.shape_cast %388 : vector<2x128xf32> to vector<2x1x128xf32>
      tpu.vector_store %arg12[%c0_139, %c0_140, %c0_141], %391 {strides = array<i32>} : memref<2x16x128xf32, #tpu.memory_space<vmem>>, vector<2x1x128xf32>,
      %392 = vector.extract_strided_slice %387 {offsets = [0, 128], sizes = [2, 128], strides = [1, 1]} : vector<2x2048xf32> to vector<2x128xf32>
      %c0_142 = arith.constant 0 : index
      %c1_143 = arith.constant 1 : index
      %c0_144 = arith.constant 0 : index
      %393 = vector.load %arg12[%c0_142, %c1_143, %c0_144] : memref<2x16x128xf32, #tpu.memory_space<vmem>>, vector<2x1x128xf32>
      %394 = vector.shape_cast %393 : vector<2x1x128xf32> to vector<2x128xf32>
      %395 = vector.shape_cast %392 : vector<2x128xf32> to vector<2x1x128xf32>
      tpu.vector_store %arg12[%c0_142, %c1_143, %c0_144], %395 {strides = array<i32>} : memref<2x16x128xf32, #tpu.memory_space<vmem>>, vector<2x1x128xf32>,
      %396 = vector.extract_strided_slice %387 {offsets = [0, 256], sizes = [2, 128], strides = [1, 1]} : vector<2x2048xf32> to vector<2x128xf32>
      %c0_145 = arith.constant 0 : index
      %c2_146 = arith.constant 2 : index
      %c0_147 = arith.constant 0 : index
      %397 = vector.load %arg12[%c0_145, %c2_146, %c0_147] : memref<2x16x128xf32, #tpu.memory_space<vmem>>, vector<2x1x128xf32>
      %398 = vector.shape_cast %397 : vector<2x1x128xf32> to vector<2x128xf32>
      %399 = vector.shape_cast %396 : vector<2x128xf32> to vector<2x1x128xf32>
      tpu.vector_store %arg12[%c0_145, %c2_146, %c0_147], %399 {strides = array<i32>} : memref<2x16x128xf32, #tpu.memory_space<vmem>>, vector<2x1x128xf32>,
      %400 = vector.extract_strided_slice %387 {offsets = [0, 384], sizes = [2, 128], strides = [1, 1]} : vector<2x2048xf32> to vector<2x128xf32>
      %c0_148 = arith.constant 0 : index
      %c3_149 = arith.constant 3 : index
      %c0_150 = arith.constant 0 : index
      %401 = vector.load %arg12[%c0_148, %c3_149, %c0_150] : memref<2x16x128xf32, #tpu.memory_space<vmem>>, vector<2x1x128xf32>
      %402 = vector.shape_cast %401 : vector<2x1x128xf32> to vector<2x128xf32>
      %403 = vector.shape_cast %400 : vector<2x128xf32> to vector<2x1x128xf32>
      tpu.vector_store %arg12[%c0_148, %c3_149, %c0_150], %403 {strides = array<i32>} : memref<2x16x128xf32, #tpu.memory_space<vmem>>, vector<2x1x128xf32>,
      %404 = vector.extract_strided_slice %387 {offsets = [0, 512], sizes = [2, 128], strides = [1, 1]} : vector<2x2048xf32> to vector<2x128xf32>
      %c0_151 = arith.constant 0 : index
      %c4_152 = arith.constant 4 : index
      %c0_153 = arith.constant 0 : index
      %405 = vector.load %arg12[%c0_151, %c4_152, %c0_153] : memref<2x16x128xf32, #tpu.memory_space<vmem>>, vector<2x1x128xf32>
      %406 = vector.shape_cast %405 : vector<2x1x128xf32> to vector<2x128xf32>
      %407 = vector.shape_cast %404 : vector<2x128xf32> to vector<2x1x128xf32>
      tpu.vector_store %arg12[%c0_151, %c4_152, %c0_153], %407 {strides = array<i32>} : memref<2x16x128xf32, #tpu.memory_space<vmem>>, vector<2x1x128xf32>,
      %408 = vector.extract_strided_slice %387 {offsets = [0, 640], sizes = [2, 128], strides = [1, 1]} : vector<2x2048xf32> to vector<2x128xf32>
      %c0_154 = arith.constant 0 : index
      %c5_155 = arith.constant 5 : index
      %c0_156 = arith.constant 0 : index
      %409 = vector.load %arg12[%c0_154, %c5_155, %c0_156] : memref<2x16x128xf32, #tpu.memory_space<vmem>>, vector<2x1x128xf32>
      %410 = vector.shape_cast %409 : vector<2x1x128xf32> to vector<2x128xf32>
      %411 = vector.shape_cast %408 : vector<2x128xf32> to vector<2x1x128xf32>
      tpu.vector_store %arg12[%c0_154, %c5_155, %c0_156], %411 {strides = array<i32>} : memref<2x16x128xf32, #tpu.memory_space<vmem>>, vector<2x1x128xf32>,
      %412 = vector.extract_strided_slice %387 {offsets = [0, 768], sizes = [2, 128], strides = [1, 1]} : vector<2x2048xf32> to vector<2x128xf32>
      %c0_157 = arith.constant 0 : index
      %c6_158 = arith.constant 6 : index
      %c0_159 = arith.constant 0 : index
      %413 = vector.load %arg12[%c0_157, %c6_158, %c0_159] : memref<2x16x128xf32, #tpu.memory_space<vmem>>, vector<2x1x128xf32>
      %414 = vector.shape_cast %413 : vector<2x1x128xf32> to vector<2x128xf32>
      %415 = vector.shape_cast %412 : vector<2x128xf32> to vector<2x1x128xf32>
      tpu.vector_store %arg12[%c0_157, %c6_158, %c0_159], %415 {strides = array<i32>} : memref<2x16x128xf32, #tpu.memory_space<vmem>>, vector<2x1x128xf32>,
      %416 = vector.extract_strided_slice %387 {offsets = [0, 896], sizes = [2, 128], strides = [1, 1]} : vector<2x2048xf32> to vector<2x128xf32>
      %c0_160 = arith.constant 0 : index
      %c7_161 = arith.constant 7 : index
      %c0_162 = arith.constant 0 : index
      %417 = vector.load %arg12[%c0_160, %c7_161, %c0_162] : memref<2x16x128xf32, #tpu.memory_space<vmem>>, vector<2x1x128xf32>
      %418 = vector.shape_cast %417 : vector<2x1x128xf32> to vector<2x128xf32>
      %419 = vector.shape_cast %416 : vector<2x128xf32> to vector<2x1x128xf32>
      tpu.vector_store %arg12[%c0_160, %c7_161, %c0_162], %419 {strides = array<i32>} : memref<2x16x128xf32, #tpu.memory_space<vmem>>, vector<2x1x128xf32>,
      %420 = vector.extract_strided_slice %387 {offsets = [0, 1024], sizes = [2, 128], strides = [1, 1]} : vector<2x2048xf32> to vector<2x128xf32>
      %c0_163 = arith.constant 0 : index
      %c8_164 = arith.constant 8 : index
      %c0_165 = arith.constant 0 : index
      %421 = vector.load %arg12[%c0_163, %c8_164, %c0_165] : memref<2x16x128xf32, #tpu.memory_space<vmem>>, vector<2x1x128xf32>
      %422 = vector.shape_cast %421 : vector<2x1x128xf32> to vector<2x128xf32>
      %423 = vector.shape_cast %420 : vector<2x128xf32> to vector<2x1x128xf32>
      tpu.vector_store %arg12[%c0_163, %c8_164, %c0_165], %423 {strides = array<i32>} : memref<2x16x128xf32, #tpu.memory_space<vmem>>, vector<2x1x128xf32>,
      %424 = vector.extract_strided_slice %387 {offsets = [0, 1152], sizes = [2, 128], strides = [1, 1]} : vector<2x2048xf32> to vector<2x128xf32>
      %c0_166 = arith.constant 0 : index
      %c9_167 = arith.constant 9 : index
      %c0_168 = arith.constant 0 : index
      %425 = vector.load %arg12[%c0_166, %c9_167, %c0_168] : memref<2x16x128xf32, #tpu.memory_space<vmem>>, vector<2x1x128xf32>
      %426 = vector.shape_cast %425 : vector<2x1x128xf32> to vector<2x128xf32>
      %427 = vector.shape_cast %424 : vector<2x128xf32> to vector<2x1x128xf32>
      tpu.vector_store %arg12[%c0_166, %c9_167, %c0_168], %427 {strides = array<i32>} : memref<2x16x128xf32, #tpu.memory_space<vmem>>, vector<2x1x128xf32>,
      %428 = vector.extract_strided_slice %387 {offsets = [0, 1280], sizes = [2, 128], strides = [1, 1]} : vector<2x2048xf32> to vector<2x128xf32>
      %c0_169 = arith.constant 0 : index
      %c10_170 = arith.constant 10 : index
      %c0_171 = arith.constant 0 : index
      %429 = vector.load %arg12[%c0_169, %c10_170, %c0_171] : memref<2x16x128xf32, #tpu.memory_space<vmem>>, vector<2x1x128xf32>
      %430 = vector.shape_cast %429 : vector<2x1x128xf32> to vector<2x128xf32>
      %431 = vector.shape_cast %428 : vector<2x128xf32> to vector<2x1x128xf32>
      tpu.vector_store %arg12[%c0_169, %c10_170, %c0_171], %431 {strides = array<i32>} : memref<2x16x128xf32, #tpu.memory_space<vmem>>, vector<2x1x128xf32>,
      %432 = vector.extract_strided_slice %387 {offsets = [0, 1408], sizes = [2, 128], strides = [1, 1]} : vector<2x2048xf32> to vector<2x128xf32>
      %c0_172 = arith.constant 0 : index
      %c11_173 = arith.constant 11 : index
      %c0_174 = arith.constant 0 : index
      %433 = vector.load %arg12[%c0_172, %c11_173, %c0_174] : memref<2x16x128xf32, #tpu.memory_space<vmem>>, vector<2x1x128xf32>
      %434 = vector.shape_cast %433 : vector<2x1x128xf32> to vector<2x128xf32>
      %435 = vector.shape_cast %432 : vector<2x128xf32> to vector<2x1x128xf32>
      tpu.vector_store %arg12[%c0_172, %c11_173, %c0_174], %435 {strides = array<i32>} : memref<2x16x128xf32, #tpu.memory_space<vmem>>, vector<2x1x128xf32>,
      %436 = vector.extract_strided_slice %387 {offsets = [0, 1536], sizes = [2, 128], strides = [1, 1]} : vector<2x2048xf32> to vector<2x128xf32>
      %c0_175 = arith.constant 0 : index
      %c12_176 = arith.constant 12 : index
      %c0_177 = arith.constant 0 : index
      %437 = vector.load %arg12[%c0_175, %c12_176, %c0_177] : memref<2x16x128xf32, #tpu.memory_space<vmem>>, vector<2x1x128xf32>
      %438 = vector.shape_cast %437 : vector<2x1x128xf32> to vector<2x128xf32>
      %439 = vector.shape_cast %436 : vector<2x128xf32> to vector<2x1x128xf32>
      tpu.vector_store %arg12[%c0_175, %c12_176, %c0_177], %439 {strides = array<i32>} : memref<2x16x128xf32, #tpu.memory_space<vmem>>, vector<2x1x128xf32>,
      %440 = vector.extract_strided_slice %387 {offsets = [0, 1664], sizes = [2, 128], strides = [1, 1]} : vector<2x2048xf32> to vector<2x128xf32>
      %c0_178 = arith.constant 0 : index
      %c13_179 = arith.constant 13 : index
      %c0_180 = arith.constant 0 : index
      %441 = vector.load %arg12[%c0_178, %c13_179, %c0_180] : memref<2x16x128xf32, #tpu.memory_space<vmem>>, vector<2x1x128xf32>
      %442 = vector.shape_cast %441 : vector<2x1x128xf32> to vector<2x128xf32>
      %443 = vector.shape_cast %440 : vector<2x128xf32> to vector<2x1x128xf32>
      tpu.vector_store %arg12[%c0_178, %c13_179, %c0_180], %443 {strides = array<i32>} : memref<2x16x128xf32, #tpu.memory_space<vmem>>, vector<2x1x128xf32>,
      %444 = vector.extract_strided_slice %387 {offsets = [0, 1792], sizes = [2, 128], strides = [1, 1]} : vector<2x2048xf32> to vector<2x128xf32>
      %c0_181 = arith.constant 0 : index
      %c14_182 = arith.constant 14 : index
      %c0_183 = arith.constant 0 : index
      %445 = vector.load %arg12[%c0_181, %c14_182, %c0_183] : memref<2x16x128xf32, #tpu.memory_space<vmem>>, vector<2x1x128xf32>
      %446 = vector.shape_cast %445 : vector<2x1x128xf32> to vector<2x128xf32>
      %447 = vector.shape_cast %444 : vector<2x128xf32> to vector<2x1x128xf32>
      tpu.vector_store %arg12[%c0_181, %c14_182, %c0_183], %447 {strides = array<i32>} : memref<2x16x128xf32, #tpu.memory_space<vmem>>, vector<2x1x128xf32>,
      %448 = vector.extract_strided_slice %387 {offsets = [0, 1920], sizes = [2, 128], strides = [1, 1]} : vector<2x2048xf32> to vector<2x128xf32>
      %c0_184 = arith.constant 0 : index
      %c15_185 = arith.constant 15 : index
      %c0_186 = arith.constant 0 : index
      %449 = vector.load %arg12[%c0_184, %c15_185, %c0_186] : memref<2x16x128xf32, #tpu.memory_space<vmem>>, vector<2x1x128xf32>
      %450 = vector.shape_cast %449 : vector<2x1x128xf32> to vector<2x128xf32>
      %451 = vector.shape_cast %448 : vector<2x128xf32> to vector<2x1x128xf32>
      tpu.vector_store %arg12[%c0_184, %c15_185, %c0_186], %451 {strides = array<i32>} : memref<2x16x128xf32, #tpu.memory_space<vmem>>, vector<2x1x128xf32>,
    } else {
    }
    %c0 = arith.constant 0 : index
    %c0_1 = arith.constant 0 : index
    %c0_2 = arith.constant 0 : index
    %3 = vector.load %arg12[%c0, %c0_1, %c0_2] : memref<2x16x128xf32, #tpu.memory_space<vmem>>, vector<2x16x128xf32>
    %4 = vector.shape_cast %3 : vector<2x16x128xf32> to vector<32x128xf32>
    %c0_3 = arith.constant 0 : index
    %c0_4 = arith.constant 0 : index
    %5 = vector.load %arg3[%c0_3, %c0_4] : memref<128x256xf32, #tpu.memory_space<vmem>>, vector<128x256xf32>
    %cst = arith.constant dense<0.000000e+00> : vector<32x256xf32>
    %6 = tpu.matmul %4, %5, %cst {dimension_numbers = #tpu.dot_dimension_numbers<[1], [0], [0], [1], [0, 0, 1, 1], [], []>} : vector<32x128xf32>, vector<128x256xf32>, vector<32x256xf32> -> vector<32x256xf32>
    %7 = vector.shape_cast %6 : vector<32x256xf32> to vector<2x16x256xf32>
    %8 = vector.extract_strided_slice %7 {offsets = [0, 0, 128], sizes = [2, 16, 128], strides = [1, 1, 1]} : vector<2x16x256xf32> to vector<2x16x128xf32>
    %9 = vector.extract_strided_slice %7 {offsets = [0, 0, 0], sizes = [2, 16, 128], strides = [1, 1, 1]} : vector<2x16x256xf32> to vector<2x16x128xf32>
    %10 = tpu.concatenate %8, %9 in 2 : vector<2x16x128xf32>, vector<2x16x128xf32> -> vector<2x16x256xf32>
    %cst_5 = arith.constant 0.000000e+00 : f32
    %11 = vector.broadcast %cst_5 : f32 to vector<2x16x256xf32>
    %cst_6 = arith.constant 0.000000e+00 : f32
    %12 = vector.broadcast %cst_6 : f32 to vector<2x16x256xf32>
    %c0_7 = arith.constant 0 : index
    %c0_8 = arith.constant 0 : index
    %c0_9 = arith.constant 0 : index
    %c0_10 = arith.constant 0 : index
    %13 = vector.load %arg5[%c0_7, %c0_8, %c0_9, %c0_10] : memref<1x16x16x256xbf16, #tpu.memory_space<vmem>>, vector<1x1x16x256xbf16>
    %14 = vector.shape_cast %13 : vector<1x1x16x256xbf16> to vector<16x256xbf16>
    %15 = arith.extf %14 : vector<16x256xbf16> to vector<16x256xf32>
    %16 = vector.shape_cast %15 : vector<16x256xf32> to vector<1x16x256xf32>
    %c0_11 = arith.constant 0 : index
    %c0_12 = arith.constant 0 : index
    %c0_13 = arith.constant 0 : index
    %c0_14 = arith.constant 0 : index
    %17 = vector.load %arg6[%c0_11, %c0_12, %c0_13, %c0_14] : memref<1x16x16x256xbf16, #tpu.memory_space<vmem>>, vector<1x1x16x256xbf16>
    %18 = vector.shape_cast %17 : vector<1x1x16x256xbf16> to vector<16x256xbf16>
    %19 = arith.extf %18 : vector<16x256xbf16> to vector<16x256xf32>
    %20 = vector.shape_cast %19 : vector<16x256xf32> to vector<1x16x256xf32>
    %21 = vector.extract_strided_slice %7 {offsets = [0, 0, 0], sizes = [2, 1, 256], strides = [1, 1, 1]} : vector<2x16x256xf32> to vector<2x1x256xf32>
    %22 = vector.shape_cast %21 : vector<2x1x256xf32> to vector<2x256xf32>
    %23 = vector.shape_cast %22 : vector<2x256xf32> to vector<2x1x256xf32>
    %24 = vector.extract_strided_slice %10 {offsets = [0, 0, 0], sizes = [2, 1, 256], strides = [1, 1, 1]} : vector<2x16x256xf32> to vector<2x1x256xf32>
    %25 = vector.shape_cast %24 : vector<2x1x256xf32> to vector<2x256xf32>
    %26 = vector.shape_cast %25 : vector<2x256xf32> to vector<2x1x256xf32>
    %27 = vector.broadcast %16 : vector<1x16x256xf32> to vector<2x16x256xf32>
    %28 = vector.broadcast %23 : vector<2x1x256xf32> to vector<2x16x256xf32>
    %29 = arith.mulf %27, %28 : vector<2x16x256xf32>
    %30 = vector.broadcast %20 : vector<1x16x256xf32> to vector<2x16x256xf32>
    %31 = vector.broadcast %26 : vector<2x1x256xf32> to vector<2x16x256xf32>
    %32 = arith.mulf %30, %31 : vector<2x16x256xf32>
    %33 = arith.addf %29, %32 : vector<2x16x256xf32>
    %34 = arith.addf %11, %33 : vector<2x16x256xf32>
    %c0_15 = arith.constant 0 : index
    %c1 = arith.constant 1 : index
    %c0_16 = arith.constant 0 : index
    %c0_17 = arith.constant 0 : index
    %35 = vector.load %arg5[%c0_15, %c1, %c0_16, %c0_17] : memref<1x16x16x256xbf16, #tpu.memory_space<vmem>>, vector<1x1x16x256xbf16>
    %36 = vector.shape_cast %35 : vector<1x1x16x256xbf16> to vector<16x256xbf16>
    %37 = arith.extf %36 : vector<16x256xbf16> to vector<16x256xf32>
    %38 = vector.shape_cast %37 : vector<16x256xf32> to vector<1x16x256xf32>
    %c0_18 = arith.constant 0 : index
    %c1_19 = arith.constant 1 : index
    %c0_20 = arith.constant 0 : index
    %c0_21 = arith.constant 0 : index
    %39 = vector.load %arg6[%c0_18, %c1_19, %c0_20, %c0_21] : memref<1x16x16x256xbf16, #tpu.memory_space<vmem>>, vector<1x1x16x256xbf16>
    %40 = vector.shape_cast %39 : vector<1x1x16x256xbf16> to vector<16x256xbf16>
    %41 = arith.extf %40 : vector<16x256xbf16> to vector<16x256xf32>
    %42 = vector.shape_cast %41 : vector<16x256xf32> to vector<1x16x256xf32>
    %43 = vector.extract_strided_slice %7 {offsets = [0, 1, 0], sizes = [2, 1, 256], strides = [1, 1, 1]} : vector<2x16x256xf32> to vector<2x1x256xf32>
    %44 = vector.shape_cast %43 : vector<2x1x256xf32> to vector<2x256xf32>
    %45 = vector.shape_cast %44 : vector<2x256xf32> to vector<2x1x256xf32>
    %46 = vector.extract_strided_slice %10 {offsets = [0, 1, 0], sizes = [2, 1, 256], strides = [1, 1, 1]} : vector<2x16x256xf32> to vector<2x1x256xf32>
    %47 = vector.shape_cast %46 : vector<2x1x256xf32> to vector<2x256xf32>
    %48 = vector.shape_cast %47 : vector<2x256xf32> to vector<2x1x256xf32>
    %49 = vector.broadcast %38 : vector<1x16x256xf32> to vector<2x16x256xf32>
    %50 = vector.broadcast %45 : vector<2x1x256xf32> to vector<2x16x256xf32>
    %51 = arith.mulf %49, %50 : vector<2x16x256xf32>
    %52 = vector.broadcast %42 : vector<1x16x256xf32> to vector<2x16x256xf32>
    %53 = vector.broadcast %48 : vector<2x1x256xf32> to vector<2x16x256xf32>
    %54 = arith.mulf %52, %53 : vector<2x16x256xf32>
    %55 = arith.addf %51, %54 : vector<2x16x256xf32>
    %56 = arith.addf %12, %55 : vector<2x16x256xf32>
    %c0_22 = arith.constant 0 : index
    %c2 = arith.constant 2 : index
    %c0_23 = arith.constant 0 : index
    %c0_24 = arith.constant 0 : index
    %57 = vector.load %arg5[%c0_22, %c2, %c0_23, %c0_24] : memref<1x16x16x256xbf16, #tpu.memory_space<vmem>>, vector<1x1x16x256xbf16>
    %58 = vector.shape_cast %57 : vector<1x1x16x256xbf16> to vector<16x256xbf16>
    %59 = arith.extf %58 : vector<16x256xbf16> to vector<16x256xf32>
    %60 = vector.shape_cast %59 : vector<16x256xf32> to vector<1x16x256xf32>
    %c0_25 = arith.constant 0 : index
    %c2_26 = arith.constant 2 : index
    %c0_27 = arith.constant 0 : index
    %c0_28 = arith.constant 0 : index
    %61 = vector.load %arg6[%c0_25, %c2_26, %c0_27, %c0_28] : memref<1x16x16x256xbf16, #tpu.memory_space<vmem>>, vector<1x1x16x256xbf16>
    %62 = vector.shape_cast %61 : vector<1x1x16x256xbf16> to vector<16x256xbf16>
    %63 = arith.extf %62 : vector<16x256xbf16> to vector<16x256xf32>
    %64 = vector.shape_cast %63 : vector<16x256xf32> to vector<1x16x256xf32>
    %65 = vector.extract_strided_slice %7 {offsets = [0, 2, 0], sizes = [2, 1, 256], strides = [1, 1, 1]} : vector<2x16x256xf32> to vector<2x1x256xf32>
    %66 = vector.shape_cast %65 : vector<2x1x256xf32> to vector<2x256xf32>
    %67 = vector.shape_cast %66 : vector<2x256xf32> to vector<2x1x256xf32>
    %68 = vector.extract_strided_slice %10 {offsets = [0, 2, 0], sizes = [2, 1, 256], strides = [1, 1, 1]} : vector<2x16x256xf32> to vector<2x1x256xf32>
    %69 = vector.shape_cast %68 : vector<2x1x256xf32> to vector<2x256xf32>
    %70 = vector.shape_cast %69 : vector<2x256xf32> to vector<2x1x256xf32>
    %71 = vector.broadcast %60 : vector<1x16x256xf32> to vector<2x16x256xf32>
    %72 = vector.broadcast %67 : vector<2x1x256xf32> to vector<2x16x256xf32>
    %73 = arith.mulf %71, %72 : vector<2x16x256xf32>
    %74 = vector.broadcast %64 : vector<1x16x256xf32> to vector<2x16x256xf32>
    %75 = vector.broadcast %70 : vector<2x1x256xf32> to vector<2x16x256xf32>
    %76 = arith.mulf %74, %75 : vector<2x16x256xf32>
    %77 = arith.addf %73, %76 : vector<2x16x256xf32>
    %78 = arith.addf %34, %77 : vector<2x16x256xf32>
    %c0_29 = arith.constant 0 : index
    %c3 = arith.constant 3 : index
    %c0_30 = arith.constant 0 : index
    %c0_31 = arith.constant 0 : index
    %79 = vector.load %arg5[%c0_29, %c3, %c0_30, %c0_31] : memref<1x16x16x256xbf16, #tpu.memory_space<vmem>>, vector<1x1x16x256xbf16>
    %80 = vector.shape_cast %79 : vector<1x1x16x256xbf16> to vector<16x256xbf16>
    %81 = arith.extf %80 : vector<16x256xbf16> to vector<16x256xf32>
    %82 = vector.shape_cast %81 : vector<16x256xf32> to vector<1x16x256xf32>
    %c0_32 = arith.constant 0 : index
    %c3_33 = arith.constant 3 : index
    %c0_34 = arith.constant 0 : index
    %c0_35 = arith.constant 0 : index
    %83 = vector.load %arg6[%c0_32, %c3_33, %c0_34, %c0_35] : memref<1x16x16x256xbf16, #tpu.memory_space<vmem>>, vector<1x1x16x256xbf16>
    %84 = vector.shape_cast %83 : vector<1x1x16x256xbf16> to vector<16x256xbf16>
    %85 = arith.extf %84 : vector<16x256xbf16> to vector<16x256xf32>
    %86 = vector.shape_cast %85 : vector<16x256xf32> to vector<1x16x256xf32>
    %87 = vector.extract_strided_slice %7 {offsets = [0, 3, 0], sizes = [2, 1, 256], strides = [1, 1, 1]} : vector<2x16x256xf32> to vector<2x1x256xf32>
    %88 = vector.shape_cast %87 : vector<2x1x256xf32> to vector<2x256xf32>
    %89 = vector.shape_cast %88 : vector<2x256xf32> to vector<2x1x256xf32>
    %90 = vector.extract_strided_slice %10 {offsets = [0, 3, 0], sizes = [2, 1, 256], strides = [1, 1, 1]} : vector<2x16x256xf32> to vector<2x1x256xf32>
    %91 = vector.shape_cast %90 : vector<2x1x256xf32> to vector<2x256xf32>
    %92 = vector.shape_cast %91 : vector<2x256xf32> to vector<2x1x256xf32>
    %93 = vector.broadcast %82 : vector<1x16x256xf32> to vector<2x16x256xf32>
    %94 = vector.broadcast %89 : vector<2x1x256xf32> to vector<2x16x256xf32>
    %95 = arith.mulf %93, %94 : vector<2x16x256xf32>
    %96 = vector.broadcast %86 : vector<1x16x256xf32> to vector<2x16x256xf32>
    %97 = vector.broadcast %92 : vector<2x1x256xf32> to vector<2x16x256xf32>
    %98 = arith.mulf %96, %97 : vector<2x16x256xf32>
    %99 = arith.addf %95, %98 : vector<2x16x256xf32>
    %100 = arith.addf %56, %99 : vector<2x16x256xf32>
    %c0_36 = arith.constant 0 : index
    %c4 = arith.constant 4 : index
    %c0_37 = arith.constant 0 : index
    %c0_38 = arith.constant 0 : index
    %101 = vector.load %arg5[%c0_36, %c4, %c0_37, %c0_38] : memref<1x16x16x256xbf16, #tpu.memory_space<vmem>>, vector<1x1x16x256xbf16>
    %102 = vector.shape_cast %101 : vector<1x1x16x256xbf16> to vector<16x256xbf16>
    %103 = arith.extf %102 : vector<16x256xbf16> to vector<16x256xf32>
    %104 = vector.shape_cast %103 : vector<16x256xf32> to vector<1x16x256xf32>
    %c0_39 = arith.constant 0 : index
    %c4_40 = arith.constant 4 : index
    %c0_41 = arith.constant 0 : index
    %c0_42 = arith.constant 0 : index
    %105 = vector.load %arg6[%c0_39, %c4_40, %c0_41, %c0_42] : memref<1x16x16x256xbf16, #tpu.memory_space<vmem>>, vector<1x1x16x256xbf16>
    %106 = vector.shape_cast %105 : vector<1x1x16x256xbf16> to vector<16x256xbf16>
    %107 = arith.extf %106 : vector<16x256xbf16> to vector<16x256xf32>
    %108 = vector.shape_cast %107 : vector<16x256xf32> to vector<1x16x256xf32>
    %109 = vector.extract_strided_slice %7 {offsets = [0, 4, 0], sizes = [2, 1, 256], strides = [1, 1, 1]} : vector<2x16x256xf32> to vector<2x1x256xf32>
    %110 = vector.shape_cast %109 : vector<2x1x256xf32> to vector<2x256xf32>
    %111 = vector.shape_cast %110 : vector<2x256xf32> to vector<2x1x256xf32>
    %112 = vector.extract_strided_slice %10 {offsets = [0, 4, 0], sizes = [2, 1, 256], strides = [1, 1, 1]} : vector<2x16x256xf32> to vector<2x1x256xf32>
    %113 = vector.shape_cast %112 : vector<2x1x256xf32> to vector<2x256xf32>
    %114 = vector.shape_cast %113 : vector<2x256xf32> to vector<2x1x256xf32>
    %115 = vector.broadcast %104 : vector<1x16x256xf32> to vector<2x16x256xf32>
    %116 = vector.broadcast %111 : vector<2x1x256xf32> to vector<2x16x256xf32>
    %117 = arith.mulf %115, %116 : vector<2x16x256xf32>
    %118 = vector.broadcast %108 : vector<1x16x256xf32> to vector<2x16x256xf32>
    %119 = vector.broadcast %114 : vector<2x1x256xf32> to vector<2x16x256xf32>
    %120 = arith.mulf %118, %119 : vector<2x16x256xf32>
    %121 = arith.addf %117, %120 : vector<2x16x256xf32>
    %122 = arith.addf %78, %121 : vector<2x16x256xf32>
    %c0_43 = arith.constant 0 : index
    %c5 = arith.constant 5 : index
    %c0_44 = arith.constant 0 : index
    %c0_45 = arith.constant 0 : index
    %123 = vector.load %arg5[%c0_43, %c5, %c0_44, %c0_45] : memref<1x16x16x256xbf16, #tpu.memory_space<vmem>>, vector<1x1x16x256xbf16>
    %124 = vector.shape_cast %123 : vector<1x1x16x256xbf16> to vector<16x256xbf16>
    %125 = arith.extf %124 : vector<16x256xbf16> to vector<16x256xf32>
    %126 = vector.shape_cast %125 : vector<16x256xf32> to vector<1x16x256xf32>
    %c0_46 = arith.constant 0 : index
    %c5_47 = arith.constant 5 : index
    %c0_48 = arith.constant 0 : index
    %c0_49 = arith.constant 0 : index
    %127 = vector.load %arg6[%c0_46, %c5_47, %c0_48, %c0_49] : memref<1x16x16x256xbf16, #tpu.memory_space<vmem>>, vector<1x1x16x256xbf16>
    %128 = vector.shape_cast %127 : vector<1x1x16x256xbf16> to vector<16x256xbf16>
    %129 = arith.extf %128 : vector<16x256xbf16> to vector<16x256xf32>
    %130 = vector.shape_cast %129 : vector<16x256xf32> to vector<1x16x256xf32>
    %131 = vector.extract_strided_slice %7 {offsets = [0, 5, 0], sizes = [2, 1, 256], strides = [1, 1, 1]} : vector<2x16x256xf32> to vector<2x1x256xf32>
    %132 = vector.shape_cast %131 : vector<2x1x256xf32> to vector<2x256xf32>
    %133 = vector.shape_cast %132 : vector<2x256xf32> to vector<2x1x256xf32>
    %134 = vector.extract_strided_slice %10 {offsets = [0, 5, 0], sizes = [2, 1, 256], strides = [1, 1, 1]} : vector<2x16x256xf32> to vector<2x1x256xf32>
    %135 = vector.shape_cast %134 : vector<2x1x256xf32> to vector<2x256xf32>
    %136 = vector.shape_cast %135 : vector<2x256xf32> to vector<2x1x256xf32>
    %137 = vector.broadcast %126 : vector<1x16x256xf32> to vector<2x16x256xf32>
    %138 = vector.broadcast %133 : vector<2x1x256xf32> to vector<2x16x256xf32>
    %139 = arith.mulf %137, %138 : vector<2x16x256xf32>
    %140 = vector.broadcast %130 : vector<1x16x256xf32> to vector<2x16x256xf32>
    %141 = vector.broadcast %136 : vector<2x1x256xf32> to vector<2x16x256xf32>
    %142 = arith.mulf %140, %141 : vector<2x16x256xf32>
    %143 = arith.addf %139, %142 : vector<2x16x256xf32>
    %144 = arith.addf %100, %143 : vector<2x16x256xf32>
    %c0_50 = arith.constant 0 : index
    %c6 = arith.constant 6 : index
    %c0_51 = arith.constant 0 : index
    %c0_52 = arith.constant 0 : index
    %145 = vector.load %arg5[%c0_50, %c6, %c0_51, %c0_52] : memref<1x16x16x256xbf16, #tpu.memory_space<vmem>>, vector<1x1x16x256xbf16>
    %146 = vector.shape_cast %145 : vector<1x1x16x256xbf16> to vector<16x256xbf16>
    %147 = arith.extf %146 : vector<16x256xbf16> to vector<16x256xf32>
    %148 = vector.shape_cast %147 : vector<16x256xf32> to vector<1x16x256xf32>
    %c0_53 = arith.constant 0 : index
    %c6_54 = arith.constant 6 : index
    %c0_55 = arith.constant 0 : index
    %c0_56 = arith.constant 0 : index
    %149 = vector.load %arg6[%c0_53, %c6_54, %c0_55, %c0_56] : memref<1x16x16x256xbf16, #tpu.memory_space<vmem>>, vector<1x1x16x256xbf16>
    %150 = vector.shape_cast %149 : vector<1x1x16x256xbf16> to vector<16x256xbf16>
    %151 = arith.extf %150 : vector<16x256xbf16> to vector<16x256xf32>
    %152 = vector.shape_cast %151 : vector<16x256xf32> to vector<1x16x256xf32>
    %153 = vector.extract_strided_slice %7 {offsets = [0, 6, 0], sizes = [2, 1, 256], strides = [1, 1, 1]} : vector<2x16x256xf32> to vector<2x1x256xf32>
    %154 = vector.shape_cast %153 : vector<2x1x256xf32> to vector<2x256xf32>
    %155 = vector.shape_cast %154 : vector<2x256xf32> to vector<2x1x256xf32>
    %156 = vector.extract_strided_slice %10 {offsets = [0, 6, 0], sizes = [2, 1, 256], strides = [1, 1, 1]} : vector<2x16x256xf32> to vector<2x1x256xf32>
    %157 = vector.shape_cast %156 : vector<2x1x256xf32> to vector<2x256xf32>
    %158 = vector.shape_cast %157 : vector<2x256xf32> to vector<2x1x256xf32>
    %159 = vector.broadcast %148 : vector<1x16x256xf32> to vector<2x16x256xf32>
    %160 = vector.broadcast %155 : vector<2x1x256xf32> to vector<2x16x256xf32>
    %161 = arith.mulf %159, %160 : vector<2x16x256xf32>
    %162 = vector.broadcast %152 : vector<1x16x256xf32> to vector<2x16x256xf32>
    %163 = vector.broadcast %158 : vector<2x1x256xf32> to vector<2x16x256xf32>
    %164 = arith.mulf %162, %163 : vector<2x16x256xf32>
    %165 = arith.addf %161, %164 : vector<2x16x256xf32>
    %166 = arith.addf %122, %165 : vector<2x16x256xf32>
    %c0_57 = arith.constant 0 : index
    %c7 = arith.constant 7 : index
    %c0_58 = arith.constant 0 : index
    %c0_59 = arith.constant 0 : index
    %167 = vector.load %arg5[%c0_57, %c7, %c0_58, %c0_59] : memref<1x16x16x256xbf16, #tpu.memory_space<vmem>>, vector<1x1x16x256xbf16>
    %168 = vector.shape_cast %167 : vector<1x1x16x256xbf16> to vector<16x256xbf16>
    %169 = arith.extf %168 : vector<16x256xbf16> to vector<16x256xf32>
    %170 = vector.shape_cast %169 : vector<16x256xf32> to vector<1x16x256xf32>
    %c0_60 = arith.constant 0 : index
    %c7_61 = arith.constant 7 : index
    %c0_62 = arith.constant 0 : index
    %c0_63 = arith.constant 0 : index
    %171 = vector.load %arg6[%c0_60, %c7_61, %c0_62, %c0_63] : memref<1x16x16x256xbf16, #tpu.memory_space<vmem>>, vector<1x1x16x256xbf16>
    %172 = vector.shape_cast %171 : vector<1x1x16x256xbf16> to vector<16x256xbf16>
    %173 = arith.extf %172 : vector<16x256xbf16> to vector<16x256xf32>
    %174 = vector.shape_cast %173 : vector<16x256xf32> to vector<1x16x256xf32>
    %175 = vector.extract_strided_slice %7 {offsets = [0, 7, 0], sizes = [2, 1, 256], strides = [1, 1, 1]} : vector<2x16x256xf32> to vector<2x1x256xf32>
    %176 = vector.shape_cast %175 : vector<2x1x256xf32> to vector<2x256xf32>
    %177 = vector.shape_cast %176 : vector<2x256xf32> to vector<2x1x256xf32>
    %178 = vector.extract_strided_slice %10 {offsets = [0, 7, 0], sizes = [2, 1, 256], strides = [1, 1, 1]} : vector<2x16x256xf32> to vector<2x1x256xf32>
    %179 = vector.shape_cast %178 : vector<2x1x256xf32> to vector<2x256xf32>
    %180 = vector.shape_cast %179 : vector<2x256xf32> to vector<2x1x256xf32>
    %181 = vector.broadcast %170 : vector<1x16x256xf32> to vector<2x16x256xf32>
    %182 = vector.broadcast %177 : vector<2x1x256xf32> to vector<2x16x256xf32>
    %183 = arith.mulf %181, %182 : vector<2x16x256xf32>
    %184 = vector.broadcast %174 : vector<1x16x256xf32> to vector<2x16x256xf32>
    %185 = vector.broadcast %180 : vector<2x1x256xf32> to vector<2x16x256xf32>
    %186 = arith.mulf %184, %185 : vector<2x16x256xf32>
    %187 = arith.addf %183, %186 : vector<2x16x256xf32>
    %188 = arith.addf %144, %187 : vector<2x16x256xf32>
    %c0_64 = arith.constant 0 : index
    %c8 = arith.constant 8 : index
    %c0_65 = arith.constant 0 : index
    %c0_66 = arith.constant 0 : index
    %189 = vector.load %arg5[%c0_64, %c8, %c0_65, %c0_66] : memref<1x16x16x256xbf16, #tpu.memory_space<vmem>>, vector<1x1x16x256xbf16>
    %190 = vector.shape_cast %189 : vector<1x1x16x256xbf16> to vector<16x256xbf16>
    %191 = arith.extf %190 : vector<16x256xbf16> to vector<16x256xf32>
    %192 = vector.shape_cast %191 : vector<16x256xf32> to vector<1x16x256xf32>
    %c0_67 = arith.constant 0 : index
    %c8_68 = arith.constant 8 : index
    %c0_69 = arith.constant 0 : index
    %c0_70 = arith.constant 0 : index
    %193 = vector.load %arg6[%c0_67, %c8_68, %c0_69, %c0_70] : memref<1x16x16x256xbf16, #tpu.memory_space<vmem>>, vector<1x1x16x256xbf16>
    %194 = vector.shape_cast %193 : vector<1x1x16x256xbf16> to vector<16x256xbf16>
    %195 = arith.extf %194 : vector<16x256xbf16> to vector<16x256xf32>
    %196 = vector.shape_cast %195 : vector<16x256xf32> to vector<1x16x256xf32>
    %197 = vector.extract_strided_slice %7 {offsets = [0, 8, 0], sizes = [2, 1, 256], strides = [1, 1, 1]} : vector<2x16x256xf32> to vector<2x1x256xf32>
    %198 = vector.shape_cast %197 : vector<2x1x256xf32> to vector<2x256xf32>
    %199 = vector.shape_cast %198 : vector<2x256xf32> to vector<2x1x256xf32>
    %200 = vector.extract_strided_slice %10 {offsets = [0, 8, 0], sizes = [2, 1, 256], strides = [1, 1, 1]} : vector<2x16x256xf32> to vector<2x1x256xf32>
    %201 = vector.shape_cast %200 : vector<2x1x256xf32> to vector<2x256xf32>
    %202 = vector.shape_cast %201 : vector<2x256xf32> to vector<2x1x256xf32>
    %203 = vector.broadcast %192 : vector<1x16x256xf32> to vector<2x16x256xf32>
    %204 = vector.broadcast %199 : vector<2x1x256xf32> to vector<2x16x256xf32>
    %205 = arith.mulf %203, %204 : vector<2x16x256xf32>
    %206 = vector.broadcast %196 : vector<1x16x256xf32> to vector<2x16x256xf32>
    %207 = vector.broadcast %202 : vector<2x1x256xf32> to vector<2x16x256xf32>
    %208 = arith.mulf %206, %207 : vector<2x16x256xf32>
    %209 = arith.addf %205, %208 : vector<2x16x256xf32>
    %210 = arith.addf %166, %209 : vector<2x16x256xf32>
    %c0_71 = arith.constant 0 : index
    %c9 = arith.constant 9 : index
    %c0_72 = arith.constant 0 : index
    %c0_73 = arith.constant 0 : index
    %211 = vector.load %arg5[%c0_71, %c9, %c0_72, %c0_73] : memref<1x16x16x256xbf16, #tpu.memory_space<vmem>>, vector<1x1x16x256xbf16>
    %212 = vector.shape_cast %211 : vector<1x1x16x256xbf16> to vector<16x256xbf16>
    %213 = arith.extf %212 : vector<16x256xbf16> to vector<16x256xf32>
    %214 = vector.shape_cast %213 : vector<16x256xf32> to vector<1x16x256xf32>
    %c0_74 = arith.constant 0 : index
    %c9_75 = arith.constant 9 : index
    %c0_76 = arith.constant 0 : index
    %c0_77 = arith.constant 0 : index
    %215 = vector.load %arg6[%c0_74, %c9_75, %c0_76, %c0_77] : memref<1x16x16x256xbf16, #tpu.memory_space<vmem>>, vector<1x1x16x256xbf16>
    %216 = vector.shape_cast %215 : vector<1x1x16x256xbf16> to vector<16x256xbf16>
    %217 = arith.extf %216 : vector<16x256xbf16> to vector<16x256xf32>
    %218 = vector.shape_cast %217 : vector<16x256xf32> to vector<1x16x256xf32>
    %219 = vector.extract_strided_slice %7 {offsets = [0, 9, 0], sizes = [2, 1, 256], strides = [1, 1, 1]} : vector<2x16x256xf32> to vector<2x1x256xf32>
    %220 = vector.shape_cast %219 : vector<2x1x256xf32> to vector<2x256xf32>
    %221 = vector.shape_cast %220 : vector<2x256xf32> to vector<2x1x256xf32>
    %222 = vector.extract_strided_slice %10 {offsets = [0, 9, 0], sizes = [2, 1, 256], strides = [1, 1, 1]} : vector<2x16x256xf32> to vector<2x1x256xf32>
    %223 = vector.shape_cast %222 : vector<2x1x256xf32> to vector<2x256xf32>
    %224 = vector.shape_cast %223 : vector<2x256xf32> to vector<2x1x256xf32>
    %225 = vector.broadcast %214 : vector<1x16x256xf32> to vector<2x16x256xf32>
    %226 = vector.broadcast %221 : vector<2x1x256xf32> to vector<2x16x256xf32>
    %227 = arith.mulf %225, %226 : vector<2x16x256xf32>
    %228 = vector.broadcast %218 : vector<1x16x256xf32> to vector<2x16x256xf32>
    %229 = vector.broadcast %224 : vector<2x1x256xf32> to vector<2x16x256xf32>
    %230 = arith.mulf %228, %229 : vector<2x16x256xf32>
    %231 = arith.addf %227, %230 : vector<2x16x256xf32>
    %232 = arith.addf %188, %231 : vector<2x16x256xf32>
    %c0_78 = arith.constant 0 : index
    %c10 = arith.constant 10 : index
    %c0_79 = arith.constant 0 : index
    %c0_80 = arith.constant 0 : index
    %233 = vector.load %arg5[%c0_78, %c10, %c0_79, %c0_80] : memref<1x16x16x256xbf16, #tpu.memory_space<vmem>>, vector<1x1x16x256xbf16>
    %234 = vector.shape_cast %233 : vector<1x1x16x256xbf16> to vector<16x256xbf16>
    %235 = arith.extf %234 : vector<16x256xbf16> to vector<16x256xf32>
    %236 = vector.shape_cast %235 : vector<16x256xf32> to vector<1x16x256xf32>
    %c0_81 = arith.constant 0 : index
    %c10_82 = arith.constant 10 : index
    %c0_83 = arith.constant 0 : index
    %c0_84 = arith.constant 0 : index
    %237 = vector.load %arg6[%c0_81, %c10_82, %c0_83, %c0_84] : memref<1x16x16x256xbf16, #tpu.memory_space<vmem>>, vector<1x1x16x256xbf16>
    %238 = vector.shape_cast %237 : vector<1x1x16x256xbf16> to vector<16x256xbf16>
    %239 = arith.extf %238 : vector<16x256xbf16> to vector<16x256xf32>
    %240 = vector.shape_cast %239 : vector<16x256xf32> to vector<1x16x256xf32>
    %241 = vector.extract_strided_slice %7 {offsets = [0, 10, 0], sizes = [2, 1, 256], strides = [1, 1, 1]} : vector<2x16x256xf32> to vector<2x1x256xf32>
    %242 = vector.shape_cast %241 : vector<2x1x256xf32> to vector<2x256xf32>
    %243 = vector.shape_cast %242 : vector<2x256xf32> to vector<2x1x256xf32>
    %244 = vector.extract_strided_slice %10 {offsets = [0, 10, 0], sizes = [2, 1, 256], strides = [1, 1, 1]} : vector<2x16x256xf32> to vector<2x1x256xf32>
    %245 = vector.shape_cast %244 : vector<2x1x256xf32> to vector<2x256xf32>
    %246 = vector.shape_cast %245 : vector<2x256xf32> to vector<2x1x256xf32>
    %247 = vector.broadcast %236 : vector<1x16x256xf32> to vector<2x16x256xf32>
    %248 = vector.broadcast %243 : vector<2x1x256xf32> to vector<2x16x256xf32>
    %249 = arith.mulf %247, %248 : vector<2x16x256xf32>
    %250 = vector.broadcast %240 : vector<1x16x256xf32> to vector<2x16x256xf32>
    %251 = vector.broadcast %246 : vector<2x1x256xf32> to vector<2x16x256xf32>
    %252 = arith.mulf %250, %251 : vector<2x16x256xf32>
    %253 = arith.addf %249, %252 : vector<2x16x256xf32>
    %254 = arith.addf %210, %253 : vector<2x16x256xf32>
    %c0_85 = arith.constant 0 : index
    %c11 = arith.constant 11 : index
    %c0_86 = arith.constant 0 : index
    %c0_87 = arith.constant 0 : index
    %255 = vector.load %arg5[%c0_85, %c11, %c0_86, %c0_87] : memref<1x16x16x256xbf16, #tpu.memory_space<vmem>>, vector<1x1x16x256xbf16>
    %256 = vector.shape_cast %255 : vector<1x1x16x256xbf16> to vector<16x256xbf16>
    %257 = arith.extf %256 : vector<16x256xbf16> to vector<16x256xf32>
    %258 = vector.shape_cast %257 : vector<16x256xf32> to vector<1x16x256xf32>
    %c0_88 = arith.constant 0 : index
    %c11_89 = arith.constant 11 : index
    %c0_90 = arith.constant 0 : index
    %c0_91 = arith.constant 0 : index
    %259 = vector.load %arg6[%c0_88, %c11_89, %c0_90, %c0_91] : memref<1x16x16x256xbf16, #tpu.memory_space<vmem>>, vector<1x1x16x256xbf16>
    %260 = vector.shape_cast %259 : vector<1x1x16x256xbf16> to vector<16x256xbf16>
    %261 = arith.extf %260 : vector<16x256xbf16> to vector<16x256xf32>
    %262 = vector.shape_cast %261 : vector<16x256xf32> to vector<1x16x256xf32>
    %263 = vector.extract_strided_slice %7 {offsets = [0, 11, 0], sizes = [2, 1, 256], strides = [1, 1, 1]} : vector<2x16x256xf32> to vector<2x1x256xf32>
    %264 = vector.shape_cast %263 : vector<2x1x256xf32> to vector<2x256xf32>
    %265 = vector.shape_cast %264 : vector<2x256xf32> to vector<2x1x256xf32>
    %266 = vector.extract_strided_slice %10 {offsets = [0, 11, 0], sizes = [2, 1, 256], strides = [1, 1, 1]} : vector<2x16x256xf32> to vector<2x1x256xf32>
    %267 = vector.shape_cast %266 : vector<2x1x256xf32> to vector<2x256xf32>
    %268 = vector.shape_cast %267 : vector<2x256xf32> to vector<2x1x256xf32>
    %269 = vector.broadcast %258 : vector<1x16x256xf32> to vector<2x16x256xf32>
    %270 = vector.broadcast %265 : vector<2x1x256xf32> to vector<2x16x256xf32>
    %271 = arith.mulf %269, %270 : vector<2x16x256xf32>
    %272 = vector.broadcast %262 : vector<1x16x256xf32> to vector<2x16x256xf32>
    %273 = vector.broadcast %268 : vector<2x1x256xf32> to vector<2x16x256xf32>
    %274 = arith.mulf %272, %273 : vector<2x16x256xf32>
    %275 = arith.addf %271, %274 : vector<2x16x256xf32>
    %276 = arith.addf %232, %275 : vector<2x16x256xf32>
    %c0_92 = arith.constant 0 : index
    %c12 = arith.constant 12 : index
    %c0_93 = arith.constant 0 : index
    %c0_94 = arith.constant 0 : index
    %277 = vector.load %arg5[%c0_92, %c12, %c0_93, %c0_94] : memref<1x16x16x256xbf16, #tpu.memory_space<vmem>>, vector<1x1x16x256xbf16>
    %278 = vector.shape_cast %277 : vector<1x1x16x256xbf16> to vector<16x256xbf16>
    %279 = arith.extf %278 : vector<16x256xbf16> to vector<16x256xf32>
    %280 = vector.shape_cast %279 : vector<16x256xf32> to vector<1x16x256xf32>
    %c0_95 = arith.constant 0 : index
    %c12_96 = arith.constant 12 : index
    %c0_97 = arith.constant 0 : index
    %c0_98 = arith.constant 0 : index
    %281 = vector.load %arg6[%c0_95, %c12_96, %c0_97, %c0_98] : memref<1x16x16x256xbf16, #tpu.memory_space<vmem>>, vector<1x1x16x256xbf16>
    %282 = vector.shape_cast %281 : vector<1x1x16x256xbf16> to vector<16x256xbf16>
    %283 = arith.extf %282 : vector<16x256xbf16> to vector<16x256xf32>
    %284 = vector.shape_cast %283 : vector<16x256xf32> to vector<1x16x256xf32>
    %285 = vector.extract_strided_slice %7 {offsets = [0, 12, 0], sizes = [2, 1, 256], strides = [1, 1, 1]} : vector<2x16x256xf32> to vector<2x1x256xf32>
    %286 = vector.shape_cast %285 : vector<2x1x256xf32> to vector<2x256xf32>
    %287 = vector.shape_cast %286 : vector<2x256xf32> to vector<2x1x256xf32>
    %288 = vector.extract_strided_slice %10 {offsets = [0, 12, 0], sizes = [2, 1, 256], strides = [1, 1, 1]} : vector<2x16x256xf32> to vector<2x1x256xf32>
    %289 = vector.shape_cast %288 : vector<2x1x256xf32> to vector<2x256xf32>
    %290 = vector.shape_cast %289 : vector<2x256xf32> to vector<2x1x256xf32>
    %291 = vector.broadcast %280 : vector<1x16x256xf32> to vector<2x16x256xf32>
    %292 = vector.broadcast %287 : vector<2x1x256xf32> to vector<2x16x256xf32>
    %293 = arith.mulf %291, %292 : vector<2x16x256xf32>
    %294 = vector.broadcast %284 : vector<1x16x256xf32> to vector<2x16x256xf32>
    %295 = vector.broadcast %290 : vector<2x1x256xf32> to vector<2x16x256xf32>
    %296 = arith.mulf %294, %295 : vector<2x16x256xf32>
    %297 = arith.addf %293, %296 : vector<2x16x256xf32>
    %298 = arith.addf %254, %297 : vector<2x16x256xf32>
    %c0_99 = arith.constant 0 : index
    %c13 = arith.constant 13 : index
    %c0_100 = arith.constant 0 : index
    %c0_101 = arith.constant 0 : index
    %299 = vector.load %arg5[%c0_99, %c13, %c0_100, %c0_101] : memref<1x16x16x256xbf16, #tpu.memory_space<vmem>>, vector<1x1x16x256xbf16>
    %300 = vector.shape_cast %299 : vector<1x1x16x256xbf16> to vector<16x256xbf16>
    %301 = arith.extf %300 : vector<16x256xbf16> to vector<16x256xf32>
    %302 = vector.shape_cast %301 : vector<16x256xf32> to vector<1x16x256xf32>
    %c0_102 = arith.constant 0 : index
    %c13_103 = arith.constant 13 : index
    %c0_104 = arith.constant 0 : index
    %c0_105 = arith.constant 0 : index
    %303 = vector.load %arg6[%c0_102, %c13_103, %c0_104, %c0_105] : memref<1x16x16x256xbf16, #tpu.memory_space<vmem>>, vector<1x1x16x256xbf16>
    %304 = vector.shape_cast %303 : vector<1x1x16x256xbf16> to vector<16x256xbf16>
    %305 = arith.extf %304 : vector<16x256xbf16> to vector<16x256xf32>
    %306 = vector.shape_cast %305 : vector<16x256xf32> to vector<1x16x256xf32>
    %307 = vector.extract_strided_slice %7 {offsets = [0, 13, 0], sizes = [2, 1, 256], strides = [1, 1, 1]} : vector<2x16x256xf32> to vector<2x1x256xf32>
    %308 = vector.shape_cast %307 : vector<2x1x256xf32> to vector<2x256xf32>
    %309 = vector.shape_cast %308 : vector<2x256xf32> to vector<2x1x256xf32>
    %310 = vector.extract_strided_slice %10 {offsets = [0, 13, 0], sizes = [2, 1, 256], strides = [1, 1, 1]} : vector<2x16x256xf32> to vector<2x1x256xf32>
    %311 = vector.shape_cast %310 : vector<2x1x256xf32> to vector<2x256xf32>
    %312 = vector.shape_cast %311 : vector<2x256xf32> to vector<2x1x256xf32>
    %313 = vector.broadcast %302 : vector<1x16x256xf32> to vector<2x16x256xf32>
    %314 = vector.broadcast %309 : vector<2x1x256xf32> to vector<2x16x256xf32>
    %315 = arith.mulf %313, %314 : vector<2x16x256xf32>
    %316 = vector.broadcast %306 : vector<1x16x256xf32> to vector<2x16x256xf32>
    %317 = vector.broadcast %312 : vector<2x1x256xf32> to vector<2x16x256xf32>
    %318 = arith.mulf %316, %317 : vector<2x16x256xf32>
    %319 = arith.addf %315, %318 : vector<2x16x256xf32>
    %320 = arith.addf %276, %319 : vector<2x16x256xf32>
    %c0_106 = arith.constant 0 : index
    %c14 = arith.constant 14 : index
    %c0_107 = arith.constant 0 : index
    %c0_108 = arith.constant 0 : index
    %321 = vector.load %arg5[%c0_106, %c14, %c0_107, %c0_108] : memref<1x16x16x256xbf16, #tpu.memory_space<vmem>>, vector<1x1x16x256xbf16>
    %322 = vector.shape_cast %321 : vector<1x1x16x256xbf16> to vector<16x256xbf16>
    %323 = arith.extf %322 : vector<16x256xbf16> to vector<16x256xf32>
    %324 = vector.shape_cast %323 : vector<16x256xf32> to vector<1x16x256xf32>
    %c0_109 = arith.constant 0 : index
    %c14_110 = arith.constant 14 : index
    %c0_111 = arith.constant 0 : index
    %c0_112 = arith.constant 0 : index
    %325 = vector.load %arg6[%c0_109, %c14_110, %c0_111, %c0_112] : memref<1x16x16x256xbf16, #tpu.memory_space<vmem>>, vector<1x1x16x256xbf16>
    %326 = vector.shape_cast %325 : vector<1x1x16x256xbf16> to vector<16x256xbf16>
    %327 = arith.extf %326 : vector<16x256xbf16> to vector<16x256xf32>
    %328 = vector.shape_cast %327 : vector<16x256xf32> to vector<1x16x256xf32>
    %329 = vector.extract_strided_slice %7 {offsets = [0, 14, 0], sizes = [2, 1, 256], strides = [1, 1, 1]} : vector<2x16x256xf32> to vector<2x1x256xf32>
    %330 = vector.shape_cast %329 : vector<2x1x256xf32> to vector<2x256xf32>
    %331 = vector.shape_cast %330 : vector<2x256xf32> to vector<2x1x256xf32>
    %332 = vector.extract_strided_slice %10 {offsets = [0, 14, 0], sizes = [2, 1, 256], strides = [1, 1, 1]} : vector<2x16x256xf32> to vector<2x1x256xf32>
    %333 = vector.shape_cast %332 : vector<2x1x256xf32> to vector<2x256xf32>
    %334 = vector.shape_cast %333 : vector<2x256xf32> to vector<2x1x256xf32>
    %335 = vector.broadcast %324 : vector<1x16x256xf32> to vector<2x16x256xf32>
    %336 = vector.broadcast %331 : vector<2x1x256xf32> to vector<2x16x256xf32>
    %337 = arith.mulf %335, %336 : vector<2x16x256xf32>
    %338 = vector.broadcast %328 : vector<1x16x256xf32> to vector<2x16x256xf32>
    %339 = vector.broadcast %334 : vector<2x1x256xf32> to vector<2x16x256xf32>
    %340 = arith.mulf %338, %339 : vector<2x16x256xf32>
    %341 = arith.addf %337, %340 : vector<2x16x256xf32>
    %342 = arith.addf %298, %341 : vector<2x16x256xf32>
    %c0_113 = arith.constant 0 : index
    %c15 = arith.constant 15 : index
    %c0_114 = arith.constant 0 : index
    %c0_115 = arith.constant 0 : index
    %343 = vector.load %arg5[%c0_113, %c15, %c0_114, %c0_115] : memref<1x16x16x256xbf16, #tpu.memory_space<vmem>>, vector<1x1x16x256xbf16>
    %344 = vector.shape_cast %343 : vector<1x1x16x256xbf16> to vector<16x256xbf16>
    %345 = arith.extf %344 : vector<16x256xbf16> to vector<16x256xf32>
    %346 = vector.shape_cast %345 : vector<16x256xf32> to vector<1x16x256xf32>
    %c0_116 = arith.constant 0 : index
    %c15_117 = arith.constant 15 : index
    %c0_118 = arith.constant 0 : index
    %c0_119 = arith.constant 0 : index
    %347 = vector.load %arg6[%c0_116, %c15_117, %c0_118, %c0_119] : memref<1x16x16x256xbf16, #tpu.memory_space<vmem>>, vector<1x1x16x256xbf16>
    %348 = vector.shape_cast %347 : vector<1x1x16x256xbf16> to vector<16x256xbf16>
    %349 = arith.extf %348 : vector<16x256xbf16> to vector<16x256xf32>
    %350 = vector.shape_cast %349 : vector<16x256xf32> to vector<1x16x256xf32>
    %351 = vector.extract_strided_slice %7 {offsets = [0, 15, 0], sizes = [2, 1, 256], strides = [1, 1, 1]} : vector<2x16x256xf32> to vector<2x1x256xf32>
    %352 = vector.shape_cast %351 : vector<2x1x256xf32> to vector<2x256xf32>
    %353 = vector.shape_cast %352 : vector<2x256xf32> to vector<2x1x256xf32>
    %354 = vector.extract_strided_slice %10 {offsets = [0, 15, 0], sizes = [2, 1, 256], strides = [1, 1, 1]} : vector<2x16x256xf32> to vector<2x1x256xf32>
    %355 = vector.shape_cast %354 : vector<2x1x256xf32> to vector<2x256xf32>
    %356 = vector.shape_cast %355 : vector<2x256xf32> to vector<2x1x256xf32>
    %357 = vector.broadcast %346 : vector<1x16x256xf32> to vector<2x16x256xf32>
    %358 = vector.broadcast %353 : vector<2x1x256xf32> to vector<2x16x256xf32>
    %359 = arith.mulf %357, %358 : vector<2x16x256xf32>
    %360 = vector.broadcast %350 : vector<1x16x256xf32> to vector<2x16x256xf32>
    %361 = vector.broadcast %356 : vector<2x1x256xf32> to vector<2x16x256xf32>
    %362 = arith.mulf %360, %361 : vector<2x16x256xf32>
    %363 = arith.addf %359, %362 : vector<2x16x256xf32>
    %364 = arith.addf %320, %363 : vector<2x16x256xf32>
    %365 = arith.addf %342, %364 : vector<2x16x256xf32>
    %366 = vector.shape_cast %365 : vector<2x16x256xf32> to vector<32x256xf32>
    %c0_120 = arith.constant 0 : index
    %c0_121 = arith.constant 0 : index
    %367 = vector.load %arg4[%c0_120, %c0_121] : memref<256x128xf32, #tpu.memory_space<vmem>>, vector<256x128xf32>
    %cst_122 = arith.constant dense<0.000000e+00> : vector<32x128xf32>
    %368 = tpu.matmul %366, %367, %cst_122 {dimension_numbers = #tpu.dot_dimension_numbers<[1], [0], [0], [1], [0, 0, 1, 1], [], []>} : vector<32x256xf32>, vector<256x128xf32>, vector<32x128xf32> -> vector<32x128xf32>
    %369 = vector.shape_cast %368 : vector<32x128xf32> to vector<2x16x128xf32>
    %c0_123 = arith.constant 0 : index
    %c0_124 = arith.constant 0 : index
    %c0_125 = arith.constant 0 : index
    %370 = vector.load %arg7[%c0_123, %c0_124, %c0_125] : memref<1x16x128xf32, #tpu.memory_space<vmem>>, vector<1x16x128xf32>
    %371 = vector.broadcast %370 : vector<1x16x128xf32> to vector<2x16x128xf32>
    %372 = arith.addf %369, %371 : vector<2x16x128xf32>
    %cst_126 = arith.constant 0.000000e+00 : f32
    %373 = vector.broadcast %cst_126 : f32 to vector<2x16x128xf32>
    %374 = arith.maximumf %372, %373 : vector<2x16x128xf32>
    %c0_127 = arith.constant 0 : index
    %c0_128 = arith.constant 0 : index
    %c0_129 = arith.constant 0 : index
    %375 = vector.load %arg12[%c0_127, %c0_128, %c0_129] : memref<2x16x128xf32, #tpu.memory_space<vmem>>, vector<2x16x128xf32>
    tpu.vector_store %arg12[%c0_127, %c0_128, %c0_129], %374 {strides = array<i32>} : memref<2x16x128xf32, #tpu.memory_space<vmem>>, vector<2x16x128xf32>,
    %c2_i32 = arith.constant 2 : i32
    %376 = arith.cmpi eq, %arg0, %c2_i32 : i32
    %377 = arith.extui %376 : i1 to i32
    %c0_i32_130 = arith.constant 0 : i32
    %378 = arith.cmpi ne, %377, %c0_i32_130 : i32
    scf.if %378 {
      %379 = vector.extract_strided_slice %374 {offsets = [0, 0, 0], sizes = [2, 1, 128], strides = [1, 1, 1]} : vector<2x16x128xf32> to vector<2x1x128xf32>
      %380 = vector.shape_cast %379 : vector<2x1x128xf32> to vector<2x128xf32>
      %381 = vector.extract_strided_slice %374 {offsets = [0, 1, 0], sizes = [2, 1, 128], strides = [1, 1, 1]} : vector<2x16x128xf32> to vector<2x1x128xf32>
      %382 = vector.shape_cast %381 : vector<2x1x128xf32> to vector<2x128xf32>
      %383 = vector.extract_strided_slice %374 {offsets = [0, 2, 0], sizes = [2, 1, 128], strides = [1, 1, 1]} : vector<2x16x128xf32> to vector<2x1x128xf32>
      %384 = vector.shape_cast %383 : vector<2x1x128xf32> to vector<2x128xf32>
      %385 = vector.extract_strided_slice %374 {offsets = [0, 3, 0], sizes = [2, 1, 128], strides = [1, 1, 1]} : vector<2x16x128xf32> to vector<2x1x128xf32>
      %386 = vector.shape_cast %385 : vector<2x1x128xf32> to vector<2x128xf32>
      %387 = vector.extract_strided_slice %374 {offsets = [0, 4, 0], sizes = [2, 1, 128], strides = [1, 1, 1]} : vector<2x16x128xf32> to vector<2x1x128xf32>
      %388 = vector.shape_cast %387 : vector<2x1x128xf32> to vector<2x128xf32>
      %389 = vector.extract_strided_slice %374 {offsets = [0, 5, 0], sizes = [2, 1, 128], strides = [1, 1, 1]} : vector<2x16x128xf32> to vector<2x1x128xf32>
      %390 = vector.shape_cast %389 : vector<2x1x128xf32> to vector<2x128xf32>
      %391 = vector.extract_strided_slice %374 {offsets = [0, 6, 0], sizes = [2, 1, 128], strides = [1, 1, 1]} : vector<2x16x128xf32> to vector<2x1x128xf32>
      %392 = vector.shape_cast %391 : vector<2x1x128xf32> to vector<2x128xf32>
      %393 = vector.extract_strided_slice %374 {offsets = [0, 7, 0], sizes = [2, 1, 128], strides = [1, 1, 1]} : vector<2x16x128xf32> to vector<2x1x128xf32>
      %394 = vector.shape_cast %393 : vector<2x1x128xf32> to vector<2x128xf32>
      %395 = vector.extract_strided_slice %374 {offsets = [0, 8, 0], sizes = [2, 1, 128], strides = [1, 1, 1]} : vector<2x16x128xf32> to vector<2x1x128xf32>
      %396 = vector.shape_cast %395 : vector<2x1x128xf32> to vector<2x128xf32>
      %397 = vector.extract_strided_slice %374 {offsets = [0, 9, 0], sizes = [2, 1, 128], strides = [1, 1, 1]} : vector<2x16x128xf32> to vector<2x1x128xf32>
      %398 = vector.shape_cast %397 : vector<2x1x128xf32> to vector<2x128xf32>
      %399 = vector.extract_strided_slice %374 {offsets = [0, 10, 0], sizes = [2, 1, 128], strides = [1, 1, 1]} : vector<2x16x128xf32> to vector<2x1x128xf32>
      %400 = vector.shape_cast %399 : vector<2x1x128xf32> to vector<2x128xf32>
      %401 = vector.extract_strided_slice %374 {offsets = [0, 11, 0], sizes = [2, 1, 128], strides = [1, 1, 1]} : vector<2x16x128xf32> to vector<2x1x128xf32>
      %402 = vector.shape_cast %401 : vector<2x1x128xf32> to vector<2x128xf32>
      %403 = vector.extract_strided_slice %374 {offsets = [0, 12, 0], sizes = [2, 1, 128], strides = [1, 1, 1]} : vector<2x16x128xf32> to vector<2x1x128xf32>
      %404 = vector.shape_cast %403 : vector<2x1x128xf32> to vector<2x128xf32>
      %405 = vector.extract_strided_slice %374 {offsets = [0, 13, 0], sizes = [2, 1, 128], strides = [1, 1, 1]} : vector<2x16x128xf32> to vector<2x1x128xf32>
      %406 = vector.shape_cast %405 : vector<2x1x128xf32> to vector<2x128xf32>
      %407 = vector.extract_strided_slice %374 {offsets = [0, 14, 0], sizes = [2, 1, 128], strides = [1, 1, 1]} : vector<2x16x128xf32> to vector<2x1x128xf32>
      %408 = vector.shape_cast %407 : vector<2x1x128xf32> to vector<2x128xf32>
      %409 = vector.extract_strided_slice %374 {offsets = [0, 15, 0], sizes = [2, 1, 128], strides = [1, 1, 1]} : vector<2x16x128xf32> to vector<2x1x128xf32>
      %410 = vector.shape_cast %409 : vector<2x1x128xf32> to vector<2x128xf32>
      %411 = tpu.concatenate %380, %382, %384, %386, %388, %390, %392, %394, %396, %398, %400, %402, %404, %406, %408, %410 in 1 : vector<2x128xf32>, vector<2x128xf32>, vector<2x128xf32>, vector<2x128xf32>, vector<2x128xf32>, vector<2x128xf32>, vector<2x128xf32>, vector<2x128xf32>, vector<2x128xf32>, vector<2x128xf32>, vector<2x128xf32>, vector<2x128xf32>, vector<2x128xf32>, vector<2x128xf32>, vector<2x128xf32>, vector<2x128xf32> -> vector<2x2048xf32>
      %412 = arith.truncf %411 : vector<2x2048xf32> to vector<2x2048xbf16>
      %c0_131 = arith.constant 0 : index
      %c0_132 = arith.constant 0 : index
      %413 = vector.load %arg8[%c0_131, %c0_132] : memref<2048x128xbf16, #tpu.memory_space<vmem>>, vector<2048x128xbf16>
      %cst_133 = arith.constant dense<0.000000e+00> : vector<2x128xf32>
      %414 = tpu.matmul %412, %413, %cst_133 {dimension_numbers = #tpu.dot_dimension_numbers<[1], [0], [0], [1], [0, 0, 1, 1], [], []>} : vector<2x2048xbf16>, vector<2048x128xbf16>, vector<2x128xf32> -> vector<2x128xf32>
      %c0_134 = arith.constant 0 : index
      %c0_135 = arith.constant 0 : index
      %415 = vector.load %arg10[%c0_134, %c0_135] : memref<1x128xf32, #tpu.memory_space<vmem>>, vector<1x128xf32>
      %416 = vector.broadcast %415 : vector<1x128xf32> to vector<2x128xf32>
      %417 = arith.addf %414, %416 : vector<2x128xf32>
      %c0_136 = arith.constant 0 : index
      %c0_137 = arith.constant 0 : index
      %418 = vector.load %arg11[%c0_136, %c0_137] : memref<2x128xf32, #tpu.memory_space<vmem>>, vector<2x128xf32>
      tpu.vector_store %arg11[%c0_136, %c0_137], %417 {strides = array<i32>} : memref<2x128xf32, #tpu.memory_space<vmem>>, vector<2x128xf32>,
    } else {
    }
    return
  }
  func.func @transform_0(%arg0: i32) -> (i32, i32) {
    %c0_i32 = arith.constant 0 : i32
    %c0_i32_0 = arith.constant 0 : i32
    %c0_i32_1 = arith.constant 0 : i32
    return %c0_i32, %c0_i32_0 : i32, i32
  }
  func.func @transform_1(%arg0: i32) -> (i32, i32) {
    %c0_i32 = arith.constant 0 : i32
    %c0_i32_0 = arith.constant 0 : i32
    %c0_i32_1 = arith.constant 0 : i32
    return %c0_i32, %c0_i32_0 : i32, i32
  }
  func.func @transform_2(%arg0: i32) -> (i32, i32) {
    %c0_i32 = arith.constant 0 : i32
    %c0_i32_0 = arith.constant 0 : i32
    %c0_i32_1 = arith.constant 0 : i32
    return %c0_i32, %c0_i32_0 : i32, i32
  }
  func.func @transform_3(%arg0: i32) -> (i32, i32) {
    %c0_i32 = arith.constant 0 : i32
    %c0_i32_0 = arith.constant 0 : i32
    %c0_i32_1 = arith.constant 0 : i32
    return %c0_i32, %c0_i32_0 : i32, i32
  }
  func.func @transform_4(%arg0: i32) -> (i32, i32, i32, i32) {
    %c0_i32 = arith.constant 0 : i32
    %c0_i32_0 = arith.constant 0 : i32
    %c0_i32_1 = arith.constant 0 : i32
    %c0_i32_2 = arith.constant 0 : i32
    return %arg0, %c0_i32, %c0_i32_0, %c0_i32_1 : i32, i32, i32, i32
  }
  func.func @transform_5(%arg0: i32) -> (i32, i32, i32, i32) {
    %c0_i32 = arith.constant 0 : i32
    %c0_i32_0 = arith.constant 0 : i32
    %c0_i32_1 = arith.constant 0 : i32
    %c0_i32_2 = arith.constant 0 : i32
    return %arg0, %c0_i32, %c0_i32_0, %c0_i32_1 : i32, i32, i32, i32
  }
  func.func @transform_6(%arg0: i32) -> (i32, i32, i32) {
    %c0_i32 = arith.constant 0 : i32
    %c0_i32_0 = arith.constant 0 : i32
    %c0_i32_1 = arith.constant 0 : i32
    return %arg0, %c0_i32, %c0_i32_0 : i32, i32, i32
  }
  func.func @transform_7(%arg0: i32) -> (i32, i32) {
    %c0_i32 = arith.constant 0 : i32
    %c0_i32_0 = arith.constant 0 : i32
    %c0_i32_1 = arith.constant 0 : i32
    return %c0_i32, %c0_i32_0 : i32, i32
  }
  func.func @transform_8(%arg0: i32) -> (i32, i32) {
    %c0_i32 = arith.constant 0 : i32
    %c0_i32_0 = arith.constant 0 : i32
    %c0_i32_1 = arith.constant 0 : i32
    return %c0_i32, %c0_i32_0 : i32, i32
  }
  func.func @transform_9(%arg0: i32) -> (i32, i32) {
    %c0_i32 = arith.constant 0 : i32
    %c0_i32_0 = arith.constant 0 : i32
    %c0_i32_1 = arith.constant 0 : i32
    return %c0_i32, %c0_i32_0 : i32, i32
  }
  func.func @transform_10(%arg0: i32) -> (i32, i32) {
    %c0_i32 = arith.constant 0 : i32
    %c0_i32_0 = arith.constant 0 : i32
    %c0_i32_1 = arith.constant 0 : i32
    return %c0_i32, %c0_i32_0 : i32, i32
  }
}

</mosaic_0001>

<llo_original>
// kernel: spherical_cnn_forward.1
$region0: #{spherical_cnn_forward.1}
  #allocation0 [shape = 'u32[]', space=smem, size = 0x4, offset = 0x4, fixed_abs, tag = 'smem constant byte address 0x4 - core index']
  #allocation1 [shape = 'u32[144,128]{1,0:T(1,128)}', space=vmem, size = 0x12000, scoped, tag = 'internal scratch']
  #allocation2 [shape = 'f32[2,16,128]{2,1,0:T(8,128)}', space=vmem, size = 0x4000, scoped, tag = 'scratch operand']
  %s0 = inlined_call_operand.vmem [shape: f32[2,128], index: 0, kind: input, shape index: {}]
  %s1 = inlined_call_operand.hbm [shape: bf16[128,2048], index: 1, kind: input, shape index: {}]
  %s2 = inlined_call_operand.hbm [shape: f32[128,256], index: 2, kind: input, shape index: {}]
  %s3 = inlined_call_operand.hbm [shape: f32[256,128], index: 3, kind: input, shape index: {}]
  %s4 = inlined_call_operand.hbm [shape: bf16[3,16,16,256], index: 4, kind: input, shape index: {}]
  %s5 = inlined_call_operand.hbm [shape: bf16[3,16,16,256], index: 5, kind: input, shape index: {}]
  %s6 = inlined_call_operand.hbm [shape: f32[3,16,128], index: 6, kind: input, shape index: {}]
  %s7 = inlined_call_operand.hbm [shape: bf16[2048,128], index: 7, kind: input, shape index: {}]
  %s8 = inlined_call_operand.vmem [shape: f32[1,2048], index: 8, kind: input, shape index: {}]
  %s9 = inlined_call_operand.vmem [shape: f32[1,128], index: 9, kind: input, shape index: {}]
  %s10 = inlined_call_operand.vmem [shape: f32[2,128], index: 10, kind: output, shape index: {}]
  %s11 = sld [smem:[#allocation0]]
  $region109: #{spherical_cnn_forward.1} parent=0
    _
  %s13 = ssub.s32 1, %s11
  %s14 = scalar_select 0, %s13, %s11
  $region1: #{spherical_cnn_forward.1} parent=0
    #allocation3 [shape = 'u8[524288]{0}', space=vmem, size = 0x80000, scoped, tag = 'input window, operand 1, single buffered']
    #allocation4 [shape = 's32[2]{0}', space=sflag, size = 0x8, scoped, tag = 'scoped memory for spherical_cnn_forward.1']
    #allocation5 [shape = 'u8[131072]{0}', space=vmem, size = 0x20000, scoped, tag = 'input window, operand 2, single buffered']
    #allocation6 [shape = 's32[1]{0}', space=sflag, size = 0x4, scoped, tag = 'scoped memory for spherical_cnn_forward.1']
    #allocation7 [shape = 'u8[131072]{0}', space=vmem, size = 0x20000, scoped, tag = 'input window, operand 3, single buffered']
    #allocation8 [shape = 'u8[262144]{0}', space=vmem, size = 0x40000, scoped, tag = 'input window, operand 4']
    #allocation9 [shape = 's32[2]{0}', space=sflag, size = 0x8, scoped, tag = 'scoped memory for spherical_cnn_forward.1']
    #allocation10 [shape = 'u8[262144]{0}', space=vmem, size = 0x40000, scoped, tag = 'input window, operand 5']
    #allocation11 [shape = 'u8[16384]{0}', space=vmem, size = 0x4000, scoped, tag = 'input window, operand 6']
    #allocation12 [shape = 's32[2]{0}', space=sflag, size = 0x8, scoped, tag = 'scoped memory for spherical_cnn_forward.1']
    #allocation13 [shape = 'u8[524288]{0}', space=vmem, size = 0x80000, scoped, tag = 'input window, operand 7, single buffered']
    %15 = vsyncpa [#allocation4], 0
    %16 = vsyncpa [#allocation6], 0
    %17 = vsyncpa [#allocation9], 0
    %s18 = scalar_lea.sflag [#allocation9], 1
    %19 = vsyncpa %s18, 0
    %20 = vsyncpa [#allocation12], 0
    %s21 = scalar_lea.sflag [#allocation12], 1
    %22 = vsyncpa %s21, 0
    loop: start=0, step=1, limit=5
    $region2: #{spherical_cnn_forward.1} parent=1 // loop_pre_header
      _
    $region3: #{spherical_cnn_forward.1} parent=1 // loop_header
      %s24 = sphi 0, %s28
      %p25 = scmp.ge.s32.totalorder %s24, 5
      %s32 = sphi 0, %s32
      %s34 = sphi 0, %s32
      %s35 = sphi 0, %s34
      %s49 = sphi 0, %s35
      %s53 = sphi 0, %s53
      %s55 = sphi 0, %s53
      %s56 = sphi 0, %s55
      %s70 = sphi 0, %s56
      %s74 = sphi 0, %s74
      %s76 = sphi 0, %s74
      %s77 = sphi 0, %s76
      %s91 = sphi 0, %s77
      %s95 = sphi 0, %s95
      %s97 = sphi 0, %s95
      %s98 = sphi 0, %s97
      %s112 = sphi 0, %s98
      %s118 = sphi 0, %s120
      %s121 = sphi 0, %s118
      %s122 = sphi 0, %s121
      %s138 = sphi 0, %s122
      %s144 = sphi 0, %s146
      %s147 = sphi 0, %s144
      %s148 = sphi 0, %s147
      %s164 = sphi 0, %s148
      %s170 = sphi 0, %s172
      %s173 = sphi 0, %s170
      %s174 = sphi 0, %s173
      %s190 = sphi 0, %s174
      %s194 = sphi 0, %s194
      %s196 = sphi 0, %s194
      %s197 = sphi 0, %s196
      %s211 = sphi 0, %s197
      %s215 = sphi 0, %s215
      %s217 = sphi 0, %s215
      %s218 = sphi 0, %s217
      %s232 = sphi 0, %s218
      %s236 = sphi 0, %s236
      %s238 = sphi 0, %s236
      %s239 = sphi 0, %s238
      %s253 = sphi 0, %s239
      %s257 = sphi 0, %s257
      %s259 = sphi 0, %s257
      %s260 = sphi 0, %s259
      %s274 = sphi 0, %s260
    $region4: #{spherical_cnn_forward.1} parent=1 // loop_header_branch
      %27 = sbr.rel (%p25) target = $region8
    $region5: #{spherical_cnn_forward.1} parent=1 // loop_body
      %s29 = ssub.s32 %s24, 1
      %s30 = ssub.s32 %s24, 2
      %s31 = sadd.s32 %s24, 1
      %s33 = sadd.s32 %s32, 1
      %p36 = scmp.eq.s32.totalorder %s24, 2
      %p37 = scmp.ne.s32.totalorder %s32, %s34
      %p38 = scmp.eq.s32.totalorder %s24, 0
      %p39 = por %p37, %p38
      %p40 = scmp.ne.s32.totalorder %s32, %s34
      %p41 = scmp.eq.s32.totalorder %s29, 2
      %p42 = por %p40, %p41
      %p43 = scmp.ne.s32.totalorder %s34, %s35
      %p44 = scmp.eq.s32.totalorder %s29, 0
      %p45 = por %p43, %p44
      %p46 = scmp.ne.s32.totalorder %s34, %s35
      %p47 = scmp.eq.s32.totalorder %s30, 2
      %p48 = por %p46, %p47
      %p50 = scmp.ne.s32.totalorder %s35, %s49
      %p51 = scmp.eq.s32.totalorder %s30, 0
      %p52 = por %p50, %p51
      %s54 = sadd.s32 %s53, 1
      %p57 = scmp.eq.s32.totalorder %s24, 2
      %p58 = scmp.ne.s32.totalorder %s53, %s55
      %p59 = scmp.eq.s32.totalorder %s24, 0
      %p60 = por %p58, %p59
      %p61 = scmp.ne.s32.totalorder %s53, %s55
      %p62 = scmp.eq.s32.totalorder %s29, 2
      %p63 = por %p61, %p62
      %p64 = scmp.ne.s32.totalorder %s55, %s56
      %p65 = scmp.eq.s32.totalorder %s29, 0
      %p66 = por %p64, %p65
      %p67 = scmp.ne.s32.totalorder %s55, %s56
      %p68 = scmp.eq.s32.totalorder %s30, 2
      %p69 = por %p67, %p68
      %p71 = scmp.ne.s32.totalorder %s56, %s70
      %p72 = scmp.eq.s32.totalorder %s30, 0
      %p73 = por %p71, %p72
      %s75 = sadd.s32 %s74, 1
      %p78 = scmp.eq.s32.totalorder %s24, 2
      %p79 = scmp.ne.s32.totalorder %s74, %s76
      %p80 = scmp.eq.s32.totalorder %s24, 0
      %p81 = por %p79, %p80
      %p82 = scmp.ne.s32.totalorder %s74, %s76
      %p83 = scmp.eq.s32.totalorder %s29, 2
      %p84 = por %p82, %p83
      %p85 = scmp.ne.s32.totalorder %s76, %s77
      %p86 = scmp.eq.s32.totalorder %s29, 0
      %p87 = por %p85, %p86
      %p88 = scmp.ne.s32.totalorder %s76, %s77
      %p89 = scmp.eq.s32.totalorder %s30, 2
      %p90 = por %p88, %p89
      %p92 = scmp.ne.s32.totalorder %s77, %s91
      %p93 = scmp.eq.s32.totalorder %s30, 0
      %p94 = por %p92, %p93
      %s96 = sadd.s32 %s95, 1
      %p99 = scmp.eq.s32.totalorder %s24, 2
      %p100 = scmp.ne.s32.totalorder %s95, %s97
      %p101 = scmp.eq.s32.totalorder %s24, 0
      %p102 = por %p100, %p101
      %p103 = scmp.ne.s32.totalorder %s95, %s97
      %p104 = scmp.eq.s32.totalorder %s29, 2
      %p105 = por %p103, %p104
      %p106 = scmp.ne.s32.totalorder %s97, %s98
      %p107 = scmp.eq.s32.totalorder %s29, 0
      %p108 = por %p106, %p107
      %p109 = scmp.ne.s32.totalorder %s97, %s98
      %p110 = scmp.eq.s32.totalorder %s30, 2
      %p111 = por %p109, %p110
      %p113 = scmp.ne.s32.totalorder %s98, %s112
      %p114 = scmp.eq.s32.totalorder %s30, 0
      %p115 = por %p113, %p114
      %s116 = ssub.s32 %s24, %s31
      %p117 = scmp.eq.s32.totalorder %s116, 0
      %s119 = sadd.s32 %s118, 1
      %s120 = scalar_select %p117, %s118, %s119
      %p123 = pneg %p117
      %p124 = scmp.eq.s32.totalorder %s24, 2
      %p125 = por %p123, %p124
      %p126 = scmp.ne.s32.totalorder %s118, %s121
      %p127 = scmp.eq.s32.totalorder %s24, 0
      %p128 = por %p126, %p127
      %p129 = scmp.ne.s32.totalorder %s118, %s121
      %p130 = scmp.eq.s32.totalorder %s29, 2
      %p131 = por %p129, %p130
      %p132 = scmp.ne.s32.totalorder %s121, %s122
      %p133 = scmp.eq.s32.totalorder %s29, 0
      %p134 = por %p132, %p133
      %p135 = scmp.ne.s32.totalorder %s121, %s122
      %p136 = scmp.eq.s32.totalorder %s30, 2
      %p137 = por %p135, %p136
      %p139 = scmp.ne.s32.totalorder %s122, %s138
      %p140 = scmp.eq.s32.totalorder %s30, 0
      %p141 = por %p139, %p140
      %s142 = ssub.s32 %s24, %s31
      %p143 = scmp.eq.s32.totalorder %s142, 0
      %s145 = sadd.s32 %s144, 1
      %s146 = scalar_select %p143, %s144, %s145
      %p149 = pneg %p143
      %p150 = scmp.eq.s32.totalorder %s24, 2
      %p151 = por %p149, %p150
      %p152 = scmp.ne.s32.totalorder %s144, %s147
      %p153 = scmp.eq.s32.totalorder %s24, 0
      %p154 = por %p152, %p153
      %p155 = scmp.ne.s32.totalorder %s144, %s147
      %p156 = scmp.eq.s32.totalorder %s29, 2
      %p157 = por %p155, %p156
      %p158 = scmp.ne.s32.totalorder %s147, %s148
      %p159 = scmp.eq.s32.totalorder %s29, 0
      %p160 = por %p158, %p159
      %p161 = scmp.ne.s32.totalorder %s147, %s148
      %p162 = scmp.eq.s32.totalorder %s30, 2
      %p163 = por %p161, %p162
      %p165 = scmp.ne.s32.totalorder %s148, %s164
      %p166 = scmp.eq.s32.totalorder %s30, 0
      %p167 = por %p165, %p166
      %s168 = ssub.s32 %s24, %s31
      %p169 = scmp.eq.s32.totalorder %s168, 0
      %s171 = sadd.s32 %s170, 1
      %s172 = scalar_select %p169, %s170, %s171
      %p175 = pneg %p169
      %p176 = scmp.eq.s32.totalorder %s24, 2
      %p177 = por %p175, %p176
      %p178 = scmp.ne.s32.totalorder %s170, %s173
      %p179 = scmp.eq.s32.totalorder %s24, 0
      %p180 = por %p178, %p179
      %p181 = scmp.ne.s32.totalorder %s170, %s173
      %p182 = scmp.eq.s32.totalorder %s29, 2
      %p183 = por %p181, %p182
      %p184 = scmp.ne.s32.totalorder %s173, %s174
      %p185 = scmp.eq.s32.totalorder %s29, 0
      %p186 = por %p184, %p185
      %p187 = scmp.ne.s32.totalorder %s173, %s174
      %p188 = scmp.eq.s32.totalorder %s30, 2
      %p189 = por %p187, %p188
      %p191 = scmp.ne.s32.totalorder %s174, %s190
      %p192 = scmp.eq.s32.totalorder %s30, 0
      %p193 = por %p191, %p192
      %s195 = sadd.s32 %s194, 1
      %p198 = scmp.eq.s32.totalorder %s24, 2
      %p199 = scmp.ne.s32.totalorder %s194, %s196
      %p200 = scmp.eq.s32.totalorder %s24, 0
      %p201 = por %p199, %p200
      %p202 = scmp.ne.s32.totalorder %s194, %s196
      %p203 = scmp.eq.s32.totalorder %s29, 2
      %p204 = por %p202, %p203
      %p205 = scmp.ne.s32.totalorder %s196, %s197
      %p206 = scmp.eq.s32.totalorder %s29, 0
      %p207 = por %p205, %p206
      %p208 = scmp.ne.s32.totalorder %s196, %s197
      %p209 = scmp.eq.s32.totalorder %s30, 2
      %p210 = por %p208, %p209
      %p212 = scmp.ne.s32.totalorder %s197, %s211
      %p213 = scmp.eq.s32.totalorder %s30, 0
      %p214 = por %p212, %p213
      %s216 = sadd.s32 %s215, 1
      %p219 = scmp.eq.s32.totalorder %s24, 2
      %p220 = scmp.ne.s32.totalorder %s215, %s217
      %p221 = scmp.eq.s32.totalorder %s24, 0
      %p222 = por %p220, %p221
      %p223 = scmp.ne.s32.totalorder %s215, %s217
      %p224 = scmp.eq.s32.totalorder %s29, 2
      %p225 = por %p223, %p224
      %p226 = scmp.ne.s32.totalorder %s217, %s218
      %p227 = scmp.eq.s32.totalorder %s29, 0
      %p228 = por %p226, %p227
      %p229 = scmp.ne.s32.totalorder %s217, %s218
      %p230 = scmp.eq.s32.totalorder %s30, 2
      %p231 = por %p229, %p230
      %p233 = scmp.ne.s32.totalorder %s218, %s232
      %p234 = scmp.eq.s32.totalorder %s30, 0
      %p235 = por %p233, %p234
      %s237 = sadd.s32 %s236, 1
      %p240 = scmp.eq.s32.totalorder %s24, 2
      %p241 = scmp.ne.s32.totalorder %s236, %s238
      %p242 = scmp.eq.s32.totalorder %s24, 0
      %p243 = por %p241, %p242
      %p244 = scmp.ne.s32.totalorder %s236, %s238
      %p245 = scmp.eq.s32.totalorder %s29, 2
      %p246 = por %p244, %p245
      %p247 = scmp.ne.s32.totalorder %s238, %s239
      %p248 = scmp.eq.s32.totalorder %s29, 0
      %p249 = por %p247, %p248
      %p250 = scmp.ne.s32.totalorder %s238, %s239
      %p251 = scmp.eq.s32.totalorder %s30, 2
      %p252 = por %p250, %p251
      %p254 = scmp.ne.s32.totalorder %s239, %s253
      %p255 = scmp.eq.s32.totalorder %s30, 0
      %p256 = por %p254, %p255
      %s258 = sadd.s32 %s257, 1
      %p261 = scmp.eq.s32.totalorder %s24, 2
      %p262 = scmp.ne.s32.totalorder %s257, %s259
      %p263 = scmp.eq.s32.totalorder %s24, 0
      %p264 = por %p262, %p263
      %p265 = scmp.ne.s32.totalorder %s257, %s259
      %p266 = scmp.eq.s32.totalorder %s29, 2
      %p267 = por %p265, %p266
      %p268 = scmp.ne.s32.totalorder %s259, %s260
      %p269 = scmp.eq.s32.totalorder %s29, 0
      %p270 = por %p268, %p269
      %p271 = scmp.ne.s32.totalorder %s259, %s260
      %p272 = scmp.eq.s32.totalorder %s30, 2
      %p273 = por %p271, %p272
      %p275 = scmp.ne.s32.totalorder %s260, %s274
      %p276 = scmp.eq.s32.totalorder %s30, 0
      %p277 = por %p275, %p276
      %p278 = scmp.le.s32.totalorder 1, %s24
      %p279 = scmp.lt.s32.totalorder %s24, 4
      %p280 = pnand %p278, %p279
      %p281 = pneg %p280
      // Predicated region
      $region9: #{spherical_cnn_forward.1} parent=5 // pred_check
        _
      $region10: #{spherical_cnn_forward.1} parent=5 // pred_check_branch
        %283 = sbr.rel (%p280) target = $region12
      $region11: #{spherical_cnn_forward.1} parent=5 // pred_region
        %s284 = ssub.s32 %s24, 1
        // Predicated region
        $region13: #{spherical_cnn_forward.1} parent=11 // pred_check
          %p285 = pneg %p45
        $region14: #{spherical_cnn_forward.1} parent=11 // pred_check_branch
          %287 = sbr.rel (%p285) target = $region16
        $region15: #{spherical_cnn_forward.1} parent=11 // pred_region
          _
        $region16: #{spherical_cnn_forward.1} parent=11 // pred_fallthru
          _
        // Predicated region
        $region17: #{spherical_cnn_forward.1} parent=11 // pred_check
          %p288 = pneg %p66
        $region18: #{spherical_cnn_forward.1} parent=11 // pred_check_branch
          %290 = sbr.rel (%p288) target = $region20
        $region19: #{spherical_cnn_forward.1} parent=11 // pred_region
          %s292 = ssub.s32 16384, 16384
          %293 = vsyncadd [#allocation4], %s292
          %s294 = sshll.u32 [#allocation3], 4
          %s295 = int_to_ptr.vmem [resolvable:$true] %s294
          %300 = dma.hbm_to_vmem [thread:$0]  %s1, 16384, %s295, [#allocation4], 1024, 1024, 64
        $region20: #{spherical_cnn_forward.1} parent=11 // pred_fallthru
          _
        // Predicated region
        $region21: #{spherical_cnn_forward.1} parent=11 // pred_check
          %p301 = pneg %p87
        $region22: #{spherical_cnn_forward.1} parent=11 // pred_check_branch
          %303 = sbr.rel (%p301) target = $region24
        $region23: #{spherical_cnn_forward.1} parent=11 // pred_region
          %s305 = ssub.s32 4096, 4096
          %306 = vsyncadd [#allocation6], %s305
          %s307 = sshll.u32 [#allocation5], 4
          %s308 = int_to_ptr.vmem [resolvable:$true] %s307
          %313 = dma.hbm_to_vmem [thread:$0]  %s2, 4096, %s308, [#allocation6], 256, 256, 16
        $region24: #{spherical_cnn_forward.1} parent=11 // pred_fallthru
          _
        // Predicated region
        $region25: #{spherical_cnn_forward.1} parent=11 // pred_check
          %p314 = pneg %p108
        $region26: #{spherical_cnn_forward.1} parent=11 // pred_check_branch
          %316 = sbr.rel (%p314) target = $region28
        $region27: #{spherical_cnn_forward.1} parent=11 // pred_region
          %s318 = ssub.s32 4096, 4096
          %319 = vsyncadd [#allocation6], %s318
          %s320 = sshll.u32 [#allocation7], 4
          %s321 = int_to_ptr.vmem [resolvable:$true] %s320
          %326 = dma.hbm_to_vmem [thread:$0]  %s3, 4096, %s321, [#allocation6], 128, 128, 8
        $region28: #{spherical_cnn_forward.1} parent=11 // pred_fallthru
          _
        // Predicated region
        $region29: #{spherical_cnn_forward.1} parent=11 // pred_check
          %p327 = pneg %p207
        $region30: #{spherical_cnn_forward.1} parent=11 // pred_check_branch
          %329 = sbr.rel (%p327) target = $region32
        $region31: #{spherical_cnn_forward.1} parent=11 // pred_region
          %s331 = ssub.s32 16384, 16384
          %332 = vsyncadd [#allocation12], %s331
          %s333 = sshll.u32 [#allocation13], 4
          %s334 = int_to_ptr.vmem [resolvable:$true] %s333
          %339 = dma.hbm_to_vmem [thread:$0]  %s7, 16384, %s334, [#allocation12], 64, 64, 4
        $region32: #{spherical_cnn_forward.1} parent=11 // pred_fallthru
          _
        // Predicated region
        $region33: #{spherical_cnn_forward.1} parent=11 // pred_check
          %p340 = pneg %p228
        $region34: #{spherical_cnn_forward.1} parent=11 // pred_check_branch
          %342 = sbr.rel (%p340) target = $region36
        $region35: #{spherical_cnn_forward.1} parent=11 // pred_region
          _
        $region36: #{spherical_cnn_forward.1} parent=11 // pred_fallthru
          _
        // Predicated region
        $region37: #{spherical_cnn_forward.1} parent=11 // pred_check
          %p343 = pneg %p249
        $region38: #{spherical_cnn_forward.1} parent=11 // pred_check_branch
          %345 = sbr.rel (%p343) target = $region40
        $region39: #{spherical_cnn_forward.1} parent=11 // pred_region
          _
        $region40: #{spherical_cnn_forward.1} parent=11 // pred_fallthru
          _
      $region12: #{spherical_cnn_forward.1} parent=5 // pred_fallthru
        _
      %p346 = scmp.lt.s32.totalorder %s24, 3
      // Predicated region
      $region41: #{spherical_cnn_forward.1} parent=5 // pred_check
        %p347 = pneg %p346
      $region42: #{spherical_cnn_forward.1} parent=5 // pred_check_branch
        %349 = sbr.rel (%p347) target = $region44
      $region43: #{spherical_cnn_forward.1} parent=5 // pred_region
        // Predicated region
        $region45: #{spherical_cnn_forward.1} parent=43 // pred_check
          %p350 = pneg %p128
        $region46: #{spherical_cnn_forward.1} parent=43 // pred_check_branch
          %352 = sbr.rel (%p350) target = $region48
        $region47: #{spherical_cnn_forward.1} parent=43 // pred_region
          %s353 = sand.u32 %s24, 1
          %s354 = scalar_lea.sflag [#allocation9], %s353
          %s355 = sand.u32 %s118, 1
          %s356 = smul.addr %s355, 256
          %s357 = scalar_lea.vmem [#allocation8], %s356
          %s359 = ssub.s32 4096, 4096
          %360 = vsyncadd %s354, %s359
          %s361 = smul.addr %s24, 64
          %s362 = smul.addr %s361, 64
          %s363 = scalar_lea.hbm %s4, %s362
          %s364 = sshll.u32 %s357, 4
          %s365 = int_to_ptr.vmem [resolvable:$true] %s364
          %370 = dma.hbm_to_vmem [thread:$0]  %s363, 4096, %s365, %s354, 128, 128, 8
        $region48: #{spherical_cnn_forward.1} parent=43 // pred_fallthru
          _
        // Predicated region
        $region49: #{spherical_cnn_forward.1} parent=43 // pred_check
          %p371 = pneg %p154
        $region50: #{spherical_cnn_forward.1} parent=43 // pred_check_branch
          %373 = sbr.rel (%p371) target = $region52
        $region51: #{spherical_cnn_forward.1} parent=43 // pred_region
          %s374 = sand.u32 %s24, 1
          %s375 = scalar_lea.sflag [#allocation9], %s374
          %s376 = sand.u32 %s144, 1
          %s377 = smul.addr %s376, 256
          %s378 = scalar_lea.vmem [#allocation10], %s377
          %s380 = ssub.s32 4096, 4096
          %381 = vsyncadd %s375, %s380
          %s382 = smul.addr %s24, 64
          %s383 = smul.addr %s382, 64
          %s384 = scalar_lea.hbm %s5, %s383
          %s385 = sshll.u32 %s378, 4
          %s386 = int_to_ptr.vmem [resolvable:$true] %s385
          %391 = dma.hbm_to_vmem [thread:$0]  %s384, 4096, %s386, %s375, 128, 128, 8
        $region52: #{spherical_cnn_forward.1} parent=43 // pred_fallthru
          _
        // Predicated region
        $region53: #{spherical_cnn_forward.1} parent=43 // pred_check
          %p392 = pneg %p180
        $region54: #{spherical_cnn_forward.1} parent=43 // pred_check_branch
          %394 = sbr.rel (%p392) target = $region56
        $region55: #{spherical_cnn_forward.1} parent=43 // pred_region
          %s395 = sand.u32 %s24, 1
          %s396 = scalar_lea.sflag [#allocation12], %s395
          %s397 = sand.u32 %s170, 1
          %s398 = smul.addr %s397, 16
          %s399 = scalar_lea.vmem [#allocation11], %s398
          %s401 = ssub.s32 256, 256
          %402 = vsyncadd %s396, %s401
          %s403 = smul.addr %s24, 2
          %s404 = smul.addr %s403, 128
          %s405 = scalar_lea.hbm %s6, %s404
          %s406 = sshll.u32 %s399, 4
          %s407 = int_to_ptr.vmem [resolvable:$true] %s406
          %412 = dma.hbm_to_vmem [thread:$0]  %s405, 256, %s407, %s396, 128, 128, 8
        $region56: #{spherical_cnn_forward.1} parent=43 // pred_fallthru
          _
      $region44: #{spherical_cnn_forward.1} parent=5 // pred_fallthru
        _
      %p413 = scmp.le.s32.totalorder 1, %s24
      %p414 = scmp.lt.s32.totalorder %s24, 4
      %p415 = pnand %p413, %p414
      %p416 = pneg %p415
      // Predicated region
      $region57: #{spherical_cnn_forward.1} parent=5 // pred_check
        _
      $region58: #{spherical_cnn_forward.1} parent=5 // pred_check_branch
        %418 = sbr.rel (%p415) target = $region60
      $region59: #{spherical_cnn_forward.1} parent=5 // pred_region
        %s419 = ssub.s32 %s24, 1
        // Predicated region
        $region61: #{spherical_cnn_forward.1} parent=59 // pred_check
          %p420 = pneg %p66
        $region62: #{spherical_cnn_forward.1} parent=59 // pred_check_branch
          %422 = sbr.rel (%p420) target = $region64
        $region63: #{spherical_cnn_forward.1} parent=59 // pred_region
          %423 = dma.done [#allocation4], 16384
        $region64: #{spherical_cnn_forward.1} parent=59 // pred_fallthru
          _
        // Predicated region
        $region65: #{spherical_cnn_forward.1} parent=59 // pred_check
          %p424 = pneg %p87
        $region66: #{spherical_cnn_forward.1} parent=59 // pred_check_branch
          %426 = sbr.rel (%p424) target = $region68
        $region67: #{spherical_cnn_forward.1} parent=59 // pred_region
          %427 = dma.done [#allocation6], 4096
        $region68: #{spherical_cnn_forward.1} parent=59 // pred_fallthru
          _
        // Predicated region
        $region69: #{spherical_cnn_forward.1} parent=59 // pred_check
          %p428 = pneg %p108
        $region70: #{spherical_cnn_forward.1} parent=59 // pred_check_branch
          %430 = sbr.rel (%p428) target = $region72
        $region71: #{spherical_cnn_forward.1} parent=59 // pred_region
          %431 = dma.done [#allocation6], 4096
        $region72: #{spherical_cnn_forward.1} parent=59 // pred_fallthru
          _
        %s432 = sand.u32 %s29, 1
        %s433 = scalar_lea.sflag [#allocation9], %s432
        %s434 = sand.u32 %s121, 1
        %s435 = smul.addr %s434, 256
        %s436 = scalar_lea.vmem [#allocation8], %s435
        // Predicated region
        $region73: #{spherical_cnn_forward.1} parent=59 // pred_check
          %p437 = pneg %p134
        $region74: #{spherical_cnn_forward.1} parent=59 // pred_check_branch
          %439 = sbr.rel (%p437) target = $region76
        $region75: #{spherical_cnn_forward.1} parent=59 // pred_region
          %440 = dma.done %s433, 4096
        $region76: #{spherical_cnn_forward.1} parent=59 // pred_fallthru
          _
        %s441 = sand.u32 %s29, 1
        %s442 = scalar_lea.sflag [#allocation9], %s441
        %s443 = sand.u32 %s147, 1
        %s444 = smul.addr %s443, 256
        %s445 = scalar_lea.vmem [#allocation10], %s444
        // Predicated region
        $region77: #{spherical_cnn_forward.1} parent=59 // pred_check
          %p446 = pneg %p160
        $region78: #{spherical_cnn_forward.1} parent=59 // pred_check_branch
          %448 = sbr.rel (%p446) target = $region80
        $region79: #{spherical_cnn_forward.1} parent=59 // pred_region
          %449 = dma.done %s442, 4096
        $region80: #{spherical_cnn_forward.1} parent=59 // pred_fallthru
          _
        %s450 = sand.u32 %s29, 1
        %s451 = scalar_lea.sflag [#allocation12], %s450
        %s452 = sand.u32 %s173, 1
        %s453 = smul.addr %s452, 16
        %s454 = scalar_lea.vmem [#allocation11], %s453
        // Predicated region
        $region81: #{spherical_cnn_forward.1} parent=59 // pred_check
          %p455 = pneg %p186
        $region82: #{spherical_cnn_forward.1} parent=59 // pred_check_branch
          %457 = sbr.rel (%p455) target = $region84
        $region83: #{spherical_cnn_forward.1} parent=59 // pred_region
          %458 = dma.done %s451, 256
        $region84: #{spherical_cnn_forward.1} parent=59 // pred_fallthru
          _
        // Predicated region
        $region85: #{spherical_cnn_forward.1} parent=59 // pred_check
          %p459 = pneg %p207
        $region86: #{spherical_cnn_forward.1} parent=59 // pred_check_branch
          %461 = sbr.rel (%p459) target = $region88
        $region87: #{spherical_cnn_forward.1} parent=59 // pred_region
          %462 = dma.done [#allocation12], 16384
        $region88: #{spherical_cnn_forward.1} parent=59 // pred_fallthru
          _
        %p463 = pneg %p45
        %p464 = pneg %p42
        %p465 = pneg %p66
        %p466 = pneg %p63
        %p467 = pneg %p87
        %p468 = pneg %p84
        %p469 = pneg %p108
        %p470 = pneg %p105
        %s471 = sand.u32 %s29, 1
        %s472 = scalar_lea.sflag [#allocation9], %s471
        %s473 = sand.u32 %s121, 1
        %s474 = smul.addr %s473, 256
        %s475 = scalar_lea.vmem [#allocation8], %s474
        %p476 = pneg %p134
        %p477 = pneg %p131
        %s478 = sand.u32 %s29, 1
        %s479 = scalar_lea.sflag [#allocation9], %s478
        %s480 = sand.u32 %s147, 1
        %s481 = smul.addr %s480, 256
        %s482 = scalar_lea.vmem [#allocation10], %s481
        %p483 = pneg %p160
        %p484 = pneg %p157
        %s485 = sand.u32 %s29, 1
        %s486 = scalar_lea.sflag [#allocation12], %s485
        %s487 = sand.u32 %s173, 1
        %s488 = smul.addr %s487, 16
        %s489 = scalar_lea.vmem [#allocation11], %s488
        %p490 = pneg %p186
        %p491 = pneg %p183
        %p492 = pneg %p207
        %p493 = pneg %p204
        %p494 = pneg %p228
        %p495 = pneg %p225
        %p496 = pneg %p249
        %p497 = pneg %p246
        %p498 = pneg %p270
        %p499 = pneg %p267
        %p501 = scmp.eq.s32.totalorder %s29, 0
        // Predicated region
        $region89: #{spherical_cnn_forward.1} parent=59 // pred_check
          %p502 = pneg %p501
        $region90: #{spherical_cnn_forward.1} parent=59 // pred_check_branch
          %504 = sbr.rel (%p502) target = $region92
        $region91: #{spherical_cnn_forward.1} parent=59 // pred_region
          %v505 = vld [vmem:[%s0] sm:$0x3]
          %v506 = vpack.c.bf16 %v505, %v505
          %v507 = vld [vmem:[#allocation3] sm:$0xff]
          %v508 = vld [vmem:[#allocation3 + $0x8] sm:$0xff]
          %v509 = vld [vmem:[#allocation3 + $0x10] sm:$0xff]
          %v510 = vld [vmem:[#allocation3 + $0x18] sm:$0xff]
          %v511 = vld [vmem:[#allocation3 + $0x20] sm:$0xff]
          %v512 = vld [vmem:[#allocation3 + $0x28] sm:$0xff]
          %v513 = vld [vmem:[#allocation3 + $0x30] sm:$0xff]
          %v514 = vld [vmem:[#allocation3 + $0x38] sm:$0xff]
          %v515 = vld [vmem:[#allocation3 + $0x40] sm:$0xff]
          %v516 = vld [vmem:[#allocation3 + $0x48] sm:$0xff]
          %v517 = vld [vmem:[#allocation3 + $0x50] sm:$0xff]
          %v518 = vld [vmem:[#allocation3 + $0x58] sm:$0xff]
          %v519 = vld [vmem:[#allocation3 + $0x60] sm:$0xff]
          %v520 = vld [vmem:[#allocation3 + $0x68] sm:$0xff]
          %v521 = vld [vmem:[#allocation3 + $0x70] sm:$0xff]
          %v522 = vld [vmem:[#allocation3 + $0x78] sm:$0xff]
          %v523 = vld [vmem:[#allocation3 + $0x80] sm:$0xff]
          %v524 = vld [vmem:[#allocation3 + $0x88] sm:$0xff]
          %v525 = vld [vmem:[#allocation3 + $0x90] sm:$0xff]
          %v526 = vld [vmem:[#allocation3 + $0x98] sm:$0xff]
          %v527 = vld [vmem:[#allocation3 + $0xa0] sm:$0xff]
          %v528 = vld [vmem:[#allocation3 + $0xa8] sm:$0xff]
          %v529 = vld [vmem:[#allocation3 + $0xb0] sm:$0xff]
          %v530 = vld [vmem:[#allocation3 + $0xb8] sm:$0xff]
          %v531 = vld [vmem:[#allocation3 + $0xc0] sm:$0xff]
          %v532 = vld [vmem:[#allocation3 + $0xc8] sm:$0xff]
          %v533 = vld [vmem:[#allocation3 + $0xd0] sm:$0xff]
          %v534 = vld [vmem:[#allocation3 + $0xd8] sm:$0xff]
          %v535 = vld [vmem:[#allocation3 + $0xe0] sm:$0xff]
          %v536 = vld [vmem:[#allocation3 + $0xe8] sm:$0xff]
          %v537 = vld [vmem:[#allocation3 + $0xf0] sm:$0xff]
          %v538 = vld [vmem:[#allocation3 + $0xf8] sm:$0xff]
          %v539 = vld [vmem:[#allocation3 + $0x100] sm:$0xff]
          %v540 = vld [vmem:[#allocation3 + $0x108] sm:$0xff]
          %v541 = vld [vmem:[#allocation3 + $0x110] sm:$0xff]
          %v542 = vld [vmem:[#allocation3 + $0x118] sm:$0xff]
          %v543 = vld [vmem:[#allocation3 + $0x120] sm:$0xff]
          %v544 = vld [vmem:[#allocation3 + $0x128] sm:$0xff]
          %v545 = vld [vmem:[#allocation3 + $0x130] sm:$0xff]
          %v546 = vld [vmem:[#allocation3 + $0x138] sm:$0xff]
          %v547 = vld [vmem:[#allocation3 + $0x140] sm:$0xff]
          %v548 = vld [vmem:[#allocation3 + $0x148] sm:$0xff]
          %v549 = vld [vmem:[#allocation3 + $0x150] sm:$0xff]
          %v550 = vld [vmem:[#allocation3 + $0x158] sm:$0xff]
          %v551 = vld [vmem:[#allocation3 + $0x160] sm:$0xff]
          %v552 = vld [vmem:[#allocation3 + $0x168] sm:$0xff]
          %v553 = vld [vmem:[#allocation3 + $0x170] sm:$0xff]
          %v554 = vld [vmem:[#allocation3 + $0x178] sm:$0xff]
          %v555 = vld [vmem:[#allocation3 + $0x180] sm:$0xff]
          %v556 = vld [vmem:[#allocation3 + $0x188] sm:$0xff]
          %v557 = vld [vmem:[#allocation3 + $0x190] sm:$0xff]
          %v558 = vld [vmem:[#allocation3 + $0x198] sm:$0xff]
          %v559 = vld [vmem:[#allocation3 + $0x1a0] sm:$0xff]
          %v560 = vld [vmem:[#allocation3 + $0x1a8] sm:$0xff]
          %v561 = vld [vmem:[#allocation3 + $0x1b0] sm:$0xff]
          %v562 = vld [vmem:[#allocation3 + $0x1b8] sm:$0xff]
          %v563 = vld [vmem:[#allocation3 + $0x1c0] sm:$0xff]
          %v564 = vld [vmem:[#allocation3 + $0x1c8] sm:$0xff]
          %v565 = vld [vmem:[#allocation3 + $0x1d0] sm:$0xff]
          %v566 = vld [vmem:[#allocation3 + $0x1d8] sm:$0xff]
          %v567 = vld [vmem:[#allocation3 + $0x1e0] sm:$0xff]
          %v568 = vld [vmem:[#allocation3 + $0x1e8] sm:$0xff]
          %v569 = vld [vmem:[#allocation3 + $0x1f0] sm:$0xff]
          %v570 = vld [vmem:[#allocation3 + $0x1f8] sm:$0xff]
          %v571 = vld [vmem:[#allocation3 + $0x200] sm:$0xff]
          %v572 = vld [vmem:[#allocation3 + $0x208] sm:$0xff]
          %v573 = vld [vmem:[#allocation3 + $0x210] sm:$0xff]
          %v574 = vld [vmem:[#allocation3 + $0x218] sm:$0xff]
          %v575 = vld [vmem:[#allocation3 + $0x220] sm:$0xff]
          %v576 = vld [vmem:[#allocation3 + $0x228] sm:$0xff]
          %v577 = vld [vmem:[#allocation3 + $0x230] sm:$0xff]
          %v578 = vld [vmem:[#allocation3 + $0x238] sm:$0xff]
          %v579 = vld [vmem:[#allocation3 + $0x240] sm:$0xff]
          %v580 = vld [vmem:[#allocation3 + $0x248] sm:$0xff]
          %v581 = vld [vmem:[#allocation3 + $0x250] sm:$0xff]
          %v582 = vld [vmem:[#allocation3 + $0x258] sm:$0xff]
          %v583 = vld [vmem:[#allocation3 + $0x260] sm:$0xff]
          %v584 = vld [vmem:[#allocation3 + $0x268] sm:$0xff]
          %v585 = vld [vmem:[#allocation3 + $0x270] sm:$0xff]
          %v586 = vld [vmem:[#allocation3 + $0x278] sm:$0xff]
          %v587 = vld [vmem:[#allocation3 + $0x280] sm:$0xff]
          %v588 = vld [vmem:[#allocation3 + $0x288] sm:$0xff]
          %v589 = vld [vmem:[#allocation3 + $0x290] sm:$0xff]
          %v590 = vld [vmem:[#allocation3 + $0x298] sm:$0xff]
          %v591 = vld [vmem:[#allocation3 + $0x2a0] sm:$0xff]
          %v592 = vld [vmem:[#allocation3 + $0x2a8] sm:$0xff]
          %v593 = vld [vmem:[#allocation3 + $0x2b0] sm:$0xff]
          %v594 = vld [vmem:[#allocation3 + $0x2b8] sm:$0xff]
          %v595 = vld [vmem:[#allocation3 + $0x2c0] sm:$0xff]
          %v596 = vld [vmem:[#allocation3 + $0x2c8] sm:$0xff]
          %v597 = vld [vmem:[#allocation3 + $0x2d0] sm:$0xff]
          %v598 = vld [vmem:[#allocation3 + $0x2d8] sm:$0xff]
          %v599 = vld [vmem:[#allocation3 + $0x2e0] sm:$0xff]
          %v600 = vld [vmem:[#allocation3 + $0x2e8] sm:$0xff]
          %v601 = vld [vmem:[#allocation3 + $0x2f0] sm:$0xff]
          %v602 = vld [vmem:[#allocation3 + $0x2f8] sm:$0xff]
          %v603 = vld [vmem:[#allocation3 + $0x300] sm:$0xff]
          %v604 = vld [vmem:[#allocation3 + $0x308] sm:$0xff]
          %v605 = vld [vmem:[#allocation3 + $0x310] sm:$0xff]
          %v606 = vld [vmem:[#allocation3 + $0x318] sm:$0xff]
          %v607 = vld [vmem:[#allocation3 + $0x320] sm:$0xff]
          %v608 = vld [vmem:[#allocation3 + $0x328] sm:$0xff]
          %v609 = vld [vmem:[#allocation3 + $0x330] sm:$0xff]
          %v610 = vld [vmem:[#allocation3 + $0x338] sm:$0xff]
          %v611 = vld [vmem:[#allocation3 + $0x340] sm:$0xff]
          %v612 = vld [vmem:[#allocation3 + $0x348] sm:$0xff]
          %v613 = vld [vmem:[#allocation3 + $0x350] sm:$0xff]
          %v614 = vld [vmem:[#allocation3 + $0x358] sm:$0xff]
          %v615 = vld [vmem:[#allocation3 + $0x360] sm:$0xff]
          %v616 = vld [vmem:[#allocation3 + $0x368] sm:$0xff]
          %v617 = vld [vmem:[#allocation3 + $0x370] sm:$0xff]
          %v618 = vld [vmem:[#allocation3 + $0x378] sm:$0xff]
          %v619 = vld [vmem:[#allocation3 + $0x380] sm:$0xff]
          %v620 = vld [vmem:[#allocation3 + $0x388] sm:$0xff]
          %v621 = vld [vmem:[#allocation3 + $0x390] sm:$0xff]
          %v622 = vld [vmem:[#allocation3 + $0x398] sm:$0xff]
          %v623 = vld [vmem:[#allocation3 + $0x3a0] sm:$0xff]
          %v624 = vld [vmem:[#allocation3 + $0x3a8] sm:$0xff]
          %v625 = vld [vmem:[#allocation3 + $0x3b0] sm:$0xff]
          %v626 = vld [vmem:[#allocation3 + $0x3b8] sm:$0xff]
          %v627 = vld [vmem:[#allocation3 + $0x3c0] sm:$0xff]
          %v628 = vld [vmem:[#allocation3 + $0x3c8] sm:$0xff]
          %v629 = vld [vmem:[#allocation3 + $0x3d0] sm:$0xff]
          %v630 = vld [vmem:[#allocation3 + $0x3d8] sm:$0xff]
          %v631 = vld [vmem:[#allocation3 + $0x3e0] sm:$0xff]
          %v632 = vld [vmem:[#allocation3 + $0x3e8] sm:$0xff]
          %v633 = vld [vmem:[#allocation3 + $0x3f0] sm:$0xff]
          %v634 = vld [vmem:[#allocation3 + $0x3f8] sm:$0xff]
          %v635 = vld [vmem:[%s8] sm:$0xff]
          %v636 = vld [vmem:[%s8 + $0x8] sm:$0xff]
          %v639 = vlaneseq
          %v640 = vshrl.u32 %v639, 7
          %v641 = vsub.s32 0, %v640
          %v642 = vrot.slane %v635, %v641
          %v643 = vlaneseq
          %v644 = vshrl.u32 %v643, 7
          %v645 = vsub.s32 1, %v644
          %v646 = vrot.slane %v635, %v645
          %v647 = vlaneseq
          %v648 = vshrl.u32 %v647, 7
          %v649 = vsub.s32 2, %v648
          %v650 = vrot.slane %v635, %v649
          %v651 = vlaneseq
          %v652 = vshrl.u32 %v651, 7
          %v653 = vsub.s32 3, %v652
          %v654 = vrot.slane %v635, %v653
          %v655 = vlaneseq
          %v656 = vshrl.u32 %v655, 7
          %v657 = vsub.s32 4, %v656
          %v658 = vrot.slane %v635, %v657
          %v659 = vlaneseq
          %v660 = vshrl.u32 %v659, 7
          %v661 = vsub.s32 5, %v660
          %v662 = vrot.slane %v635, %v661
          %v663 = vlaneseq
          %v664 = vshrl.u32 %v663, 7
          %v665 = vsub.s32 6, %v664
          %v666 = vrot.slane %v635, %v665
          %v667 = vlaneseq
          %v668 = vshrl.u32 %v667, 7
          %v669 = vsub.s32 7, %v668
          %v670 = vrot.slane %v635, %v669
          %v671 = vlaneseq
          %v672 = vshrl.u32 %v671, 7
          %v673 = vsub.s32 0, %v672
          %v674 = vrot.slane %v636, %v673
          %v675 = vlaneseq
          %v676 = vshrl.u32 %v675, 7
          %v677 = vsub.s32 1, %v676
          %v678 = vrot.slane %v636, %v677
          %v679 = vlaneseq
          %v680 = vshrl.u32 %v679, 7
          %v681 = vsub.s32 2, %v680
          %v682 = vrot.slane %v636, %v681
          %v683 = vlaneseq
          %v684 = vshrl.u32 %v683, 7
          %v685 = vsub.s32 3, %v684
          %v686 = vrot.slane %v636, %v685
          %v687 = vlaneseq
          %v688 = vshrl.u32 %v687, 7
          %v689 = vsub.s32 4, %v688
          %v690 = vrot.slane %v636, %v689
          %v691 = vlaneseq
          %v692 = vshrl.u32 %v691, 7
          %v693 = vsub.s32 5, %v692
          %v694 = vrot.slane %v636, %v693
          %v695 = vlaneseq
          %v696 = vshrl.u32 %v695, 7
          %v697 = vsub.s32 6, %v696
          %v698 = vrot.slane %v636, %v697
          %v699 = vlaneseq
          %v700 = vshrl.u32 %v699, 7
          %v701 = vsub.s32 7, %v700
          %v702 = vrot.slane %v636, %v701
          %v847 = vunpack.c.l.b16 %v507
          %v848 = vunpack.c.h.b16 %v507
          %v849 = vunpack.c.l.b16 %v508
          %v850 = vunpack.c.h.b16 %v508
          %v851 = vunpack.c.l.b16 %v509
          %v852 = vunpack.c.h.b16 %v509
          %v853 = vunpack.c.l.b16 %v510
          %v854 = vunpack.c.h.b16 %v510
          %v855 = vunpack.c.l.b16 %v511
          %v856 = vunpack.c.h.b16 %v511
          %v857 = vunpack.c.l.b16 %v512
          %v858 = vunpack.c.h.b16 %v512
          %v859 = vunpack.c.l.b16 %v513
          %v860 = vunpack.c.h.b16 %v513
          %v861 = vunpack.c.l.b16 %v514
          %v862 = vunpack.c.h.b16 %v514
          %v863 = vunpack.c.l.b16 %v515
          %v864 = vunpack.c.h.b16 %v515
          %v865 = vunpack.c.l.b16 %v516
          %v866 = vunpack.c.h.b16 %v516
          %v867 = vunpack.c.l.b16 %v517
          %v868 = vunpack.c.h.b16 %v517
          %v869 = vunpack.c.l.b16 %v518
          %v870 = vunpack.c.h.b16 %v518
          %v871 = vunpack.c.l.b16 %v519
          %v872 = vunpack.c.h.b16 %v519
          %v873 = vunpack.c.l.b16 %v520
          %v874 = vunpack.c.h.b16 %v520
          %v875 = vunpack.c.l.b16 %v521
          %v876 = vunpack.c.h.b16 %v521
          %v877 = vunpack.c.l.b16 %v522
          %v878 = vunpack.c.h.b16 %v522
          %v879 = vunpack.c.l.b16 %v523
          %v880 = vunpack.c.h.b16 %v523
          %v881 = vunpack.c.l.b16 %v524
          %v882 = vunpack.c.h.b16 %v524
          %v883 = vunpack.c.l.b16 %v525
          %v884 = vunpack.c.h.b16 %v525
          %v885 = vunpack.c.l.b16 %v526
          %v886 = vunpack.c.h.b16 %v526
          %v887 = vunpack.c.l.b16 %v527
          %v888 = vunpack.c.h.b16 %v527
          %v889 = vunpack.c.l.b16 %v528
          %v890 = vunpack.c.h.b16 %v528
          %v891 = vunpack.c.l.b16 %v529
          %v892 = vunpack.c.h.b16 %v529
          %v893 = vunpack.c.l.b16 %v530
          %v894 = vunpack.c.h.b16 %v530
          %v895 = vunpack.c.l.b16 %v531
          %v896 = vunpack.c.h.b16 %v531
          %v897 = vunpack.c.l.b16 %v532
          %v898 = vunpack.c.h.b16 %v532
          %v899 = vunpack.c.l.b16 %v533
          %v900 = vunpack.c.h.b16 %v533
          %v901 = vunpack.c.l.b16 %v534
          %v902 = vunpack.c.h.b16 %v534
          %v903 = vunpack.c.l.b16 %v535
          %v904 = vunpack.c.h.b16 %v535
          %v905 = vunpack.c.l.b16 %v536
          %v906 = vunpack.c.h.b16 %v536
          %v907 = vunpack.c.l.b16 %v537
          %v908 = vunpack.c.h.b16 %v537
          %v909 = vunpack.c.l.b16 %v538
          %v910 = vunpack.c.h.b16 %v538
          %v911 = vunpack.c.l.b16 %v539
          %v912 = vunpack.c.h.b16 %v539
          %v913 = vunpack.c.l.b16 %v540
          %v914 = vunpack.c.h.b16 %v540
          %v915 = vunpack.c.l.b16 %v541
          %v916 = vunpack.c.h.b16 %v541
          %v917 = vunpack.c.l.b16 %v542
          %v918 = vunpack.c.h.b16 %v542
          %v919 = vunpack.c.l.b16 %v543
          %v920 = vunpack.c.h.b16 %v543
          %v921 = vunpack.c.l.b16 %v544
          %v922 = vunpack.c.h.b16 %v544
          %v923 = vunpack.c.l.b16 %v545
          %v924 = vunpack.c.h.b16 %v545
          %v925 = vunpack.c.l.b16 %v546
          %v926 = vunpack.c.h.b16 %v546
          %v927 = vunpack.c.l.b16 %v547
          %v928 = vunpack.c.h.b16 %v547
          %v929 = vunpack.c.l.b16 %v548
          %v930 = vunpack.c.h.b16 %v548
          %v931 = vunpack.c.l.b16 %v549
          %v932 = vunpack.c.h.b16 %v549
          %v933 = vunpack.c.l.b16 %v550
          %v934 = vunpack.c.h.b16 %v550
          %v935 = vunpack.c.l.b16 %v551
          %v936 = vunpack.c.h.b16 %v551
          %v937 = vunpack.c.l.b16 %v552
          %v938 = vunpack.c.h.b16 %v552
          %v939 = vunpack.c.l.b16 %v553
          %v940 = vunpack.c.h.b16 %v553
          %v941 = vunpack.c.l.b16 %v554
          %v942 = vunpack.c.h.b16 %v554
          %v943 = vunpack.c.l.b16 %v555
          %v944 = vunpack.c.h.b16 %v555
          %v945 = vunpack.c.l.b16 %v556
          %v946 = vunpack.c.h.b16 %v556
          %v947 = vunpack.c.l.b16 %v557
          %v948 = vunpack.c.h.b16 %v557
          %v949 = vunpack.c.l.b16 %v558
          %v950 = vunpack.c.h.b16 %v558
          %v951 = vunpack.c.l.b16 %v559
          %v952 = vunpack.c.h.b16 %v559
          %v953 = vunpack.c.l.b16 %v560
          %v954 = vunpack.c.h.b16 %v560
          %v955 = vunpack.c.l.b16 %v561
          %v956 = vunpack.c.h.b16 %v561
          %v957 = vunpack.c.l.b16 %v562
          %v958 = vunpack.c.h.b16 %v562
          %v959 = vunpack.c.l.b16 %v563
          %v960 = vunpack.c.h.b16 %v563
          %v961 = vunpack.c.l.b16 %v564
          %v962 = vunpack.c.h.b16 %v564
          %v963 = vunpack.c.l.b16 %v565
          %v964 = vunpack.c.h.b16 %v565
          %v965 = vunpack.c.l.b16 %v566
          %v966 = vunpack.c.h.b16 %v566
          %v967 = vunpack.c.l.b16 %v567
          %v968 = vunpack.c.h.b16 %v567
          %v969 = vunpack.c.l.b16 %v568
          %v970 = vunpack.c.h.b16 %v568
          %v971 = vunpack.c.l.b16 %v569
          %v972 = vunpack.c.h.b16 %v569
          %v973 = vunpack.c.l.b16 %v570
          %v974 = vunpack.c.h.b16 %v570
          %v975 = vunpack.c.l.b16 %v571
          %v976 = vunpack.c.h.b16 %v571
          %v977 = vunpack.c.l.b16 %v572
          %v978 = vunpack.c.h.b16 %v572
          %v979 = vunpack.c.l.b16 %v573
          %v980 = vunpack.c.h.b16 %v573
          %v981 = vunpack.c.l.b16 %v574
          %v982 = vunpack.c.h.b16 %v574
          %v983 = vunpack.c.l.b16 %v575
          %v984 = vunpack.c.h.b16 %v575
          %v985 = vunpack.c.l.b16 %v576
          %v986 = vunpack.c.h.b16 %v576
          %v987 = vunpack.c.l.b16 %v577
          %v988 = vunpack.c.h.b16 %v577
          %v989 = vunpack.c.l.b16 %v578
          %v990 = vunpack.c.h.b16 %v578
          %v991 = vunpack.c.l.b16 %v579
          %v992 = vunpack.c.h.b16 %v579
          %v993 = vunpack.c.l.b16 %v580
          %v994 = vunpack.c.h.b16 %v580
          %v995 = vunpack.c.l.b16 %v581
          %v996 = vunpack.c.h.b16 %v581
          %v997 = vunpack.c.l.b16 %v582
          %v998 = vunpack.c.h.b16 %v582
          %v999 = vunpack.c.l.b16 %v583
          %v1000 = vunpack.c.h.b16 %v583
          %v1001 = vunpack.c.l.b16 %v584
          %v1002 = vunpack.c.h.b16 %v584
          %v1003 = vunpack.c.l.b16 %v585
          %v1004 = vunpack.c.h.b16 %v585
          %v1005 = vunpack.c.l.b16 %v586
          %v1006 = vunpack.c.h.b16 %v586
          %v1007 = vunpack.c.l.b16 %v587
          %v1008 = vunpack.c.h.b16 %v587
          %v1009 = vunpack.c.l.b16 %v588
          %v1010 = vunpack.c.h.b16 %v588
          %v1011 = vunpack.c.l.b16 %v589
          %v1012 = vunpack.c.h.b16 %v589
          %v1013 = vunpack.c.l.b16 %v590
          %v1014 = vunpack.c.h.b16 %v590
          %v1015 = vunpack.c.l.b16 %v591
          %v1016 = vunpack.c.h.b16 %v591
          %v1017 = vunpack.c.l.b16 %v592
          %v1018 = vunpack.c.h.b16 %v592
          %v1019 = vunpack.c.l.b16 %v593
          %v1020 = vunpack.c.h.b16 %v593
          %v1021 = vunpack.c.l.b16 %v594
          %v1022 = vunpack.c.h.b16 %v594
          %v1023 = vunpack.c.l.b16 %v595
          %v1024 = vunpack.c.h.b16 %v595
          %v1025 = vunpack.c.l.b16 %v596
          %v1026 = vunpack.c.h.b16 %v596
          %v1027 = vunpack.c.l.b16 %v597
          %v1028 = vunpack.c.h.b16 %v597
          %v1029 = vunpack.c.l.b16 %v598
          %v1030 = vunpack.c.h.b16 %v598
          %v1031 = vunpack.c.l.b16 %v599
          %v1032 = vunpack.c.h.b16 %v599
          %v1033 = vunpack.c.l.b16 %v600
          %v1034 = vunpack.c.h.b16 %v600
          %v1035 = vunpack.c.l.b16 %v601
          %v1036 = vunpack.c.h.b16 %v601
          %v1037 = vunpack.c.l.b16 %v602
          %v1038 = vunpack.c.h.b16 %v602
          %v1039 = vunpack.c.l.b16 %v603
          %v1040 = vunpack.c.h.b16 %v603
          %v1041 = vunpack.c.l.b16 %v604
          %v1042 = vunpack.c.h.b16 %v604
          %v1043 = vunpack.c.l.b16 %v605
          %v1044 = vunpack.c.h.b16 %v605
          %v1045 = vunpack.c.l.b16 %v606
          %v1046 = vunpack.c.h.b16 %v606
          %v1047 = vunpack.c.l.b16 %v607
          %v1048 = vunpack.c.h.b16 %v607
          %v1049 = vunpack.c.l.b16 %v608
          %v1050 = vunpack.c.h.b16 %v608
          %v1051 = vunpack.c.l.b16 %v609
          %v1052 = vunpack.c.h.b16 %v609
          %v1053 = vunpack.c.l.b16 %v610
          %v1054 = vunpack.c.h.b16 %v610
          %v1055 = vunpack.c.l.b16 %v611
          %v1056 = vunpack.c.h.b16 %v611
          %v1057 = vunpack.c.l.b16 %v612
          %v1058 = vunpack.c.h.b16 %v612
          %v1059 = vunpack.c.l.b16 %v613
          %v1060 = vunpack.c.h.b16 %v613
          %v1061 = vunpack.c.l.b16 %v614
          %v1062 = vunpack.c.h.b16 %v614
          %v1063 = vunpack.c.l.b16 %v615
          %v1064 = vunpack.c.h.b16 %v615
          %v1065 = vunpack.c.l.b16 %v616
          %v1066 = vunpack.c.h.b16 %v616
          %v1067 = vunpack.c.l.b16 %v617
          %v1068 = vunpack.c.h.b16 %v617
          %v1069 = vunpack.c.l.b16 %v618
          %v1070 = vunpack.c.h.b16 %v618
          %v1071 = vunpack.c.l.b16 %v619
          %v1072 = vunpack.c.h.b16 %v619
          %v1073 = vunpack.c.l.b16 %v620
          %v1074 = vunpack.c.h.b16 %v620
          %v1075 = vunpack.c.l.b16 %v621
          %v1076 = vunpack.c.h.b16 %v621
          %v1077 = vunpack.c.l.b16 %v622
          %v1078 = vunpack.c.h.b16 %v622
          %v1079 = vunpack.c.l.b16 %v623
          %v1080 = vunpack.c.h.b16 %v623
          %v1081 = vunpack.c.l.b16 %v624
          %v1082 = vunpack.c.h.b16 %v624
          %v1083 = vunpack.c.l.b16 %v625
          %v1084 = vunpack.c.h.b16 %v625
          %v1085 = vunpack.c.l.b16 %v626
          %v1086 = vunpack.c.h.b16 %v626
          %v1087 = vunpack.c.l.b16 %v627
          %v1088 = vunpack.c.h.b16 %v627
          %v1089 = vunpack.c.l.b16 %v628
          %v1090 = vunpack.c.h.b16 %v628
          %v1091 = vunpack.c.l.b16 %v629
          %v1092 = vunpack.c.h.b16 %v629
          %v1093 = vunpack.c.l.b16 %v630
          %v1094 = vunpack.c.h.b16 %v630
          %v1095 = vunpack.c.l.b16 %v631
          %v1096 = vunpack.c.h.b16 %v631
          %v1097 = vunpack.c.l.b16 %v632
          %v1098 = vunpack.c.h.b16 %v632
          %v1099 = vunpack.c.l.b16 %v633
          %v1100 = vunpack.c.h.b16 %v633
          %v1101 = vunpack.c.l.b16 %v634
          %v1102 = vunpack.c.h.b16 %v634
          %v1103 = vpack.c.b16 %v863, %v847
          %v1104 = vpack.c.b16 %v864, %v848
          %v1105 = vpack.c.b16 %v865, %v849
          %v1106 = vpack.c.b16 %v866, %v850
          %v1107 = vpack.c.b16 %v867, %v851
          %v1108 = vpack.c.b16 %v868, %v852
          %v1109 = vpack.c.b16 %v869, %v853
          %v1110 = vpack.c.b16 %v870, %v854
          %v1111 = vpack.c.b16 %v871, %v855
          %v1112 = vpack.c.b16 %v872, %v856
          %v1113 = vpack.c.b16 %v873, %v857
          %v1114 = vpack.c.b16 %v874, %v858
          %v1115 = vpack.c.b16 %v875, %v859
          %v1116 = vpack.c.b16 %v876, %v860
          %v1117 = vpack.c.b16 %v877, %v861
          %v1118 = vpack.c.b16 %v878, %v862
          %v1119 = vpack.c.b16 %v895, %v879
          %v1120 = vpack.c.b16 %v896, %v880
          %v1121 = vpack.c.b16 %v897, %v881
          %v1122 = vpack.c.b16 %v898, %v882
          %v1123 = vpack.c.b16 %v899, %v883
          %v1124 = vpack.c.b16 %v900, %v884
          %v1125 = vpack.c.b16 %v901, %v885
          %v1126 = vpack.c.b16 %v902, %v886
          %v1127 = vpack.c.b16 %v903, %v887
          %v1128 = vpack.c.b16 %v904, %v888
          %v1129 = vpack.c.b16 %v905, %v889
          %v1130 = vpack.c.b16 %v906, %v890
          %v1131 = vpack.c.b16 %v907, %v891
          %v1132 = vpack.c.b16 %v908, %v892
          %v1133 = vpack.c.b16 %v909, %v893
          %v1134 = vpack.c.b16 %v910, %v894
          %v1135 = vpack.c.b16 %v927, %v911
          %v1136 = vpack.c.b16 %v928, %v912
          %v1137 = vpack.c.b16 %v929, %v913
          %v1138 = vpack.c.b16 %v930, %v914
          %v1139 = vpack.c.b16 %v931, %v915
          %v1140 = vpack.c.b16 %v932, %v916
          %v1141 = vpack.c.b16 %v933, %v917
          %v1142 = vpack.c.b16 %v934, %v918
          %v1143 = vpack.c.b16 %v935, %v919
          %v1144 = vpack.c.b16 %v936, %v920
          %v1145 = vpack.c.b16 %v937, %v921
          %v1146 = vpack.c.b16 %v938, %v922
          %v1147 = vpack.c.b16 %v939, %v923
          %v1148 = vpack.c.b16 %v940, %v924
          %v1149 = vpack.c.b16 %v941, %v925
          %v1150 = vpack.c.b16 %v942, %v926
          %v1151 = vpack.c.b16 %v959, %v943
          %v1152 = vpack.c.b16 %v960, %v944
          %v1153 = vpack.c.b16 %v961, %v945
          %v1154 = vpack.c.b16 %v962, %v946
          %v1155 = vpack.c.b16 %v963, %v947
          %v1156 = vpack.c.b16 %v964, %v948
          %v1157 = vpack.c.b16 %v965, %v949
          %v1158 = vpack.c.b16 %v966, %v950
          %v1159 = vpack.c.b16 %v967, %v951
          %v1160 = vpack.c.b16 %v968, %v952
          %v1161 = vpack.c.b16 %v969, %v953
          %v1162 = vpack.c.b16 %v970, %v954
          %v1163 = vpack.c.b16 %v971, %v955
          %v1164 = vpack.c.b16 %v972, %v956
          %v1165 = vpack.c.b16 %v973, %v957
          %v1166 = vpack.c.b16 %v974, %v958
          %v1167 = vpack.c.b16 %v991, %v975
          %v1168 = vpack.c.b16 %v992, %v976
          %v1169 = vpack.c.b16 %v993, %v977
          %v1170 = vpack.c.b16 %v994, %v978
          %v1171 = vpack.c.b16 %v995, %v979
          %v1172 = vpack.c.b16 %v996, %v980
          %v1173 = vpack.c.b16 %v997, %v981
          %v1174 = vpack.c.b16 %v998, %v982
          %v1175 = vpack.c.b16 %v999, %v983
          %v1176 = vpack.c.b16 %v1000, %v984
          %v1177 = vpack.c.b16 %v1001, %v985
          %v1178 = vpack.c.b16 %v1002, %v986
          %v1179 = vpack.c.b16 %v1003, %v987
          %v1180 = vpack.c.b16 %v1004, %v988
          %v1181 = vpack.c.b16 %v1005, %v989
          %v1182 = vpack.c.b16 %v1006, %v990
          %v1183 = vpack.c.b16 %v1023, %v1007
          %v1184 = vpack.c.b16 %v1024, %v1008
          %v1185 = vpack.c.b16 %v1025, %v1009
          %v1186 = vpack.c.b16 %v1026, %v1010
          %v1187 = vpack.c.b16 %v1027, %v1011
          %v1188 = vpack.c.b16 %v1028, %v1012
          %v1189 = vpack.c.b16 %v1029, %v1013
          %v1190 = vpack.c.b16 %v1030, %v1014
          %v1191 = vpack.c.b16 %v1031, %v1015
          %v1192 = vpack.c.b16 %v1032, %v1016
          %v1193 = vpack.c.b16 %v1033, %v1017
          %v1194 = vpack.c.b16 %v1034, %v1018
          %v1195 = vpack.c.b16 %v1035, %v1019
          %v1196 = vpack.c.b16 %v1036, %v1020
          %v1197 = vpack.c.b16 %v1037, %v1021
          %v1198 = vpack.c.b16 %v1038, %v1022
          %v1199 = vpack.c.b16 %v1055, %v1039
          %v1200 = vpack.c.b16 %v1056, %v1040
          %v1201 = vpack.c.b16 %v1057, %v1041
          %v1202 = vpack.c.b16 %v1058, %v1042
          %v1203 = vpack.c.b16 %v1059, %v1043
          %v1204 = vpack.c.b16 %v1060, %v1044
          %v1205 = vpack.c.b16 %v1061, %v1045
          %v1206 = vpack.c.b16 %v1062, %v1046
          %v1207 = vpack.c.b16 %v1063, %v1047
          %v1208 = vpack.c.b16 %v1064, %v1048
          %v1209 = vpack.c.b16 %v1065, %v1049
          %v1210 = vpack.c.b16 %v1066, %v1050
          %v1211 = vpack.c.b16 %v1067, %v1051
          %v1212 = vpack.c.b16 %v1068, %v1052
          %v1213 = vpack.c.b16 %v1069, %v1053
          %v1214 = vpack.c.b16 %v1070, %v1054
          %v1215 = vpack.c.b16 %v1087, %v1071
          %v1216 = vpack.c.b16 %v1088, %v1072
          %v1217 = vpack.c.b16 %v1089, %v1073
          %v1218 = vpack.c.b16 %v1090, %v1074
          %v1219 = vpack.c.b16 %v1091, %v1075
          %v1220 = vpack.c.b16 %v1092, %v1076
          %v1221 = vpack.c.b16 %v1093, %v1077
          %v1222 = vpack.c.b16 %v1094, %v1078
          %v1223 = vpack.c.b16 %v1095, %v1079
          %v1224 = vpack.c.b16 %v1096, %v1080
          %v1225 = vpack.c.b16 %v1097, %v1081
          %v1226 = vpack.c.b16 %v1098, %v1082
          %v1227 = vpack.c.b16 %v1099, %v1083
          %v1228 = vpack.c.b16 %v1100, %v1084
          %v1229 = vpack.c.b16 %v1101, %v1085
          %v1230 = vpack.c.b16 %v1102, %v1086
          %1359 = vmatprep.subr.bf16.mxu0 %v1216
          %1360 = vmatpush1.bf16.msra.mxu0 %v1215
          %1361 = vmatprep.subr.bf16.mxu0 %v1200
          %1362 = vmatpush1.bf16.msra.mxu0 %v1199
          %1363 = vmatprep.subr.bf16.mxu0 %v1184
          %1364 = vmatpush1.bf16.msra.mxu0 %v1183
          %1365 = vmatprep.subr.bf16.mxu0 %v1168
          %1366 = vmatpush1.bf16.msra.mxu0 %v1167
          %1367 = vmatprep.subr.bf16.mxu0 %v1152
          %1368 = vmatpush1.bf16.msra.mxu0 %v1151
          %1369 = vmatprep.subr.bf16.mxu0 %v1136
          %1370 = vmatpush1.bf16.msra.mxu0 %v1135
          %1371 = vmatprep.subr.bf16.mxu0 %v1120
          %1372 = vmatpush1.bf16.msra.mxu0 %v1119
          %1373 = vmatprep.subr.bf16.mxu0 %v1104
          %1374 = vmatpush1.bf16.msra.mxu0 %v1103
          %1375 = vmatprep.subr.bf16.mxu0 0
          %1376 = vmatpush2.bf16.msra.mxu0 0
          %1377 = vmatprep.subr.bf16.mxu0 0
          %1378 = vmatpush2.bf16.msra.mxu0 0
          %1379 = vmatprep.subr.bf16.mxu0 0
          %1380 = vmatpush2.bf16.msra.mxu0 0
          %1381 = vmatprep.subr.bf16.mxu0 0
          %1382 = vmatpush2.bf16.msra.mxu0 0
          %1383 = vmatprep.subr.bf16.mxu0 0
          %1384 = vmatpush2.bf16.msra.mxu0 0
          %1385 = vmatprep.subr.bf16.mxu0 0
          %1386 = vmatpush2.bf16.msra.mxu0 0
          %1387 = vmatprep.subr.bf16.mxu0 0
          %1388 = vmatpush2.bf16.msra.mxu0 0
          %1389 = vmatprep.subr.bf16.mxu0 0
          %1390 = vmatpush2.bf16.msra.mxu0 0
          %1391 = vmatprep.mubr.bf16.mxu0 0
          %1392 = vmatmul.mubr.bf16.gmra.mxu0 %v506
          %v1393 = vpop.f32.mrf.mxu0
          %v1394 = vadd.f32 %v642, %v1393
          %v1395 = vpop.f32.mrf.mxu0
          %v1396 = vadd.f32 %v646, %v1395
          %v1397 = vpop.f32.mrf.mxu0
          %v1398 = vpop.f32.mrf.mxu0
          %1399 = vdwg.mxu0
          %1400 = vmatprep.subr.bf16.mxu0 %v1218
          %1401 = vmatpush1.bf16.msra.mxu0 %v1217
          %1402 = vmatprep.subr.bf16.mxu0 %v1202
          %1403 = vmatpush1.bf16.msra.mxu0 %v1201
          %1404 = vmatprep.subr.bf16.mxu0 %v1186
          %1405 = vmatpush1.bf16.msra.mxu0 %v1185
          %1406 = vmatprep.subr.bf16.mxu0 %v1170
          %1407 = vmatpush1.bf16.msra.mxu0 %v1169
          %1408 = vmatprep.subr.bf16.mxu0 %v1154
          %1409 = vmatpush1.bf16.msra.mxu0 %v1153
          %1410 = vmatprep.subr.bf16.mxu0 %v1138
          %1411 = vmatpush1.bf16.msra.mxu0 %v1137
          %1412 = vmatprep.subr.bf16.mxu0 %v1122
          %1413 = vmatpush1.bf16.msra.mxu0 %v1121
          %1414 = vmatprep.subr.bf16.mxu0 %v1106
          %1415 = vmatpush1.bf16.msra.mxu0 %v1105
          %1416 = vmatprep.subr.bf16.mxu0 0
          %1417 = vmatpush2.bf16.msra.mxu0 0
          %1418 = vmatprep.subr.bf16.mxu0 0
          %1419 = vmatpush2.bf16.msra.mxu0 0
          %1420 = vmatprep.subr.bf16.mxu0 0
          %1421 = vmatpush2.bf16.msra.mxu0 0
          %1422 = vmatprep.subr.bf16.mxu0 0
          %1423 = vmatpush2.bf16.msra.mxu0 0
          %1424 = vmatprep.subr.bf16.mxu0 0
          %1425 = vmatpush2.bf16.msra.mxu0 0
          %1426 = vmatprep.subr.bf16.mxu0 0
          %1427 = vmatpush2.bf16.msra.mxu0 0
          %1428 = vmatprep.subr.bf16.mxu0 0
          %1429 = vmatpush2.bf16.msra.mxu0 0
          %1430 = vmatprep.subr.bf16.mxu0 0
          %1431 = vmatpush2.bf16.msra.mxu0 0
          %1432 = vmatprep.mubr.bf16.mxu0 0
          %1433 = vmatmul.mubr.bf16.gmra.mxu0 %v506
          %v1434 = vpop.f32.mrf.mxu0
          %v1435 = vadd.f32 %v650, %v1434
          %v1436 = vpop.f32.mrf.mxu0
          %v1437 = vadd.f32 %v654, %v1436
          %v1438 = vpop.f32.mrf.mxu0
          %v1439 = vpop.f32.mrf.mxu0
          %1440 = vdwg.mxu0
          %1441 = vmatprep.subr.bf16.mxu0 %v1220
          %1442 = vmatpush1.bf16.msra.mxu0 %v1219
          %1443 = vmatprep.subr.bf16.mxu0 %v1204
          %1444 = vmatpush1.bf16.msra.mxu0 %v1203
          %1445 = vmatprep.subr.bf16.mxu0 %v1188
          %1446 = vmatpush1.bf16.msra.mxu0 %v1187
          %1447 = vmatprep.subr.bf16.mxu0 %v1172
          %1448 = vmatpush1.bf16.msra.mxu0 %v1171
          %1449 = vmatprep.subr.bf16.mxu0 %v1156
          %1450 = vmatpush1.bf16.msra.mxu0 %v1155
          %1451 = vmatprep.subr.bf16.mxu0 %v1140
          %1452 = vmatpush1.bf16.msra.mxu0 %v1139
          %1453 = vmatprep.subr.bf16.mxu0 %v1124
          %1454 = vmatpush1.bf16.msra.mxu0 %v1123
          %1455 = vmatprep.subr.bf16.mxu0 %v1108
          %1456 = vmatpush1.bf16.msra.mxu0 %v1107
          %1457 = vmatprep.subr.bf16.mxu0 0
          %1458 = vmatpush2.bf16.msra.mxu0 0
          %1459 = vmatprep.subr.bf16.mxu0 0
          %1460 = vmatpush2.bf16.msra.mxu0 0
          %1461 = vmatprep.subr.bf16.mxu0 0
          %1462 = vmatpush2.bf16.msra.mxu0 0
          %1463 = vmatprep.subr.bf16.mxu0 0
          %1464 = vmatpush2.bf16.msra.mxu0 0
          %1465 = vmatprep.subr.bf16.mxu0 0
          %1466 = vmatpush2.bf16.msra.mxu0 0
          %1467 = vmatprep.subr.bf16.mxu0 0
          %1468 = vmatpush2.bf16.msra.mxu0 0
          %1469 = vmatprep.subr.bf16.mxu0 0
          %1470 = vmatpush2.bf16.msra.mxu0 0
          %1471 = vmatprep.subr.bf16.mxu0 0
          %1472 = vmatpush2.bf16.msra.mxu0 0
          %1473 = vmatprep.mubr.bf16.mxu0 0
          %1474 = vmatmul.mubr.bf16.gmra.mxu0 %v506
          %v1475 = vpop.f32.mrf.mxu0
          %v1476 = vadd.f32 %v658, %v1475
          %v1477 = vpop.f32.mrf.mxu0
          %v1478 = vadd.f32 %v662, %v1477
          %v1479 = vpop.f32.mrf.mxu0
          %v1480 = vpop.f32.mrf.mxu0
          %1481 = vdwg.mxu0
          %1482 = vmatprep.subr.bf16.mxu0 %v1222
          %1483 = vmatpush1.bf16.msra.mxu0 %v1221
          %1484 = vmatprep.subr.bf16.mxu0 %v1206
          %1485 = vmatpush1.bf16.msra.mxu0 %v1205
          %1486 = vmatprep.subr.bf16.mxu0 %v1190
          %1487 = vmatpush1.bf16.msra.mxu0 %v1189
          %1488 = vmatprep.subr.bf16.mxu0 %v1174
          %1489 = vmatpush1.bf16.msra.mxu0 %v1173
          %1490 = vmatprep.subr.bf16.mxu0 %v1158
          %1491 = vmatpush1.bf16.msra.mxu0 %v1157
          %1492 = vmatprep.subr.bf16.mxu0 %v1142
          %1493 = vmatpush1.bf16.msra.mxu0 %v1141
          %1494 = vmatprep.subr.bf16.mxu0 %v1126
          %1495 = vmatpush1.bf16.msra.mxu0 %v1125
          %1496 = vmatprep.subr.bf16.mxu0 %v1110
          %1497 = vmatpush1.bf16.msra.mxu0 %v1109
          %1498 = vmatprep.subr.bf16.mxu0 0
          %1499 = vmatpush2.bf16.msra.mxu0 0
          %1500 = vmatprep.subr.bf16.mxu0 0
          %1501 = vmatpush2.bf16.msra.mxu0 0
          %1502 = vmatprep.subr.bf16.mxu0 0
          %1503 = vmatpush2.bf16.msra.mxu0 0
          %1504 = vmatprep.subr.bf16.mxu0 0
          %1505 = vmatpush2.bf16.msra.mxu0 0
          %1506 = vmatprep.subr.bf16.mxu0 0
          %1507 = vmatpush2.bf16.msra.mxu0 0
          %1508 = vmatprep.subr.bf16.mxu0 0
          %1509 = vmatpush2.bf16.msra.mxu0 0
          %1510 = vmatprep.subr.bf16.mxu0 0
          %1511 = vmatpush2.bf16.msra.mxu0 0
          %1512 = vmatprep.subr.bf16.mxu0 0
          %1513 = vmatpush2.bf16.msra.mxu0 0
          %1514 = vmatprep.mubr.bf16.mxu0 0
          %1515 = vmatmul.mubr.bf16.gmra.mxu0 %v506
          %v1516 = vpop.f32.mrf.mxu0
          %v1517 = vadd.f32 %v666, %v1516
          %v1518 = vpop.f32.mrf.mxu0
          %v1519 = vadd.f32 %v670, %v1518
          %v1520 = vpop.f32.mrf.mxu0
          %v1521 = vpop.f32.mrf.mxu0
          %1522 = vdwg.mxu0
          %1523 = vmatprep.subr.bf16.mxu0 %v1224
          %1524 = vmatpush1.bf16.msra.mxu0 %v1223
          %1525 = vmatprep.subr.bf16.mxu0 %v1208
          %1526 = vmatpush1.bf16.msra.mxu0 %v1207
          %1527 = vmatprep.subr.bf16.mxu0 %v1192
          %1528 = vmatpush1.bf16.msra.mxu0 %v1191
          %1529 = vmatprep.subr.bf16.mxu0 %v1176
          %1530 = vmatpush1.bf16.msra.mxu0 %v1175
          %1531 = vmatprep.subr.bf16.mxu0 %v1160
          %1532 = vmatpush1.bf16.msra.mxu0 %v1159
          %1533 = vmatprep.subr.bf16.mxu0 %v1144
          %1534 = vmatpush1.bf16.msra.mxu0 %v1143
          %1535 = vmatprep.subr.bf16.mxu0 %v1128
          %1536 = vmatpush1.bf16.msra.mxu0 %v1127
          %1537 = vmatprep.subr.bf16.mxu0 %v1112
          %1538 = vmatpush1.bf16.msra.mxu0 %v1111
          %1539 = vmatprep.subr.bf16.mxu0 0
          %1540 = vmatpush2.bf16.msra.mxu0 0
          %1541 = vmatprep.subr.bf16.mxu0 0
          %1542 = vmatpush2.bf16.msra.mxu0 0
          %1543 = vmatprep.subr.bf16.mxu0 0
          %1544 = vmatpush2.bf16.msra.mxu0 0
          %1545 = vmatprep.subr.bf16.mxu0 0
          %1546 = vmatpush2.bf16.msra.mxu0 0
          %1547 = vmatprep.subr.bf16.mxu0 0
          %1548 = vmatpush2.bf16.msra.mxu0 0
          %1549 = vmatprep.subr.bf16.mxu0 0
          %1550 = vmatpush2.bf16.msra.mxu0 0
          %1551 = vmatprep.subr.bf16.mxu0 0
          %1552 = vmatpush2.bf16.msra.mxu0 0
          %1553 = vmatprep.subr.bf16.mxu0 0
          %1554 = vmatpush2.bf16.msra.mxu0 0
          %1555 = vmatprep.mubr.bf16.mxu0 0
          %1556 = vmatmul.mubr.bf16.gmra.mxu0 %v506
          %v1557 = vpop.f32.mrf.mxu0
          %v1558 = vadd.f32 %v674, %v1557
          %v1559 = vpop.f32.mrf.mxu0
          %v1560 = vadd.f32 %v678, %v1559
          %v1561 = vpop.f32.mrf.mxu0
          %v1562 = vpop.f32.mrf.mxu0
          %1563 = vdwg.mxu0
          %1564 = vmatprep.subr.bf16.mxu0 %v1226
          %1565 = vmatpush1.bf16.msra.mxu0 %v1225
          %1566 = vmatprep.subr.bf16.mxu0 %v1210
          %1567 = vmatpush1.bf16.msra.mxu0 %v1209
          %1568 = vmatprep.subr.bf16.mxu0 %v1194
          %1569 = vmatpush1.bf16.msra.mxu0 %v1193
          %1570 = vmatprep.subr.bf16.mxu0 %v1178
          %1571 = vmatpush1.bf16.msra.mxu0 %v1177
          %1572 = vmatprep.subr.bf16.mxu0 %v1162
          %1573 = vmatpush1.bf16.msra.mxu0 %v1161
          %1574 = vmatprep.subr.bf16.mxu0 %v1146
          %1575 = vmatpush1.bf16.msra.mxu0 %v1145
          %1576 = vmatprep.subr.bf16.mxu0 %v1130
          %1577 = vmatpush1.bf16.msra.mxu0 %v1129
          %1578 = vmatprep.subr.bf16.mxu0 %v1114
          %1579 = vmatpush1.bf16.msra.mxu0 %v1113
          %1580 = vmatprep.subr.bf16.mxu0 0
          %1581 = vmatpush2.bf16.msra.mxu0 0
          %1582 = vmatprep.subr.bf16.mxu0 0
          %1583 = vmatpush2.bf16.msra.mxu0 0
          %1584 = vmatprep.subr.bf16.mxu0 0
          %1585 = vmatpush2.bf16.msra.mxu0 0
          %1586 = vmatprep.subr.bf16.mxu0 0
          %1587 = vmatpush2.bf16.msra.mxu0 0
          %1588 = vmatprep.subr.bf16.mxu0 0
          %1589 = vmatpush2.bf16.msra.mxu0 0
          %1590 = vmatprep.subr.bf16.mxu0 0
          %1591 = vmatpush2.bf16.msra.mxu0 0
          %1592 = vmatprep.subr.bf16.mxu0 0
          %1593 = vmatpush2.bf16.msra.mxu0 0
          %1594 = vmatprep.subr.bf16.mxu0 0
          %1595 = vmatpush2.bf16.msra.mxu0 0
          %1596 = vmatprep.mubr.bf16.mxu0 0
          %1597 = vmatmul.mubr.bf16.gmra.mxu0 %v506
          %v1598 = vpop.f32.mrf.mxu0
          %v1599 = vadd.f32 %v682, %v1598
          %v1600 = vpop.f32.mrf.mxu0
          %v1601 = vadd.f32 %v686, %v1600
          %v1602 = vpop.f32.mrf.mxu0
          %v1603 = vpop.f32.mrf.mxu0
          %1604 = vdwg.mxu0
          %1605 = vmatprep.subr.bf16.mxu0 %v1228
          %1606 = vmatpush1.bf16.msra.mxu0 %v1227
          %1607 = vmatprep.subr.bf16.mxu0 %v1212
          %1608 = vmatpush1.bf16.msra.mxu0 %v1211
          %1609 = vmatprep.subr.bf16.mxu0 %v1196
          %1610 = vmatpush1.bf16.msra.mxu0 %v1195
          %1611 = vmatprep.subr.bf16.mxu0 %v1180
          %1612 = vmatpush1.bf16.msra.mxu0 %v1179
          %1613 = vmatprep.subr.bf16.mxu0 %v1164
          %1614 = vmatpush1.bf16.msra.mxu0 %v1163
          %1615 = vmatprep.subr.bf16.mxu0 %v1148
          %1616 = vmatpush1.bf16.msra.mxu0 %v1147
          %1617 = vmatprep.subr.bf16.mxu0 %v1132
          %1618 = vmatpush1.bf16.msra.mxu0 %v1131
          %1619 = vmatprep.subr.bf16.mxu0 %v1116
          %1620 = vmatpush1.bf16.msra.mxu0 %v1115
          %1621 = vmatprep.subr.bf16.mxu0 0
          %1622 = vmatpush2.bf16.msra.mxu0 0
          %1623 = vmatprep.subr.bf16.mxu0 0
          %1624 = vmatpush2.bf16.msra.mxu0 0
          %1625 = vmatprep.subr.bf16.mxu0 0
          %1626 = vmatpush2.bf16.msra.mxu0 0
          %1627 = vmatprep.subr.bf16.mxu0 0
          %1628 = vmatpush2.bf16.msra.mxu0 0
          %1629 = vmatprep.subr.bf16.mxu0 0
          %1630 = vmatpush2.bf16.msra.mxu0 0
          %1631 = vmatprep.subr.bf16.mxu0 0
          %1632 = vmatpush2.bf16.msra.mxu0 0
          %1633 = vmatprep.subr.bf16.mxu0 0
          %1634 = vmatpush2.bf16.msra.mxu0 0
          %1635 = vmatprep.subr.bf16.mxu0 0
          %1636 = vmatpush2.bf16.msra.mxu0 0
          %1637 = vmatprep.mubr.bf16.mxu0 0
          %1638 = vmatmul.mubr.bf16.gmra.mxu0 %v506
          %v1639 = vpop.f32.mrf.mxu0
          %v1640 = vadd.f32 %v690, %v1639
          %v1641 = vpop.f32.mrf.mxu0
          %v1642 = vadd.f32 %v694, %v1641
          %v1643 = vpop.f32.mrf.mxu0
          %v1644 = vpop.f32.mrf.mxu0
          %1645 = vdwg.mxu0
          %1646 = vmatprep.subr.bf16.mxu0 %v1230
          %1647 = vmatpush1.bf16.msra.mxu0 %v1229
          %1648 = vmatprep.subr.bf16.mxu0 %v1214
          %1649 = vmatpush1.bf16.msra.mxu0 %v1213
          %1650 = vmatprep.subr.bf16.mxu0 %v1198
          %1651 = vmatpush1.bf16.msra.mxu0 %v1197
          %1652 = vmatprep.subr.bf16.mxu0 %v1182
          %1653 = vmatpush1.bf16.msra.mxu0 %v1181
          %1654 = vmatprep.subr.bf16.mxu0 %v1166
          %1655 = vmatpush1.bf16.msra.mxu0 %v1165
          %1656 = vmatprep.subr.bf16.mxu0 %v1150
          %1657 = vmatpush1.bf16.msra.mxu0 %v1149
          %1658 = vmatprep.subr.bf16.mxu0 %v1134
          %1659 = vmatpush1.bf16.msra.mxu0 %v1133
          %1660 = vmatprep.subr.bf16.mxu0 %v1118
          %1661 = vmatpush1.bf16.msra.mxu0 %v1117
          %1662 = vmatprep.subr.bf16.mxu0 0
          %1663 = vmatpush2.bf16.msra.mxu0 0
          %1664 = vmatprep.subr.bf16.mxu0 0
          %1665 = vmatpush2.bf16.msra.mxu0 0
          %1666 = vmatprep.subr.bf16.mxu0 0
          %1667 = vmatpush2.bf16.msra.mxu0 0
          %1668 = vmatprep.subr.bf16.mxu0 0
          %1669 = vmatpush2.bf16.msra.mxu0 0
          %1670 = vmatprep.subr.bf16.mxu0 0
          %1671 = vmatpush2.bf16.msra.mxu0 0
          %1672 = vmatprep.subr.bf16.mxu0 0
          %1673 = vmatpush2.bf16.msra.mxu0 0
          %1674 = vmatprep.subr.bf16.mxu0 0
          %1675 = vmatpush2.bf16.msra.mxu0 0
          %1676 = vmatprep.subr.bf16.mxu0 0
          %1677 = vmatpush2.bf16.msra.mxu0 0
          %1678 = vmatprep.mubr.bf16.mxu0 0
          %1679 = vmatmul.mubr.bf16.gmra.mxu0 %v506
          %v1680 = vpop.f32.mrf.mxu0
          %v1681 = vadd.f32 %v698, %v1680
          %v1682 = vpop.f32.mrf.mxu0
          %v1683 = vadd.f32 %v702, %v1682
          %v1684 = vpop.f32.mrf.mxu0
          %v1685 = vpop.f32.mrf.mxu0
          %1686 = vdwg.mxu0
          %v1687 = vmax.f32 %v1394, 0.0
          %v1688 = vmax.f32 %v1396, 0.0
          %v1689 = vmax.f32 %v1435, 0.0
          %v1690 = vmax.f32 %v1437, 0.0
          %v1691 = vmax.f32 %v1476, 0.0
          %v1692 = vmax.f32 %v1478, 0.0
          %v1693 = vmax.f32 %v1517, 0.0
          %v1694 = vmax.f32 %v1519, 0.0
          %v1695 = vmax.f32 %v1558, 0.0
          %v1696 = vmax.f32 %v1560, 0.0
          %v1697 = vmax.f32 %v1599, 0.0
          %v1698 = vmax.f32 %v1601, 0.0
          %v1699 = vmax.f32 %v1640, 0.0
          %v1700 = vmax.f32 %v1642, 0.0
          %v1701 = vmax.f32 %v1681, 0.0
          %v1702 = vmax.f32 %v1683, 0.0
          %v1705 = vunpack.c.l.s4 1966171168
          %v1706 = vunpack.c.0.s8 %v1705
          %v1707 = vlaneseq
          %v1708 = vshrl.u32 %v1707, 7
          %v1709 = vsub.s32 %v1706, %v1708
          %v1710 = vrot.slane %v1687, %v1709
          %v1711 = vcombine.high %v1710, %v1710
          %v1713 = vunpack.c.l.s4 1966171168
          %v1714 = vunpack.c.0.s8 %v1713
          %v1715 = vlaneseq
          %v1716 = vshrl.u32 %v1715, 7
          %v1717 = vsub.s32 %v1714, %v1716
          %v1718 = vrot.slane %v1710, %v1717
          %v1720 = vunpack.c.l.s4 1966171168
          %v1721 = vunpack.c.0.s8 %v1720
          %v1722 = vlaneseq
          %v1723 = vshrl.u32 %v1722, 7
          %v1724 = vsub.s32 %v1721, %v1723
          %v1725 = vrot.slane %v1711, %v1724
          %1728 = vst [vmem:[#allocation2] sm:$0x1] %v1718
          %1729 = vst [vmem:[#allocation2 + $0x10] sm:$0x1] %v1725
          %v1732 = vunpack.c.l.s4 1966171168
          %v1733 = vunpack.c.0.s8 %v1732
          %v1734 = vlaneseq
          %v1735 = vshrl.u32 %v1734, 7
          %v1736 = vsub.s32 %v1733, %v1735
          %v1737 = vrot.slane %v1688, %v1736
          %v1738 = vcombine.high %v1737, %v1737
          %v1740 = vunpack.c.l.s4 1966171168
          %v1741 = vunpack.c.0.s8 %v1740
          %v1742 = vlaneseq
          %v1743 = vshrl.u32 %v1742, 7
          %v1744 = vsub.s32 %v1741, %v1743
          %v1745 = vrot.slane %v1737, %v1744
          %v1747 = vunpack.c.l.s4 1966171168
          %v1748 = vunpack.c.0.s8 %v1747
          %v1749 = vlaneseq
          %v1750 = vshrl.u32 %v1749, 7
          %v1751 = vsub.s32 %v1748, %v1750
          %v1752 = vrot.slane %v1738, %v1751
          %1755 = vst [vmem:[#allocation2 + $0x1] sm:$0x1] %v1745
          %1756 = vst [vmem:[#allocation2 + $0x11] sm:$0x1] %v1752
          %v1759 = vunpack.c.l.s4 1966171168
          %v1760 = vunpack.c.0.s8 %v1759
          %v1761 = vlaneseq
          %v1762 = vshrl.u32 %v1761, 7
          %v1763 = vsub.s32 %v1760, %v1762
          %v1764 = vrot.slane %v1689, %v1763
          %v1765 = vcombine.high %v1764, %v1764
          %v1767 = vunpack.c.l.s4 1966171168
          %v1768 = vunpack.c.0.s8 %v1767
          %v1769 = vlaneseq
          %v1770 = vshrl.u32 %v1769, 7
          %v1771 = vsub.s32 %v1768, %v1770
          %v1772 = vrot.slane %v1764, %v1771
          %v1774 = vunpack.c.l.s4 1966171168
          %v1775 = vunpack.c.0.s8 %v1774
          %v1776 = vlaneseq
          %v1777 = vshrl.u32 %v1776, 7
          %v1778 = vsub.s32 %v1775, %v1777
          %v1779 = vrot.slane %v1765, %v1778
          %1782 = vst [vmem:[#allocation2 + $0x2] sm:$0x1] %v1772
          %1783 = vst [vmem:[#allocation2 + $0x12] sm:$0x1] %v1779
          %v1786 = vunpack.c.l.s4 1966171168
          %v1787 = vunpack.c.0.s8 %v1786
          %v1788 = vlaneseq
          %v1789 = vshrl.u32 %v1788, 7
          %v1790 = vsub.s32 %v1787, %v1789
          %v1791 = vrot.slane %v1690, %v1790
          %v1792 = vcombine.high %v1791, %v1791
          %v1794 = vunpack.c.l.s4 1966171168
          %v1795 = vunpack.c.0.s8 %v1794
          %v1796 = vlaneseq
          %v1797 = vshrl.u32 %v1796, 7
          %v1798 = vsub.s32 %v1795, %v1797
          %v1799 = vrot.slane %v1791, %v1798
          %v1801 = vunpack.c.l.s4 1966171168
          %v1802 = vunpack.c.0.s8 %v1801
          %v1803 = vlaneseq
          %v1804 = vshrl.u32 %v1803, 7
          %v1805 = vsub.s32 %v1802, %v1804
          %v1806 = vrot.slane %v1792, %v1805
          %1809 = vst [vmem:[#allocation2 + $0x3] sm:$0x1] %v1799
          %1810 = vst [vmem:[#allocation2 + $0x13] sm:$0x1] %v1806
          %v1813 = vunpack.c.l.s4 1966171168
          %v1814 = vunpack.c.0.s8 %v1813
          %v1815 = vlaneseq
          %v1816 = vshrl.u32 %v1815, 7
          %v1817 = vsub.s32 %v1814, %v1816
          %v1818 = vrot.slane %v1691, %v1817
          %v1819 = vcombine.high %v1818, %v1818
          %v1821 = vunpack.c.l.s4 1966171168
          %v1822 = vunpack.c.0.s8 %v1821
          %v1823 = vlaneseq
          %v1824 = vshrl.u32 %v1823, 7
          %v1825 = vsub.s32 %v1822, %v1824
          %v1826 = vrot.slane %v1818, %v1825
          %v1828 = vunpack.c.l.s4 1966171168
          %v1829 = vunpack.c.0.s8 %v1828
          %v1830 = vlaneseq
          %v1831 = vshrl.u32 %v1830, 7
          %v1832 = vsub.s32 %v1829, %v1831
          %v1833 = vrot.slane %v1819, %v1832
          %1836 = vst [vmem:[#allocation2 + $0x4] sm:$0x1] %v1826
          %1837 = vst [vmem:[#allocation2 + $0x14] sm:$0x1] %v1833
          %v1840 = vunpack.c.l.s4 1966171168
          %v1841 = vunpack.c.0.s8 %v1840
          %v1842 = vlaneseq
          %v1843 = vshrl.u32 %v1842, 7
          %v1844 = vsub.s32 %v1841, %v1843
          %v1845 = vrot.slane %v1692, %v1844
          %v1846 = vcombine.high %v1845, %v1845
          %v1848 = vunpack.c.l.s4 1966171168
          %v1849 = vunpack.c.0.s8 %v1848
          %v1850 = vlaneseq
          %v1851 = vshrl.u32 %v1850, 7
          %v1852 = vsub.s32 %v1849, %v1851
          %v1853 = vrot.slane %v1845, %v1852
          %v1855 = vunpack.c.l.s4 1966171168
          %v1856 = vunpack.c.0.s8 %v1855
          %v1857 = vlaneseq
          %v1858 = vshrl.u32 %v1857, 7
          %v1859 = vsub.s32 %v1856, %v1858
          %v1860 = vrot.slane %v1846, %v1859
          %1863 = vst [vmem:[#allocation2 + $0x5] sm:$0x1] %v1853
          %1864 = vst [vmem:[#allocation2 + $0x15] sm:$0x1] %v1860
          %v1867 = vunpack.c.l.s4 1966171168
          %v1868 = vunpack.c.0.s8 %v1867
          %v1869 = vlaneseq
          %v1870 = vshrl.u32 %v1869, 7
          %v1871 = vsub.s32 %v1868, %v1870
          %v1872 = vrot.slane %v1693, %v1871
          %v1873 = vcombine.high %v1872, %v1872
          %v1875 = vunpack.c.l.s4 1966171168
          %v1876 = vunpack.c.0.s8 %v1875
          %v1877 = vlaneseq
          %v1878 = vshrl.u32 %v1877, 7
          %v1879 = vsub.s32 %v1876, %v1878
          %v1880 = vrot.slane %v1872, %v1879
          %v1882 = vunpack.c.l.s4 1966171168
          %v1883 = vunpack.c.0.s8 %v1882
          %v1884 = vlaneseq
          %v1885 = vshrl.u32 %v1884, 7
          %v1886 = vsub.s32 %v1883, %v1885
          %v1887 = vrot.slane %v1873, %v1886
          %1890 = vst [vmem:[#allocation2 + $0x6] sm:$0x1] %v1880
          %1891 = vst [vmem:[#allocation2 + $0x16] sm:$0x1] %v1887
          %v1894 = vunpack.c.l.s4 1966171168
          %v1895 = vunpack.c.0.s8 %v1894
          %v1896 = vlaneseq
          %v1897 = vshrl.u32 %v1896, 7
          %v1898 = vsub.s32 %v1895, %v1897
          %v1899 = vrot.slane %v1694, %v1898
          %v1900 = vcombine.high %v1899, %v1899
          %v1902 = vunpack.c.l.s4 1966171168
          %v1903 = vunpack.c.0.s8 %v1902
          %v1904 = vlaneseq
          %v1905 = vshrl.u32 %v1904, 7
          %v1906 = vsub.s32 %v1903, %v1905
          %v1907 = vrot.slane %v1899, %v1906
          %v1909 = vunpack.c.l.s4 1966171168
          %v1910 = vunpack.c.0.s8 %v1909
          %v1911 = vlaneseq
          %v1912 = vshrl.u32 %v1911, 7
          %v1913 = vsub.s32 %v1910, %v1912
          %v1914 = vrot.slane %v1900, %v1913
          %1917 = vst [vmem:[#allocation2 + $0x7] sm:$0x1] %v1907
          %1918 = vst [vmem:[#allocation2 + $0x17] sm:$0x1] %v1914
          %v1921 = vunpack.c.l.s4 1966171168
          %v1922 = vunpack.c.0.s8 %v1921
          %v1923 = vlaneseq
          %v1924 = vshrl.u32 %v1923, 7
          %v1925 = vsub.s32 %v1922, %v1924
          %v1926 = vrot.slane %v1695, %v1925
          %v1927 = vcombine.high %v1926, %v1926
          %v1929 = vunpack.c.l.s4 1966171168
          %v1930 = vunpack.c.0.s8 %v1929
          %v1931 = vlaneseq
          %v1932 = vshrl.u32 %v1931, 7
          %v1933 = vsub.s32 %v1930, %v1932
          %v1934 = vrot.slane %v1926, %v1933
          %v1936 = vunpack.c.l.s4 1966171168
          %v1937 = vunpack.c.0.s8 %v1936
          %v1938 = vlaneseq
          %v1939 = vshrl.u32 %v1938, 7
          %v1940 = vsub.s32 %v1937, %v1939
          %v1941 = vrot.slane %v1927, %v1940
          %1944 = vst [vmem:[#allocation2 + $0x8] sm:$0x1] %v1934
          %1945 = vst [vmem:[#allocation2 + $0x18] sm:$0x1] %v1941
          %v1948 = vunpack.c.l.s4 1966171168
          %v1949 = vunpack.c.0.s8 %v1948
          %v1950 = vlaneseq
          %v1951 = vshrl.u32 %v1950, 7
          %v1952 = vsub.s32 %v1949, %v1951
          %v1953 = vrot.slane %v1696, %v1952
          %v1954 = vcombine.high %v1953, %v1953
          %v1956 = vunpack.c.l.s4 1966171168
          %v1957 = vunpack.c.0.s8 %v1956
          %v1958 = vlaneseq
          %v1959 = vshrl.u32 %v1958, 7
          %v1960 = vsub.s32 %v1957, %v1959
          %v1961 = vrot.slane %v1953, %v1960
          %v1963 = vunpack.c.l.s4 1966171168
          %v1964 = vunpack.c.0.s8 %v1963
          %v1965 = vlaneseq
          %v1966 = vshrl.u32 %v1965, 7
          %v1967 = vsub.s32 %v1964, %v1966
          %v1968 = vrot.slane %v1954, %v1967
          %1971 = vst [vmem:[#allocation2 + $0x9] sm:$0x1] %v1961
          %1972 = vst [vmem:[#allocation2 + $0x19] sm:$0x1] %v1968
          %v1975 = vunpack.c.l.s4 1966171168
          %v1976 = vunpack.c.0.s8 %v1975
          %v1977 = vlaneseq
          %v1978 = vshrl.u32 %v1977, 7
          %v1979 = vsub.s32 %v1976, %v1978
          %v1980 = vrot.slane %v1697, %v1979
          %v1981 = vcombine.high %v1980, %v1980
          %v1983 = vunpack.c.l.s4 1966171168
          %v1984 = vunpack.c.0.s8 %v1983
          %v1985 = vlaneseq
          %v1986 = vshrl.u32 %v1985, 7
          %v1987 = vsub.s32 %v1984, %v1986
          %v1988 = vrot.slane %v1980, %v1987
          %v1990 = vunpack.c.l.s4 1966171168
          %v1991 = vunpack.c.0.s8 %v1990
          %v1992 = vlaneseq
          %v1993 = vshrl.u32 %v1992, 7
          %v1994 = vsub.s32 %v1991, %v1993
          %v1995 = vrot.slane %v1981, %v1994
          %1998 = vst [vmem:[#allocation2 + $0xa] sm:$0x1] %v1988
          %1999 = vst [vmem:[#allocation2 + $0x1a] sm:$0x1] %v1995
          %v2002 = vunpack.c.l.s4 1966171168
          %v2003 = vunpack.c.0.s8 %v2002
          %v2004 = vlaneseq
          %v2005 = vshrl.u32 %v2004, 7
          %v2006 = vsub.s32 %v2003, %v2005
          %v2007 = vrot.slane %v1698, %v2006
          %v2008 = vcombine.high %v2007, %v2007
          %v2010 = vunpack.c.l.s4 1966171168
          %v2011 = vunpack.c.0.s8 %v2010
          %v2012 = vlaneseq
          %v2013 = vshrl.u32 %v2012, 7
          %v2014 = vsub.s32 %v2011, %v2013
          %v2015 = vrot.slane %v2007, %v2014
          %v2017 = vunpack.c.l.s4 1966171168
          %v2018 = vunpack.c.0.s8 %v2017
          %v2019 = vlaneseq
          %v2020 = vshrl.u32 %v2019, 7
          %v2021 = vsub.s32 %v2018, %v2020
          %v2022 = vrot.slane %v2008, %v2021
          %2025 = vst [vmem:[#allocation2 + $0xb] sm:$0x1] %v2015
          %2026 = vst [vmem:[#allocation2 + $0x1b] sm:$0x1] %v2022
          %v2029 = vunpack.c.l.s4 1966171168
          %v2030 = vunpack.c.0.s8 %v2029
          %v2031 = vlaneseq
          %v2032 = vshrl.u32 %v2031, 7
          %v2033 = vsub.s32 %v2030, %v2032
          %v2034 = vrot.slane %v1699, %v2033
          %v2035 = vcombine.high %v2034, %v2034
          %v2037 = vunpack.c.l.s4 1966171168
          %v2038 = vunpack.c.0.s8 %v2037
          %v2039 = vlaneseq
          %v2040 = vshrl.u32 %v2039, 7
          %v2041 = vsub.s32 %v2038, %v2040
          %v2042 = vrot.slane %v2034, %v2041
          %v2044 = vunpack.c.l.s4 1966171168
          %v2045 = vunpack.c.0.s8 %v2044
          %v2046 = vlaneseq
          %v2047 = vshrl.u32 %v2046, 7
          %v2048 = vsub.s32 %v2045, %v2047
          %v2049 = vrot.slane %v2035, %v2048
          %2052 = vst [vmem:[#allocation2 + $0xc] sm:$0x1] %v2042
          %2053 = vst [vmem:[#allocation2 + $0x1c] sm:$0x1] %v2049
          %v2056 = vunpack.c.l.s4 1966171168
          %v2057 = vunpack.c.0.s8 %v2056
          %v2058 = vlaneseq
          %v2059 = vshrl.u32 %v2058, 7
          %v2060 = vsub.s32 %v2057, %v2059
          %v2061 = vrot.slane %v1700, %v2060
          %v2062 = vcombine.high %v2061, %v2061
          %v2064 = vunpack.c.l.s4 1966171168
          %v2065 = vunpack.c.0.s8 %v2064
          %v2066 = vlaneseq
          %v2067 = vshrl.u32 %v2066, 7
          %v2068 = vsub.s32 %v2065, %v2067
          %v2069 = vrot.slane %v2061, %v2068
          %v2071 = vunpack.c.l.s4 1966171168
          %v2072 = vunpack.c.0.s8 %v2071
          %v2073 = vlaneseq
          %v2074 = vshrl.u32 %v2073, 7
          %v2075 = vsub.s32 %v2072, %v2074
          %v2076 = vrot.slane %v2062, %v2075
          %2079 = vst [vmem:[#allocation2 + $0xd] sm:$0x1] %v2069
          %2080 = vst [vmem:[#allocation2 + $0x1d] sm:$0x1] %v2076
          %v2083 = vunpack.c.l.s4 1966171168
          %v2084 = vunpack.c.0.s8 %v2083
          %v2085 = vlaneseq
          %v2086 = vshrl.u32 %v2085, 7
          %v2087 = vsub.s32 %v2084, %v2086
          %v2088 = vrot.slane %v1701, %v2087
          %v2089 = vcombine.high %v2088, %v2088
          %v2091 = vunpack.c.l.s4 1966171168
          %v2092 = vunpack.c.0.s8 %v2091
          %v2093 = vlaneseq
          %v2094 = vshrl.u32 %v2093, 7
          %v2095 = vsub.s32 %v2092, %v2094
          %v2096 = vrot.slane %v2088, %v2095
          %v2098 = vunpack.c.l.s4 1966171168
          %v2099 = vunpack.c.0.s8 %v2098
          %v2100 = vlaneseq
          %v2101 = vshrl.u32 %v2100, 7
          %v2102 = vsub.s32 %v2099, %v2101
          %v2103 = vrot.slane %v2089, %v2102
          %2106 = vst [vmem:[#allocation2 + $0xe] sm:$0x1] %v2096
          %2107 = vst [vmem:[#allocation2 + $0x1e] sm:$0x1] %v2103
          %v2110 = vunpack.c.l.s4 1966171168
          %v2111 = vunpack.c.0.s8 %v2110
          %v2112 = vlaneseq
          %v2113 = vshrl.u32 %v2112, 7
          %v2114 = vsub.s32 %v2111, %v2113
          %v2115 = vrot.slane %v1702, %v2114
          %v2116 = vcombine.high %v2115, %v2115
          %v2118 = vunpack.c.l.s4 1966171168
          %v2119 = vunpack.c.0.s8 %v2118
          %v2120 = vlaneseq
          %v2121 = vshrl.u32 %v2120, 7
          %v2122 = vsub.s32 %v2119, %v2121
          %v2123 = vrot.slane %v2115, %v2122
          %v2125 = vunpack.c.l.s4 1966171168
          %v2126 = vunpack.c.0.s8 %v2125
          %v2127 = vlaneseq
          %v2128 = vshrl.u32 %v2127, 7
          %v2129 = vsub.s32 %v2126, %v2128
          %v2130 = vrot.slane %v2116, %v2129
          %2133 = vst [vmem:[#allocation2 + $0xf] sm:$0x1] %v2123
          %2134 = vst [vmem:[#allocation2 + $0x1f] sm:$0x1] %v2130
        $region92: #{spherical_cnn_forward.1} parent=59 // pred_fallthru
          _
        %v2135 = vld [vmem:[#allocation2] sm:$0xff]
        %v2136 = vld [vmem:[#allocation2 + $0x8] sm:$0xff]
        %v2137 = vld [vmem:[#allocation2 + $0x10] sm:$0xff]
        %v2138 = vld [vmem:[#allocation2 + $0x18] sm:$0xff]
        %v2139 = vld [vmem:[#allocation5] sm:$0xff]
        %v2140 = vld [vmem:[#allocation5 + $0x8] sm:$0xff]
        %v2141 = vld [vmem:[#allocation5 + $0x10] sm:$0xff]
        %v2142 = vld [vmem:[#allocation5 + $0x18] sm:$0xff]
        %v2143 = vld [vmem:[#allocation5 + $0x20] sm:$0xff]
        %v2144 = vld [vmem:[#allocation5 + $0x28] sm:$0xff]
        %v2145 = vld [vmem:[#allocation5 + $0x30] sm:$0xff]
        %v2146 = vld [vmem:[#allocation5 + $0x38] sm:$0xff]
        %v2147 = vld [vmem:[#allocation5 + $0x40] sm:$0xff]
        %v2148 = vld [vmem:[#allocation5 + $0x48] sm:$0xff]
        %v2149 = vld [vmem:[#allocation5 + $0x50] sm:$0xff]
        %v2150 = vld [vmem:[#allocation5 + $0x58] sm:$0xff]
        %v2151 = vld [vmem:[#allocation5 + $0x60] sm:$0xff]
        %v2152 = vld [vmem:[#allocation5 + $0x68] sm:$0xff]
        %v2153 = vld [vmem:[#allocation5 + $0x70] sm:$0xff]
        %v2154 = vld [vmem:[#allocation5 + $0x78] sm:$0xff]
        %v2155 = vld [vmem:[#allocation5 + $0x80] sm:$0xff]
        %v2156 = vld [vmem:[#allocation5 + $0x88] sm:$0xff]
        %v2157 = vld [vmem:[#allocation5 + $0x90] sm:$0xff]
        %v2158 = vld [vmem:[#allocation5 + $0x98] sm:$0xff]
        %v2159 = vld [vmem:[#allocation5 + $0xa0] sm:$0xff]
        %v2160 = vld [vmem:[#allocation5 + $0xa8] sm:$0xff]
        %v2161 = vld [vmem:[#allocation5 + $0xb0] sm:$0xff]
        %v2162 = vld [vmem:[#allocation5 + $0xb8] sm:$0xff]
        %v2163 = vld [vmem:[#allocation5 + $0xc0] sm:$0xff]
        %v2164 = vld [vmem:[#allocation5 + $0xc8] sm:$0xff]
        %v2165 = vld [vmem:[#allocation5 + $0xd0] sm:$0xff]
        %v2166 = vld [vmem:[#allocation5 + $0xd8] sm:$0xff]
        %v2167 = vld [vmem:[#allocation5 + $0xe0] sm:$0xff]
        %v2168 = vld [vmem:[#allocation5 + $0xe8] sm:$0xff]
        %v2169 = vld [vmem:[#allocation5 + $0xf0] sm:$0xff]
        %v2170 = vld [vmem:[#allocation5 + $0xf8] sm:$0xff]
        %2171 = vmatprep.subr.mxu0 %v2170
        %2172 = vmatpush1.msra.mxu0 %v2169
        %2173 = vmatprep.subr.mxu0 %v2168
        %2174 = vmatpush1.msra.mxu0 %v2167
        %2175 = vmatprep.subr.mxu0 %v2166
        %2176 = vmatpush1.msra.mxu0 %v2165
        %2177 = vmatprep.subr.mxu0 %v2164
        %2178 = vmatpush1.msra.mxu0 %v2163
        %2179 = vmatprep.subr.mxu0 %v2162
        %2180 = vmatpush1.msra.mxu0 %v2161
        %2181 = vmatprep.subr.mxu0 %v2160
        %2182 = vmatpush1.msra.mxu0 %v2159
        %2183 = vmatprep.subr.mxu0 %v2158
        %2184 = vmatpush1.msra.mxu0 %v2157
        %2185 = vmatprep.subr.mxu0 %v2156
        %2186 = vmatpush1.msra.mxu0 %v2155
        %2187 = vmatprep.subr.mxu0 %v2154
        %2188 = vmatpush1.msra.mxu0 %v2153
        %2189 = vmatprep.subr.mxu0 %v2152
        %2190 = vmatpush1.msra.mxu0 %v2151
        %2191 = vmatprep.subr.mxu0 %v2150
        %2192 = vmatpush1.msra.mxu0 %v2149
        %2193 = vmatprep.subr.mxu0 %v2148
        %2194 = vmatpush1.msra.mxu0 %v2147
        %2195 = vmatprep.subr.mxu0 %v2146
        %2196 = vmatpush1.msra.mxu0 %v2145
        %2197 = vmatprep.subr.mxu0 %v2144
        %2198 = vmatpush1.msra.mxu0 %v2143
        %2199 = vmatprep.subr.mxu0 %v2142
        %2200 = vmatpush1.msra.mxu0 %v2141
        %2201 = vmatprep.subr.mxu0 %v2140
        %2202 = vmatpush1.msra.mxu0 %v2139
        %2203 = vmatprep.subr.mxu0 0.0
        %2204 = vmatpush2.msra.mxu0 0.0
        %2205 = vmatprep.subr.mxu0 0.0
        %2206 = vmatpush2.msra.mxu0 0.0
        %2207 = vmatprep.subr.mxu0 0.0
        %2208 = vmatpush2.msra.mxu0 0.0
        %2209 = vmatprep.subr.mxu0 0.0
        %2210 = vmatpush2.msra.mxu0 0.0
        %2211 = vmatprep.subr.mxu0 0.0
        %2212 = vmatpush2.msra.mxu0 0.0
        %2213 = vmatprep.subr.mxu0 0.0
        %2214 = vmatpush2.msra.mxu0 0.0
        %2215 = vmatprep.subr.mxu0 0.0
        %2216 = vmatpush2.msra.mxu0 0.0
        %2217 = vmatprep.subr.mxu0 0.0
        %2218 = vmatpush2.msra.mxu0 0.0
        %2219 = vmatprep.subr.mxu0 0.0
        %2220 = vmatpush2.msra.mxu0 0.0
        %2221 = vmatprep.subr.mxu0 0.0
        %2222 = vmatpush2.msra.mxu0 0.0
        %2223 = vmatprep.subr.mxu0 0.0
        %2224 = vmatpush2.msra.mxu0 0.0
        %2225 = vmatprep.subr.mxu0 0.0
        %2226 = vmatpush2.msra.mxu0 0.0
        %2227 = vmatprep.subr.mxu0 0.0
        %2228 = vmatpush2.msra.mxu0 0.0
        %2229 = vmatprep.subr.mxu0 0.0
        %2230 = vmatpush2.msra.mxu0 0.0
        %2231 = vmatprep.subr.mxu0 0.0
        %2232 = vmatpush2.msra.mxu0 0.0
        %2233 = vmatprep.subr.mxu0 0.0
        %2234 = vmatpush2.msra.mxu0 0.0
        %2235 = vmatprep.mubr.f32.mxu0 0.0
        %2236 = vmatmul.mubr.f32.gmra.mxu0 %v2135
        %v2237 = vpop.f32.mrf.mxu0
        %v2238 = vadd.f32 0.0, %v2237
        %v2239 = vpop.f32.mrf.mxu0
        %v2240 = vadd.f32 0.0, %v2239
        %2241 = vmatprep.mubr.f32.mxu0 0.0
        %2242 = vmatmul.mubr.f32.gmra.mxu0 %v2136
        %v2243 = vpop.f32.mrf.mxu0
        %v2244 = vadd.f32 0.0, %v2243
        %v2245 = vpop.f32.mrf.mxu0
        %v2246 = vadd.f32 0.0, %v2245
        %2247 = vmatprep.mubr.f32.mxu0 0.0
        %2248 = vmatmul.mubr.f32.gmra.mxu0 %v2137
        %v2249 = vpop.f32.mrf.mxu0
        %v2250 = vadd.f32 0.0, %v2249
        %v2251 = vpop.f32.mrf.mxu0
        %v2252 = vadd.f32 0.0, %v2251
        %2253 = vmatprep.mubr.f32.mxu0 0.0
        %2254 = vmatmul.mubr.f32.gmra.mxu0 %v2138
        %v2255 = vpop.f32.mrf.mxu0
        %v2256 = vadd.f32 0.0, %v2255
        %v2257 = vpop.f32.mrf.mxu0
        %v2258 = vadd.f32 0.0, %v2257
        %2259 = vdwg.mxu0
        %v2260 = vld [vmem:[%s436] sm:$0xff]
        %v2261 = vld [vmem:[%s436 + $0x8] sm:$0xff]
        %v2262 = vunpack.c.l.bf16 %v2260
        %v2263 = vunpack.c.h.bf16 %v2260
        %v2264 = vunpack.c.l.bf16 %v2261
        %v2265 = vunpack.c.h.bf16 %v2261
        %v2266 = vld [vmem:[%s445] sm:$0xff]
        %v2267 = vld [vmem:[%s445 + $0x8] sm:$0xff]
        %v2268 = vunpack.c.l.bf16 %v2266
        %v2269 = vunpack.c.h.bf16 %v2266
        %v2270 = vunpack.c.l.bf16 %v2267
        %v2271 = vunpack.c.h.bf16 %v2267
        %v2272 = vlaneseq
        %v2273 = vshrl.u32 %v2272, 7
        %v2274 = vsub.s32 0, %v2273
        %v2275 = vrot.slane %v2238, %v2274
        %v2276 = vlaneseq
        %v2277 = vshrl.u32 %v2276, 7
        %v2278 = vsub.s32 0, %v2277
        %v2279 = vrot.slane %v2240, %v2278
        %v2280 = vlaneseq
        %v2281 = vshrl.u32 %v2280, 7
        %v2282 = vsub.s32 0, %v2281
        %v2283 = vrot.slane %v2250, %v2282
        %v2284 = vlaneseq
        %v2285 = vshrl.u32 %v2284, 7
        %v2286 = vsub.s32 0, %v2285
        %v2287 = vrot.slane %v2252, %v2286
        %v2288 = vmul.f32 %v2262, %v2275
        %v2289 = vmul.f32 %v2263, %v2279
        %v2290 = vmul.f32 %v2264, %v2275
        %v2291 = vmul.f32 %v2265, %v2279
        %v2292 = vmul.f32 %v2262, %v2283
        %v2293 = vmul.f32 %v2263, %v2287
        %v2294 = vmul.f32 %v2264, %v2283
        %v2295 = vmul.f32 %v2265, %v2287
        %v2296 = vmul.f32 %v2268, %v2279
        %v2297 = vmul.f32 %v2269, %v2275
        %v2298 = vmul.f32 %v2270, %v2279
        %v2299 = vmul.f32 %v2271, %v2275
        %v2300 = vmul.f32 %v2268, %v2287
        %v2301 = vmul.f32 %v2269, %v2283
        %v2302 = vmul.f32 %v2270, %v2287
        %v2303 = vmul.f32 %v2271, %v2283
        %v2304 = vadd.f32 %v2288, %v2296
        %v2305 = vadd.f32 %v2289, %v2297
        %v2306 = vadd.f32 %v2290, %v2298
        %v2307 = vadd.f32 %v2291, %v2299
        %v2308 = vadd.f32 %v2292, %v2300
        %v2309 = vadd.f32 %v2293, %v2301
        %v2310 = vadd.f32 %v2294, %v2302
        %v2311 = vadd.f32 %v2295, %v2303
        %v2312 = vadd.f32 %v2304, 0.0
        %v2313 = vadd.f32 %v2305, 0.0
        %v2314 = vadd.f32 %v2306, 0.0
        %v2315 = vadd.f32 %v2307, 0.0
        %v2316 = vadd.f32 %v2308, 0.0
        %v2317 = vadd.f32 %v2309, 0.0
        %v2318 = vadd.f32 %v2310, 0.0
        %v2319 = vadd.f32 %v2311, 0.0
        %s2320 = scalar_lea.vmem %s436, 16 [#allocation8]
        %v2321 = vld [vmem:[%s2320] sm:$0xff]
        %v2322 = vld [vmem:[%s2320 + $0x8] sm:$0xff]
        %v2323 = vunpack.c.l.bf16 %v2321
        %v2324 = vunpack.c.h.bf16 %v2321
        %v2325 = vunpack.c.l.bf16 %v2322
        %v2326 = vunpack.c.h.bf16 %v2322
        %s2327 = scalar_lea.vmem %s445, 16 [#allocation10]
        %v2328 = vld [vmem:[%s2327] sm:$0xff]
        %v2329 = vld [vmem:[%s2327 + $0x8] sm:$0xff]
        %v2330 = vunpack.c.l.bf16 %v2328
        %v2331 = vunpack.c.h.bf16 %v2328
        %v2332 = vunpack.c.l.bf16 %v2329
        %v2333 = vunpack.c.h.bf16 %v2329
        %v2334 = vlaneseq
        %v2335 = vshrl.u32 %v2334, 7
        %v2336 = vsub.s32 1, %v2335
        %v2337 = vrot.slane %v2238, %v2336
        %v2338 = vlaneseq
        %v2339 = vshrl.u32 %v2338, 7
        %v2340 = vsub.s32 1, %v2339
        %v2341 = vrot.slane %v2240, %v2340
        %v2342 = vlaneseq
        %v2343 = vshrl.u32 %v2342, 7
        %v2344 = vsub.s32 1, %v2343
        %v2345 = vrot.slane %v2250, %v2344
        %v2346 = vlaneseq
        %v2347 = vshrl.u32 %v2346, 7
        %v2348 = vsub.s32 1, %v2347
        %v2349 = vrot.slane %v2252, %v2348
        %v2350 = vmul.f32 %v2323, %v2337
        %v2351 = vmul.f32 %v2324, %v2341
        %v2352 = vmul.f32 %v2325, %v2337
        %v2353 = vmul.f32 %v2326, %v2341
        %v2354 = vmul.f32 %v2323, %v2345
        %v2355 = vmul.f32 %v2324, %v2349
        %v2356 = vmul.f32 %v2325, %v2345
        %v2357 = vmul.f32 %v2326, %v2349
        %v2358 = vmul.f32 %v2330, %v2341
        %v2359 = vmul.f32 %v2331, %v2337
        %v2360 = vmul.f32 %v2332, %v2341
        %v2361 = vmul.f32 %v2333, %v2337
        %v2362 = vmul.f32 %v2330, %v2349
        %v2363 = vmul.f32 %v2331, %v2345
        %v2364 = vmul.f32 %v2332, %v2349
        %v2365 = vmul.f32 %v2333, %v2345
        %v2366 = vadd.f32 %v2350, %v2358
        %v2367 = vadd.f32 %v2351, %v2359
        %v2368 = vadd.f32 %v2352, %v2360
        %v2369 = vadd.f32 %v2353, %v2361
        %v2370 = vadd.f32 %v2354, %v2362
        %v2371 = vadd.f32 %v2355, %v2363
        %v2372 = vadd.f32 %v2356, %v2364
        %v2373 = vadd.f32 %v2357, %v2365
        %v2374 = vadd.f32 %v2366, 0.0
        %v2375 = vadd.f32 %v2367, 0.0
        %v2376 = vadd.f32 %v2368, 0.0
        %v2377 = vadd.f32 %v2369, 0.0
        %v2378 = vadd.f32 %v2370, 0.0
        %v2379 = vadd.f32 %v2371, 0.0
        %v2380 = vadd.f32 %v2372, 0.0
        %v2381 = vadd.f32 %v2373, 0.0
        %s2382 = scalar_lea.vmem %s436, 32 [#allocation8]
        %v2383 = vld [vmem:[%s2382] sm:$0xff]
        %v2384 = vld [vmem:[%s2382 + $0x8] sm:$0xff]
        %v2385 = vunpack.c.l.bf16 %v2383
        %v2386 = vunpack.c.h.bf16 %v2383
        %v2387 = vunpack.c.l.bf16 %v2384
        %v2388 = vunpack.c.h.bf16 %v2384
        %s2389 = scalar_lea.vmem %s445, 32 [#allocation10]
        %v2390 = vld [vmem:[%s2389] sm:$0xff]
        %v2391 = vld [vmem:[%s2389 + $0x8] sm:$0xff]
        %v2392 = vunpack.c.l.bf16 %v2390
        %v2393 = vunpack.c.h.bf16 %v2390
        %v2394 = vunpack.c.l.bf16 %v2391
        %v2395 = vunpack.c.h.bf16 %v2391
        %v2396 = vlaneseq
        %v2397 = vshrl.u32 %v2396, 7
        %v2398 = vsub.s32 2, %v2397
        %v2399 = vrot.slane %v2238, %v2398
        %v2400 = vlaneseq
        %v2401 = vshrl.u32 %v2400, 7
        %v2402 = vsub.s32 2, %v2401
        %v2403 = vrot.slane %v2240, %v2402
        %v2404 = vlaneseq
        %v2405 = vshrl.u32 %v2404, 7
        %v2406 = vsub.s32 2, %v2405
        %v2407 = vrot.slane %v2250, %v2406
        %v2408 = vlaneseq
        %v2409 = vshrl.u32 %v2408, 7
        %v2410 = vsub.s32 2, %v2409
        %v2411 = vrot.slane %v2252, %v2410
        %v2412 = vmul.f32 %v2385, %v2399
        %v2413 = vmul.f32 %v2386, %v2403
        %v2414 = vmul.f32 %v2387, %v2399
        %v2415 = vmul.f32 %v2388, %v2403
        %v2416 = vmul.f32 %v2385, %v2407
        %v2417 = vmul.f32 %v2386, %v2411
        %v2418 = vmul.f32 %v2387, %v2407
        %v2419 = vmul.f32 %v2388, %v2411
        %v2420 = vmul.f32 %v2392, %v2403
        %v2421 = vmul.f32 %v2393, %v2399
        %v2422 = vmul.f32 %v2394, %v2403
        %v2423 = vmul.f32 %v2395, %v2399
        %v2424 = vmul.f32 %v2392, %v2411
        %v2425 = vmul.f32 %v2393, %v2407
        %v2426 = vmul.f32 %v2394, %v2411
        %v2427 = vmul.f32 %v2395, %v2407
        %v2428 = vadd.f32 %v2412, %v2420
        %v2429 = vadd.f32 %v2413, %v2421
        %v2430 = vadd.f32 %v2414, %v2422
        %v2431 = vadd.f32 %v2415, %v2423
        %v2432 = vadd.f32 %v2416, %v2424
        %v2433 = vadd.f32 %v2417, %v2425
        %v2434 = vadd.f32 %v2418, %v2426
        %v2435 = vadd.f32 %v2419, %v2427
        %v2436 = vadd.f32 %v2312, %v2428
        %v2437 = vadd.f32 %v2313, %v2429
        %v2438 = vadd.f32 %v2314, %v2430
        %v2439 = vadd.f32 %v2315, %v2431
        %v2440 = vadd.f32 %v2316, %v2432
        %v2441 = vadd.f32 %v2317, %v2433
        %v2442 = vadd.f32 %v2318, %v2434
        %v2443 = vadd.f32 %v2319, %v2435
        %s2444 = scalar_lea.vmem %s436, 48 [#allocation8]
        %v2445 = vld [vmem:[%s2444] sm:$0xff]
        %v2446 = vld [vmem:[%s2444 + $0x8] sm:$0xff]
        %v2447 = vunpack.c.l.bf16 %v2445
        %v2448 = vunpack.c.h.bf16 %v2445
        %v2449 = vunpack.c.l.bf16 %v2446
        %v2450 = vunpack.c.h.bf16 %v2446
        %s2451 = scalar_lea.vmem %s445, 48 [#allocation10]
        %v2452 = vld [vmem:[%s2451] sm:$0xff]
        %v2453 = vld [vmem:[%s2451 + $0x8] sm:$0xff]
        %v2454 = vunpack.c.l.bf16 %v2452
        %v2455 = vunpack.c.h.bf16 %v2452
        %v2456 = vunpack.c.l.bf16 %v2453
        %v2457 = vunpack.c.h.bf16 %v2453
        %v2458 = vlaneseq
        %v2459 = vshrl.u32 %v2458, 7
        %v2460 = vsub.s32 3, %v2459
        %v2461 = vrot.slane %v2238, %v2460
        %v2462 = vlaneseq
        %v2463 = vshrl.u32 %v2462, 7
        %v2464 = vsub.s32 3, %v2463
        %v2465 = vrot.slane %v2240, %v2464
        %v2466 = vlaneseq
        %v2467 = vshrl.u32 %v2466, 7
        %v2468 = vsub.s32 3, %v2467
        %v2469 = vrot.slane %v2250, %v2468
        %v2470 = vlaneseq
        %v2471 = vshrl.u32 %v2470, 7
        %v2472 = vsub.s32 3, %v2471
        %v2473 = vrot.slane %v2252, %v2472
        %v2474 = vmul.f32 %v2447, %v2461
        %v2475 = vmul.f32 %v2448, %v2465
        %v2476 = vmul.f32 %v2449, %v2461
        %v2477 = vmul.f32 %v2450, %v2465
        %v2478 = vmul.f32 %v2447, %v2469
        %v2479 = vmul.f32 %v2448, %v2473
        %v2480 = vmul.f32 %v2449, %v2469
        %v2481 = vmul.f32 %v2450, %v2473
        %v2482 = vmul.f32 %v2454, %v2465
        %v2483 = vmul.f32 %v2455, %v2461
        %v2484 = vmul.f32 %v2456, %v2465
        %v2485 = vmul.f32 %v2457, %v2461
        %v2486 = vmul.f32 %v2454, %v2473
        %v2487 = vmul.f32 %v2455, %v2469
        %v2488 = vmul.f32 %v2456, %v2473
        %v2489 = vmul.f32 %v2457, %v2469
        %v2490 = vadd.f32 %v2474, %v2482
        %v2491 = vadd.f32 %v2475, %v2483
        %v2492 = vadd.f32 %v2476, %v2484
        %v2493 = vadd.f32 %v2477, %v2485
        %v2494 = vadd.f32 %v2478, %v2486
        %v2495 = vadd.f32 %v2479, %v2487
        %v2496 = vadd.f32 %v2480, %v2488
        %v2497 = vadd.f32 %v2481, %v2489
        %v2498 = vadd.f32 %v2374, %v2490
        %v2499 = vadd.f32 %v2375, %v2491
        %v2500 = vadd.f32 %v2376, %v2492
        %v2501 = vadd.f32 %v2377, %v2493
        %v2502 = vadd.f32 %v2378, %v2494
        %v2503 = vadd.f32 %v2379, %v2495
        %v2504 = vadd.f32 %v2380, %v2496
        %v2505 = vadd.f32 %v2381, %v2497
        %s2506 = scalar_lea.vmem %s436, 64 [#allocation8]
        %v2507 = vld [vmem:[%s2506] sm:$0xff]
        %v2508 = vld [vmem:[%s2506 + $0x8] sm:$0xff]
        %v2509 = vunpack.c.l.bf16 %v2507
        %v2510 = vunpack.c.h.bf16 %v2507
        %v2511 = vunpack.c.l.bf16 %v2508
        %v2512 = vunpack.c.h.bf16 %v2508
        %s2513 = scalar_lea.vmem %s445, 64 [#allocation10]
        %v2514 = vld [vmem:[%s2513] sm:$0xff]
        %v2515 = vld [vmem:[%s2513 + $0x8] sm:$0xff]
        %v2516 = vunpack.c.l.bf16 %v2514
        %v2517 = vunpack.c.h.bf16 %v2514
        %v2518 = vunpack.c.l.bf16 %v2515
        %v2519 = vunpack.c.h.bf16 %v2515
        %v2520 = vlaneseq
        %v2521 = vshrl.u32 %v2520, 7
        %v2522 = vsub.s32 4, %v2521
        %v2523 = vrot.slane %v2238, %v2522
        %v2524 = vlaneseq
        %v2525 = vshrl.u32 %v2524, 7
        %v2526 = vsub.s32 4, %v2525
        %v2527 = vrot.slane %v2240, %v2526
        %v2528 = vlaneseq
        %v2529 = vshrl.u32 %v2528, 7
        %v2530 = vsub.s32 4, %v2529
        %v2531 = vrot.slane %v2250, %v2530
        %v2532 = vlaneseq
        %v2533 = vshrl.u32 %v2532, 7
        %v2534 = vsub.s32 4, %v2533
        %v2535 = vrot.slane %v2252, %v2534
        %v2536 = vmul.f32 %v2509, %v2523
        %v2537 = vmul.f32 %v2510, %v2527
        %v2538 = vmul.f32 %v2511, %v2523
        %v2539 = vmul.f32 %v2512, %v2527
        %v2540 = vmul.f32 %v2509, %v2531
        %v2541 = vmul.f32 %v2510, %v2535
        %v2542 = vmul.f32 %v2511, %v2531
        %v2543 = vmul.f32 %v2512, %v2535
        %v2544 = vmul.f32 %v2516, %v2527
        %v2545 = vmul.f32 %v2517, %v2523
        %v2546 = vmul.f32 %v2518, %v2527
        %v2547 = vmul.f32 %v2519, %v2523
        %v2548 = vmul.f32 %v2516, %v2535
        %v2549 = vmul.f32 %v2517, %v2531
        %v2550 = vmul.f32 %v2518, %v2535
        %v2551 = vmul.f32 %v2519, %v2531
        %v2552 = vadd.f32 %v2536, %v2544
        %v2553 = vadd.f32 %v2537, %v2545
        %v2554 = vadd.f32 %v2538, %v2546
        %v2555 = vadd.f32 %v2539, %v2547
        %v2556 = vadd.f32 %v2540, %v2548
        %v2557 = vadd.f32 %v2541, %v2549
        %v2558 = vadd.f32 %v2542, %v2550
        %v2559 = vadd.f32 %v2543, %v2551
        %v2560 = vadd.f32 %v2436, %v2552
        %v2561 = vadd.f32 %v2437, %v2553
        %v2562 = vadd.f32 %v2438, %v2554
        %v2563 = vadd.f32 %v2439, %v2555
        %v2564 = vadd.f32 %v2440, %v2556
        %v2565 = vadd.f32 %v2441, %v2557
        %v2566 = vadd.f32 %v2442, %v2558
        %v2567 = vadd.f32 %v2443, %v2559
        %s2568 = scalar_lea.vmem %s436, 80 [#allocation8]
        %v2569 = vld [vmem:[%s2568] sm:$0xff]
        %v2570 = vld [vmem:[%s2568 + $0x8] sm:$0xff]
        %v2571 = vunpack.c.l.bf16 %v2569
        %v2572 = vunpack.c.h.bf16 %v2569
        %v2573 = vunpack.c.l.bf16 %v2570
        %v2574 = vunpack.c.h.bf16 %v2570
        %s2575 = scalar_lea.vmem %s445, 80 [#allocation10]
        %v2576 = vld [vmem:[%s2575] sm:$0xff]
        %v2577 = vld [vmem:[%s2575 + $0x8] sm:$0xff]
        %v2578 = vunpack.c.l.bf16 %v2576
        %v2579 = vunpack.c.h.bf16 %v2576
        %v2580 = vunpack.c.l.bf16 %v2577
        %v2581 = vunpack.c.h.bf16 %v2577
        %v2582 = vlaneseq
        %v2583 = vshrl.u32 %v2582, 7
        %v2584 = vsub.s32 5, %v2583
        %v2585 = vrot.slane %v2238, %v2584
        %v2586 = vlaneseq
        %v2587 = vshrl.u32 %v2586, 7
        %v2588 = vsub.s32 5, %v2587
        %v2589 = vrot.slane %v2240, %v2588
        %v2590 = vlaneseq
        %v2591 = vshrl.u32 %v2590, 7
        %v2592 = vsub.s32 5, %v2591
        %v2593 = vrot.slane %v2250, %v2592
        %v2594 = vlaneseq
        %v2595 = vshrl.u32 %v2594, 7
        %v2596 = vsub.s32 5, %v2595
        %v2597 = vrot.slane %v2252, %v2596
        %v2598 = vmul.f32 %v2571, %v2585
        %v2599 = vmul.f32 %v2572, %v2589
        %v2600 = vmul.f32 %v2573, %v2585
        %v2601 = vmul.f32 %v2574, %v2589
        %v2602 = vmul.f32 %v2571, %v2593
        %v2603 = vmul.f32 %v2572, %v2597
        %v2604 = vmul.f32 %v2573, %v2593
        %v2605 = vmul.f32 %v2574, %v2597
        %v2606 = vmul.f32 %v2578, %v2589
        %v2607 = vmul.f32 %v2579, %v2585
        %v2608 = vmul.f32 %v2580, %v2589
        %v2609 = vmul.f32 %v2581, %v2585
        %v2610 = vmul.f32 %v2578, %v2597
        %v2611 = vmul.f32 %v2579, %v2593
        %v2612 = vmul.f32 %v2580, %v2597
        %v2613 = vmul.f32 %v2581, %v2593
        %v2614 = vadd.f32 %v2598, %v2606
        %v2615 = vadd.f32 %v2599, %v2607
        %v2616 = vadd.f32 %v2600, %v2608
        %v2617 = vadd.f32 %v2601, %v2609
        %v2618 = vadd.f32 %v2602, %v2610
        %v2619 = vadd.f32 %v2603, %v2611
        %v2620 = vadd.f32 %v2604, %v2612
        %v2621 = vadd.f32 %v2605, %v2613
        %v2622 = vadd.f32 %v2498, %v2614
        %v2623 = vadd.f32 %v2499, %v2615
        %v2624 = vadd.f32 %v2500, %v2616
        %v2625 = vadd.f32 %v2501, %v2617
        %v2626 = vadd.f32 %v2502, %v2618
        %v2627 = vadd.f32 %v2503, %v2619
        %v2628 = vadd.f32 %v2504, %v2620
        %v2629 = vadd.f32 %v2505, %v2621
        %s2630 = scalar_lea.vmem %s436, 96 [#allocation8]
        %v2631 = vld [vmem:[%s2630] sm:$0xff]
        %v2632 = vld [vmem:[%s2630 + $0x8] sm:$0xff]
        %v2633 = vunpack.c.l.bf16 %v2631
        %v2634 = vunpack.c.h.bf16 %v2631
        %v2635 = vunpack.c.l.bf16 %v2632
        %v2636 = vunpack.c.h.bf16 %v2632
        %s2637 = scalar_lea.vmem %s445, 96 [#allocation10]
        %v2638 = vld [vmem:[%s2637] sm:$0xff]
        %v2639 = vld [vmem:[%s2637 + $0x8] sm:$0xff]
        %v2640 = vunpack.c.l.bf16 %v2638
        %v2641 = vunpack.c.h.bf16 %v2638
        %v2642 = vunpack.c.l.bf16 %v2639
        %v2643 = vunpack.c.h.bf16 %v2639
        %v2644 = vlaneseq
        %v2645 = vshrl.u32 %v2644, 7
        %v2646 = vsub.s32 6, %v2645
        %v2647 = vrot.slane %v2238, %v2646
        %v2648 = vlaneseq
        %v2649 = vshrl.u32 %v2648, 7
        %v2650 = vsub.s32 6, %v2649
        %v2651 = vrot.slane %v2240, %v2650
        %v2652 = vlaneseq
        %v2653 = vshrl.u32 %v2652, 7
        %v2654 = vsub.s32 6, %v2653
        %v2655 = vrot.slane %v2250, %v2654
        %v2656 = vlaneseq
        %v2657 = vshrl.u32 %v2656, 7
        %v2658 = vsub.s32 6, %v2657
        %v2659 = vrot.slane %v2252, %v2658
        %v2660 = vmul.f32 %v2633, %v2647
        %v2661 = vmul.f32 %v2634, %v2651
        %v2662 = vmul.f32 %v2635, %v2647
        %v2663 = vmul.f32 %v2636, %v2651
        %v2664 = vmul.f32 %v2633, %v2655
        %v2665 = vmul.f32 %v2634, %v2659
        %v2666 = vmul.f32 %v2635, %v2655
        %v2667 = vmul.f32 %v2636, %v2659
        %v2668 = vmul.f32 %v2640, %v2651
        %v2669 = vmul.f32 %v2641, %v2647
        %v2670 = vmul.f32 %v2642, %v2651
        %v2671 = vmul.f32 %v2643, %v2647
        %v2672 = vmul.f32 %v2640, %v2659
        %v2673 = vmul.f32 %v2641, %v2655
        %v2674 = vmul.f32 %v2642, %v2659
        %v2675 = vmul.f32 %v2643, %v2655
        %v2676 = vadd.f32 %v2660, %v2668
        %v2677 = vadd.f32 %v2661, %v2669
        %v2678 = vadd.f32 %v2662, %v2670
        %v2679 = vadd.f32 %v2663, %v2671
        %v2680 = vadd.f32 %v2664, %v2672
        %v2681 = vadd.f32 %v2665, %v2673
        %v2682 = vadd.f32 %v2666, %v2674
        %v2683 = vadd.f32 %v2667, %v2675
        %v2684 = vadd.f32 %v2560, %v2676
        %v2685 = vadd.f32 %v2561, %v2677
        %v2686 = vadd.f32 %v2562, %v2678
        %v2687 = vadd.f32 %v2563, %v2679
        %v2688 = vadd.f32 %v2564, %v2680
        %v2689 = vadd.f32 %v2565, %v2681
        %v2690 = vadd.f32 %v2566, %v2682
        %v2691 = vadd.f32 %v2567, %v2683
        %s2692 = scalar_lea.vmem %s436, 112 [#allocation8]
        %v2693 = vld [vmem:[%s2692] sm:$0xff]
        %v2694 = vld [vmem:[%s2692 + $0x8] sm:$0xff]
        %v2695 = vunpack.c.l.bf16 %v2693
        %v2696 = vunpack.c.h.bf16 %v2693
        %v2697 = vunpack.c.l.bf16 %v2694
        %v2698 = vunpack.c.h.bf16 %v2694
        %s2699 = scalar_lea.vmem %s445, 112 [#allocation10]
        %v2700 = vld [vmem:[%s2699] sm:$0xff]
        %v2701 = vld [vmem:[%s2699 + $0x8] sm:$0xff]
        %v2702 = vunpack.c.l.bf16 %v2700
        %v2703 = vunpack.c.h.bf16 %v2700
        %v2704 = vunpack.c.l.bf16 %v2701
        %v2705 = vunpack.c.h.bf16 %v2701
        %v2706 = vlaneseq
        %v2707 = vshrl.u32 %v2706, 7
        %v2708 = vsub.s32 7, %v2707
        %v2709 = vrot.slane %v2238, %v2708
        %v2710 = vlaneseq
        %v2711 = vshrl.u32 %v2710, 7
        %v2712 = vsub.s32 7, %v2711
        %v2713 = vrot.slane %v2240, %v2712
        %v2714 = vlaneseq
        %v2715 = vshrl.u32 %v2714, 7
        %v2716 = vsub.s32 7, %v2715
        %v2717 = vrot.slane %v2250, %v2716
        %v2718 = vlaneseq
        %v2719 = vshrl.u32 %v2718, 7
        %v2720 = vsub.s32 7, %v2719
        %v2721 = vrot.slane %v2252, %v2720
        %v2722 = vmul.f32 %v2695, %v2709
        %v2723 = vmul.f32 %v2696, %v2713
        %v2724 = vmul.f32 %v2697, %v2709
        %v2725 = vmul.f32 %v2698, %v2713
        %v2726 = vmul.f32 %v2695, %v2717
        %v2727 = vmul.f32 %v2696, %v2721
        %v2728 = vmul.f32 %v2697, %v2717
        %v2729 = vmul.f32 %v2698, %v2721
        %v2730 = vmul.f32 %v2702, %v2713
        %v2731 = vmul.f32 %v2703, %v2709
        %v2732 = vmul.f32 %v2704, %v2713
        %v2733 = vmul.f32 %v2705, %v2709
        %v2734 = vmul.f32 %v2702, %v2721
        %v2735 = vmul.f32 %v2703, %v2717
        %v2736 = vmul.f32 %v2704, %v2721
        %v2737 = vmul.f32 %v2705, %v2717
        %v2738 = vadd.f32 %v2722, %v2730
        %v2739 = vadd.f32 %v2723, %v2731
        %v2740 = vadd.f32 %v2724, %v2732
        %v2741 = vadd.f32 %v2725, %v2733
        %v2742 = vadd.f32 %v2726, %v2734
        %v2743 = vadd.f32 %v2727, %v2735
        %v2744 = vadd.f32 %v2728, %v2736
        %v2745 = vadd.f32 %v2729, %v2737
        %v2746 = vadd.f32 %v2622, %v2738
        %v2747 = vadd.f32 %v2623, %v2739
        %v2748 = vadd.f32 %v2624, %v2740
        %v2749 = vadd.f32 %v2625, %v2741
        %v2750 = vadd.f32 %v2626, %v2742
        %v2751 = vadd.f32 %v2627, %v2743
        %v2752 = vadd.f32 %v2628, %v2744
        %v2753 = vadd.f32 %v2629, %v2745
        %s2754 = scalar_lea.vmem %s436, 128 [#allocation8]
        %v2755 = vld [vmem:[%s2754] sm:$0xff]
        %v2756 = vld [vmem:[%s2754 + $0x8] sm:$0xff]
        %v2757 = vunpack.c.l.bf16 %v2755
        %v2758 = vunpack.c.h.bf16 %v2755
        %v2759 = vunpack.c.l.bf16 %v2756
        %v2760 = vunpack.c.h.bf16 %v2756
        %s2761 = scalar_lea.vmem %s445, 128 [#allocation10]
        %v2762 = vld [vmem:[%s2761] sm:$0xff]
        %v2763 = vld [vmem:[%s2761 + $0x8] sm:$0xff]
        %v2764 = vunpack.c.l.bf16 %v2762
        %v2765 = vunpack.c.h.bf16 %v2762
        %v2766 = vunpack.c.l.bf16 %v2763
        %v2767 = vunpack.c.h.bf16 %v2763
        %v2768 = vlaneseq
        %v2769 = vshrl.u32 %v2768, 7
        %v2770 = vsub.s32 0, %v2769
        %v2771 = vrot.slane %v2244, %v2770
        %v2772 = vlaneseq
        %v2773 = vshrl.u32 %v2772, 7
        %v2774 = vsub.s32 0, %v2773
        %v2775 = vrot.slane %v2246, %v2774
        %v2776 = vlaneseq
        %v2777 = vshrl.u32 %v2776, 7
        %v2778 = vsub.s32 0, %v2777
        %v2779 = vrot.slane %v2256, %v2778
        %v2780 = vlaneseq
        %v2781 = vshrl.u32 %v2780, 7
        %v2782 = vsub.s32 0, %v2781
        %v2783 = vrot.slane %v2258, %v2782
        %v2784 = vmul.f32 %v2757, %v2771
        %v2785 = vmul.f32 %v2758, %v2775
        %v2786 = vmul.f32 %v2759, %v2771
        %v2787 = vmul.f32 %v2760, %v2775
        %v2788 = vmul.f32 %v2757, %v2779
        %v2789 = vmul.f32 %v2758, %v2783
        %v2790 = vmul.f32 %v2759, %v2779
        %v2791 = vmul.f32 %v2760, %v2783
        %v2792 = vmul.f32 %v2764, %v2775
        %v2793 = vmul.f32 %v2765, %v2771
        %v2794 = vmul.f32 %v2766, %v2775
        %v2795 = vmul.f32 %v2767, %v2771
        %v2796 = vmul.f32 %v2764, %v2783
        %v2797 = vmul.f32 %v2765, %v2779
        %v2798 = vmul.f32 %v2766, %v2783
        %v2799 = vmul.f32 %v2767, %v2779
        %v2800 = vadd.f32 %v2784, %v2792
        %v2801 = vadd.f32 %v2785, %v2793
        %v2802 = vadd.f32 %v2786, %v2794
        %v2803 = vadd.f32 %v2787, %v2795
        %v2804 = vadd.f32 %v2788, %v2796
        %v2805 = vadd.f32 %v2789, %v2797
        %v2806 = vadd.f32 %v2790, %v2798
        %v2807 = vadd.f32 %v2791, %v2799
        %v2808 = vadd.f32 %v2684, %v2800
        %v2809 = vadd.f32 %v2685, %v2801
        %v2810 = vadd.f32 %v2686, %v2802
        %v2811 = vadd.f32 %v2687, %v2803
        %v2812 = vadd.f32 %v2688, %v2804
        %v2813 = vadd.f32 %v2689, %v2805
        %v2814 = vadd.f32 %v2690, %v2806
        %v2815 = vadd.f32 %v2691, %v2807
        %s2816 = scalar_lea.vmem %s436, 144 [#allocation8]
        %v2817 = vld [vmem:[%s2816] sm:$0xff]
        %v2818 = vld [vmem:[%s2816 + $0x8] sm:$0xff]
        %v2819 = vunpack.c.l.bf16 %v2817
        %v2820 = vunpack.c.h.bf16 %v2817
        %v2821 = vunpack.c.l.bf16 %v2818
        %v2822 = vunpack.c.h.bf16 %v2818
        %s2823 = scalar_lea.vmem %s445, 144 [#allocation10]
        %v2824 = vld [vmem:[%s2823] sm:$0xff]
        %v2825 = vld [vmem:[%s2823 + $0x8] sm:$0xff]
        %v2826 = vunpack.c.l.bf16 %v2824
        %v2827 = vunpack.c.h.bf16 %v2824
        %v2828 = vunpack.c.l.bf16 %v2825
        %v2829 = vunpack.c.h.bf16 %v2825
        %v2830 = vlaneseq
        %v2831 = vshrl.u32 %v2830, 7
        %v2832 = vsub.s32 1, %v2831
        %v2833 = vrot.slane %v2244, %v2832
        %v2834 = vlaneseq
        %v2835 = vshrl.u32 %v2834, 7
        %v2836 = vsub.s32 1, %v2835
        %v2837 = vrot.slane %v2246, %v2836
        %v2838 = vlaneseq
        %v2839 = vshrl.u32 %v2838, 7
        %v2840 = vsub.s32 1, %v2839
        %v2841 = vrot.slane %v2256, %v2840
        %v2842 = vlaneseq
        %v2843 = vshrl.u32 %v2842, 7
        %v2844 = vsub.s32 1, %v2843
        %v2845 = vrot.slane %v2258, %v2844
        %v2846 = vmul.f32 %v2819, %v2833
        %v2847 = vmul.f32 %v2820, %v2837
        %v2848 = vmul.f32 %v2821, %v2833
        %v2849 = vmul.f32 %v2822, %v2837
        %v2850 = vmul.f32 %v2819, %v2841
        %v2851 = vmul.f32 %v2820, %v2845
        %v2852 = vmul.f32 %v2821, %v2841
        %v2853 = vmul.f32 %v2822, %v2845
        %v2854 = vmul.f32 %v2826, %v2837
        %v2855 = vmul.f32 %v2827, %v2833
        %v2856 = vmul.f32 %v2828, %v2837
        %v2857 = vmul.f32 %v2829, %v2833
        %v2858 = vmul.f32 %v2826, %v2845
        %v2859 = vmul.f32 %v2827, %v2841
        %v2860 = vmul.f32 %v2828, %v2845
        %v2861 = vmul.f32 %v2829, %v2841
        %v2862 = vadd.f32 %v2846, %v2854
        %v2863 = vadd.f32 %v2847, %v2855
        %v2864 = vadd.f32 %v2848, %v2856
        %v2865 = vadd.f32 %v2849, %v2857
        %v2866 = vadd.f32 %v2850, %v2858
        %v2867 = vadd.f32 %v2851, %v2859
        %v2868 = vadd.f32 %v2852, %v2860
        %v2869 = vadd.f32 %v2853, %v2861
        %v2870 = vadd.f32 %v2746, %v2862
        %v2871 = vadd.f32 %v2747, %v2863
        %v2872 = vadd.f32 %v2748, %v2864
        %v2873 = vadd.f32 %v2749, %v2865
        %v2874 = vadd.f32 %v2750, %v2866
        %v2875 = vadd.f32 %v2751, %v2867
        %v2876 = vadd.f32 %v2752, %v2868
        %v2877 = vadd.f32 %v2753, %v2869
        %s2878 = scalar_lea.vmem %s436, 160 [#allocation8]
        %v2879 = vld [vmem:[%s2878] sm:$0xff]
        %v2880 = vld [vmem:[%s2878 + $0x8] sm:$0xff]
        %v2881 = vunpack.c.l.bf16 %v2879
        %v2882 = vunpack.c.h.bf16 %v2879
        %v2883 = vunpack.c.l.bf16 %v2880
        %v2884 = vunpack.c.h.bf16 %v2880
        %s2885 = scalar_lea.vmem %s445, 160 [#allocation10]
        %v2886 = vld [vmem:[%s2885] sm:$0xff]
        %v2887 = vld [vmem:[%s2885 + $0x8] sm:$0xff]
        %v2888 = vunpack.c.l.bf16 %v2886
        %v2889 = vunpack.c.h.bf16 %v2886
        %v2890 = vunpack.c.l.bf16 %v2887
        %v2891 = vunpack.c.h.bf16 %v2887
        %v2892 = vlaneseq
        %v2893 = vshrl.u32 %v2892, 7
        %v2894 = vsub.s32 2, %v2893
        %v2895 = vrot.slane %v2244, %v2894
        %v2896 = vlaneseq
        %v2897 = vshrl.u32 %v2896, 7
        %v2898 = vsub.s32 2, %v2897
        %v2899 = vrot.slane %v2246, %v2898
        %v2900 = vlaneseq
        %v2901 = vshrl.u32 %v2900, 7
        %v2902 = vsub.s32 2, %v2901
        %v2903 = vrot.slane %v2256, %v2902
        %v2904 = vlaneseq
        %v2905 = vshrl.u32 %v2904, 7
        %v2906 = vsub.s32 2, %v2905
        %v2907 = vrot.slane %v2258, %v2906
        %v2908 = vmul.f32 %v2881, %v2895
        %v2909 = vmul.f32 %v2882, %v2899
        %v2910 = vmul.f32 %v2883, %v2895
        %v2911 = vmul.f32 %v2884, %v2899
        %v2912 = vmul.f32 %v2881, %v2903
        %v2913 = vmul.f32 %v2882, %v2907
        %v2914 = vmul.f32 %v2883, %v2903
        %v2915 = vmul.f32 %v2884, %v2907
        %v2916 = vmul.f32 %v2888, %v2899
        %v2917 = vmul.f32 %v2889, %v2895
        %v2918 = vmul.f32 %v2890, %v2899
        %v2919 = vmul.f32 %v2891, %v2895
        %v2920 = vmul.f32 %v2888, %v2907
        %v2921 = vmul.f32 %v2889, %v2903
        %v2922 = vmul.f32 %v2890, %v2907
        %v2923 = vmul.f32 %v2891, %v2903
        %v2924 = vadd.f32 %v2908, %v2916
        %v2925 = vadd.f32 %v2909, %v2917
        %v2926 = vadd.f32 %v2910, %v2918
        %v2927 = vadd.f32 %v2911, %v2919
        %v2928 = vadd.f32 %v2912, %v2920
        %v2929 = vadd.f32 %v2913, %v2921
        %v2930 = vadd.f32 %v2914, %v2922
        %v2931 = vadd.f32 %v2915, %v2923
        %v2932 = vadd.f32 %v2808, %v2924
        %v2933 = vadd.f32 %v2809, %v2925
        %v2934 = vadd.f32 %v2810, %v2926
        %v2935 = vadd.f32 %v2811, %v2927
        %v2936 = vadd.f32 %v2812, %v2928
        %v2937 = vadd.f32 %v2813, %v2929
        %v2938 = vadd.f32 %v2814, %v2930
        %v2939 = vadd.f32 %v2815, %v2931
        %s2940 = scalar_lea.vmem %s436, 176 [#allocation8]
        %v2941 = vld [vmem:[%s2940] sm:$0xff]
        %v2942 = vld [vmem:[%s2940 + $0x8] sm:$0xff]
        %v2943 = vunpack.c.l.bf16 %v2941
        %v2944 = vunpack.c.h.bf16 %v2941
        %v2945 = vunpack.c.l.bf16 %v2942
        %v2946 = vunpack.c.h.bf16 %v2942
        %s2947 = scalar_lea.vmem %s445, 176 [#allocation10]
        %v2948 = vld [vmem:[%s2947] sm:$0xff]
        %v2949 = vld [vmem:[%s2947 + $0x8] sm:$0xff]
        %v2950 = vunpack.c.l.bf16 %v2948
        %v2951 = vunpack.c.h.bf16 %v2948
        %v2952 = vunpack.c.l.bf16 %v2949
        %v2953 = vunpack.c.h.bf16 %v2949
        %v2954 = vlaneseq
        %v2955 = vshrl.u32 %v2954, 7
        %v2956 = vsub.s32 3, %v2955
        %v2957 = vrot.slane %v2244, %v2956
        %v2958 = vlaneseq
        %v2959 = vshrl.u32 %v2958, 7
        %v2960 = vsub.s32 3, %v2959
        %v2961 = vrot.slane %v2246, %v2960
        %v2962 = vlaneseq
        %v2963 = vshrl.u32 %v2962, 7
        %v2964 = vsub.s32 3, %v2963
        %v2965 = vrot.slane %v2256, %v2964
        %v2966 = vlaneseq
        %v2967 = vshrl.u32 %v2966, 7
        %v2968 = vsub.s32 3, %v2967
        %v2969 = vrot.slane %v2258, %v2968
        %v2970 = vmul.f32 %v2943, %v2957
        %v2971 = vmul.f32 %v2944, %v2961
        %v2972 = vmul.f32 %v2945, %v2957
        %v2973 = vmul.f32 %v2946, %v2961
        %v2974 = vmul.f32 %v2943, %v2965
        %v2975 = vmul.f32 %v2944, %v2969
        %v2976 = vmul.f32 %v2945, %v2965
        %v2977 = vmul.f32 %v2946, %v2969
        %v2978 = vmul.f32 %v2950, %v2961
        %v2979 = vmul.f32 %v2951, %v2957
        %v2980 = vmul.f32 %v2952, %v2961
        %v2981 = vmul.f32 %v2953, %v2957
        %v2982 = vmul.f32 %v2950, %v2969
        %v2983 = vmul.f32 %v2951, %v2965
        %v2984 = vmul.f32 %v2952, %v2969
        %v2985 = vmul.f32 %v2953, %v2965
        %v2986 = vadd.f32 %v2970, %v2978
        %v2987 = vadd.f32 %v2971, %v2979
        %v2988 = vadd.f32 %v2972, %v2980
        %v2989 = vadd.f32 %v2973, %v2981
        %v2990 = vadd.f32 %v2974, %v2982
        %v2991 = vadd.f32 %v2975, %v2983
        %v2992 = vadd.f32 %v2976, %v2984
        %v2993 = vadd.f32 %v2977, %v2985
        %v2994 = vadd.f32 %v2870, %v2986
        %v2995 = vadd.f32 %v2871, %v2987
        %v2996 = vadd.f32 %v2872, %v2988
        %v2997 = vadd.f32 %v2873, %v2989
        %v2998 = vadd.f32 %v2874, %v2990
        %v2999 = vadd.f32 %v2875, %v2991
        %v3000 = vadd.f32 %v2876, %v2992
        %v3001 = vadd.f32 %v2877, %v2993
        %s3002 = scalar_lea.vmem %s436, 192 [#allocation8]
        %v3003 = vld [vmem:[%s3002] sm:$0xff]
        %v3004 = vld [vmem:[%s3002 + $0x8] sm:$0xff]
        %v3005 = vunpack.c.l.bf16 %v3003
        %v3006 = vunpack.c.h.bf16 %v3003
        %v3007 = vunpack.c.l.bf16 %v3004
        %v3008 = vunpack.c.h.bf16 %v3004
        %s3009 = scalar_lea.vmem %s445, 192 [#allocation10]
        %v3010 = vld [vmem:[%s3009] sm:$0xff]
        %v3011 = vld [vmem:[%s3009 + $0x8] sm:$0xff]
        %v3012 = vunpack.c.l.bf16 %v3010
        %v3013 = vunpack.c.h.bf16 %v3010
        %v3014 = vunpack.c.l.bf16 %v3011
        %v3015 = vunpack.c.h.bf16 %v3011
        %v3016 = vlaneseq
        %v3017 = vshrl.u32 %v3016, 7
        %v3018 = vsub.s32 4, %v3017
        %v3019 = vrot.slane %v2244, %v3018
        %v3020 = vlaneseq
        %v3021 = vshrl.u32 %v3020, 7
        %v3022 = vsub.s32 4, %v3021
        %v3023 = vrot.slane %v2246, %v3022
        %v3024 = vlaneseq
        %v3025 = vshrl.u32 %v3024, 7
        %v3026 = vsub.s32 4, %v3025
        %v3027 = vrot.slane %v2256, %v3026
        %v3028 = vlaneseq
        %v3029 = vshrl.u32 %v3028, 7
        %v3030 = vsub.s32 4, %v3029
        %v3031 = vrot.slane %v2258, %v3030
        %v3032 = vmul.f32 %v3005, %v3019
        %v3033 = vmul.f32 %v3006, %v3023
        %v3034 = vmul.f32 %v3007, %v3019
        %v3035 = vmul.f32 %v3008, %v3023
        %v3036 = vmul.f32 %v3005, %v3027
        %v3037 = vmul.f32 %v3006, %v3031
        %v3038 = vmul.f32 %v3007, %v3027
        %v3039 = vmul.f32 %v3008, %v3031
        %v3040 = vmul.f32 %v3012, %v3023
        %v3041 = vmul.f32 %v3013, %v3019
        %v3042 = vmul.f32 %v3014, %v3023
        %v3043 = vmul.f32 %v3015, %v3019
        %v3044 = vmul.f32 %v3012, %v3031
        %v3045 = vmul.f32 %v3013, %v3027
        %v3046 = vmul.f32 %v3014, %v3031
        %v3047 = vmul.f32 %v3015, %v3027
        %v3048 = vadd.f32 %v3032, %v3040
        %v3049 = vadd.f32 %v3033, %v3041
        %v3050 = vadd.f32 %v3034, %v3042
        %v3051 = vadd.f32 %v3035, %v3043
        %v3052 = vadd.f32 %v3036, %v3044
        %v3053 = vadd.f32 %v3037, %v3045
        %v3054 = vadd.f32 %v3038, %v3046
        %v3055 = vadd.f32 %v3039, %v3047
        %v3056 = vadd.f32 %v2932, %v3048
        %v3057 = vadd.f32 %v2933, %v3049
        %v3058 = vadd.f32 %v2934, %v3050
        %v3059 = vadd.f32 %v2935, %v3051
        %v3060 = vadd.f32 %v2936, %v3052
        %v3061 = vadd.f32 %v2937, %v3053
        %v3062 = vadd.f32 %v2938, %v3054
        %v3063 = vadd.f32 %v2939, %v3055
        %s3064 = scalar_lea.vmem %s436, 208 [#allocation8]
        %v3065 = vld [vmem:[%s3064] sm:$0xff]
        %v3066 = vld [vmem:[%s3064 + $0x8] sm:$0xff]
        %v3067 = vunpack.c.l.bf16 %v3065
        %v3068 = vunpack.c.h.bf16 %v3065
        %v3069 = vunpack.c.l.bf16 %v3066
        %v3070 = vunpack.c.h.bf16 %v3066
        %s3071 = scalar_lea.vmem %s445, 208 [#allocation10]
        %v3072 = vld [vmem:[%s3071] sm:$0xff]
        %v3073 = vld [vmem:[%s3071 + $0x8] sm:$0xff]
        %v3074 = vunpack.c.l.bf16 %v3072
        %v3075 = vunpack.c.h.bf16 %v3072
        %v3076 = vunpack.c.l.bf16 %v3073
        %v3077 = vunpack.c.h.bf16 %v3073
        %v3078 = vlaneseq
        %v3079 = vshrl.u32 %v3078, 7
        %v3080 = vsub.s32 5, %v3079
        %v3081 = vrot.slane %v2244, %v3080
        %v3082 = vlaneseq
        %v3083 = vshrl.u32 %v3082, 7
        %v3084 = vsub.s32 5, %v3083
        %v3085 = vrot.slane %v2246, %v3084
        %v3086 = vlaneseq
        %v3087 = vshrl.u32 %v3086, 7
        %v3088 = vsub.s32 5, %v3087
        %v3089 = vrot.slane %v2256, %v3088
        %v3090 = vlaneseq
        %v3091 = vshrl.u32 %v3090, 7
        %v3092 = vsub.s32 5, %v3091
        %v3093 = vrot.slane %v2258, %v3092
        %v3094 = vmul.f32 %v3067, %v3081
        %v3095 = vmul.f32 %v3068, %v3085
        %v3096 = vmul.f32 %v3069, %v3081
        %v3097 = vmul.f32 %v3070, %v3085
        %v3098 = vmul.f32 %v3067, %v3089
        %v3099 = vmul.f32 %v3068, %v3093
        %v3100 = vmul.f32 %v3069, %v3089
        %v3101 = vmul.f32 %v3070, %v3093
        %v3102 = vmul.f32 %v3074, %v3085
        %v3103 = vmul.f32 %v3075, %v3081
        %v3104 = vmul.f32 %v3076, %v3085
        %v3105 = vmul.f32 %v3077, %v3081
        %v3106 = vmul.f32 %v3074, %v3093
        %v3107 = vmul.f32 %v3075, %v3089
        %v3108 = vmul.f32 %v3076, %v3093
        %v3109 = vmul.f32 %v3077, %v3089
        %v3110 = vadd.f32 %v3094, %v3102
        %v3111 = vadd.f32 %v3095, %v3103
        %v3112 = vadd.f32 %v3096, %v3104
        %v3113 = vadd.f32 %v3097, %v3105
        %v3114 = vadd.f32 %v3098, %v3106
        %v3115 = vadd.f32 %v3099, %v3107
        %v3116 = vadd.f32 %v3100, %v3108
        %v3117 = vadd.f32 %v3101, %v3109
        %v3118 = vadd.f32 %v2994, %v3110
        %v3119 = vadd.f32 %v2995, %v3111
        %v3120 = vadd.f32 %v2996, %v3112
        %v3121 = vadd.f32 %v2997, %v3113
        %v3122 = vadd.f32 %v2998, %v3114
        %v3123 = vadd.f32 %v2999, %v3115
        %v3124 = vadd.f32 %v3000, %v3116
        %v3125 = vadd.f32 %v3001, %v3117
        %s3126 = scalar_lea.vmem %s436, 224 [#allocation8]
        %v3127 = vld [vmem:[%s3126] sm:$0xff]
        %v3128 = vld [vmem:[%s3126 + $0x8] sm:$0xff]
        %v3129 = vunpack.c.l.bf16 %v3127
        %v3130 = vunpack.c.h.bf16 %v3127
        %v3131 = vunpack.c.l.bf16 %v3128
        %v3132 = vunpack.c.h.bf16 %v3128
        %s3133 = scalar_lea.vmem %s445, 224 [#allocation10]
        %v3134 = vld [vmem:[%s3133] sm:$0xff]
        %v3135 = vld [vmem:[%s3133 + $0x8] sm:$0xff]
        %v3136 = vunpack.c.l.bf16 %v3134
        %v3137 = vunpack.c.h.bf16 %v3134
        %v3138 = vunpack.c.l.bf16 %v3135
        %v3139 = vunpack.c.h.bf16 %v3135
        %v3140 = vlaneseq
        %v3141 = vshrl.u32 %v3140, 7
        %v3142 = vsub.s32 6, %v3141
        %v3143 = vrot.slane %v2244, %v3142
        %v3144 = vlaneseq
        %v3145 = vshrl.u32 %v3144, 7
        %v3146 = vsub.s32 6, %v3145
        %v3147 = vrot.slane %v2246, %v3146
        %v3148 = vlaneseq
        %v3149 = vshrl.u32 %v3148, 7
        %v3150 = vsub.s32 6, %v3149
        %v3151 = vrot.slane %v2256, %v3150
        %v3152 = vlaneseq
        %v3153 = vshrl.u32 %v3152, 7
        %v3154 = vsub.s32 6, %v3153
        %v3155 = vrot.slane %v2258, %v3154
        %v3156 = vmul.f32 %v3129, %v3143
        %v3157 = vmul.f32 %v3130, %v3147
        %v3158 = vmul.f32 %v3131, %v3143
        %v3159 = vmul.f32 %v3132, %v3147
        %v3160 = vmul.f32 %v3129, %v3151
        %v3161 = vmul.f32 %v3130, %v3155
        %v3162 = vmul.f32 %v3131, %v3151
        %v3163 = vmul.f32 %v3132, %v3155
        %v3164 = vmul.f32 %v3136, %v3147
        %v3165 = vmul.f32 %v3137, %v3143
        %v3166 = vmul.f32 %v3138, %v3147
        %v3167 = vmul.f32 %v3139, %v3143
        %v3168 = vmul.f32 %v3136, %v3155
        %v3169 = vmul.f32 %v3137, %v3151
        %v3170 = vmul.f32 %v3138, %v3155
        %v3171 = vmul.f32 %v3139, %v3151
        %v3172 = vadd.f32 %v3156, %v3164
        %v3173 = vadd.f32 %v3157, %v3165
        %v3174 = vadd.f32 %v3158, %v3166
        %v3175 = vadd.f32 %v3159, %v3167
        %v3176 = vadd.f32 %v3160, %v3168
        %v3177 = vadd.f32 %v3161, %v3169
        %v3178 = vadd.f32 %v3162, %v3170
        %v3179 = vadd.f32 %v3163, %v3171
        %v3180 = vadd.f32 %v3056, %v3172
        %v3181 = vadd.f32 %v3057, %v3173
        %v3182 = vadd.f32 %v3058, %v3174
        %v3183 = vadd.f32 %v3059, %v3175
        %v3184 = vadd.f32 %v3060, %v3176
        %v3185 = vadd.f32 %v3061, %v3177
        %v3186 = vadd.f32 %v3062, %v3178
        %v3187 = vadd.f32 %v3063, %v3179
        %s3188 = scalar_lea.vmem %s436, 240 [#allocation8]
        %v3189 = vld [vmem:[%s3188] sm:$0xff]
        %v3190 = vld [vmem:[%s3188 + $0x8] sm:$0xff]
        %v3191 = vunpack.c.l.bf16 %v3189
        %v3192 = vunpack.c.h.bf16 %v3189
        %v3193 = vunpack.c.l.bf16 %v3190
        %v3194 = vunpack.c.h.bf16 %v3190
        %s3195 = scalar_lea.vmem %s445, 240 [#allocation10]
        %v3196 = vld [vmem:[%s3195] sm:$0xff]
        %v3197 = vld [vmem:[%s3195 + $0x8] sm:$0xff]
        %v3198 = vunpack.c.l.bf16 %v3196
        %v3199 = vunpack.c.h.bf16 %v3196
        %v3200 = vunpack.c.l.bf16 %v3197
        %v3201 = vunpack.c.h.bf16 %v3197
        %v3202 = vlaneseq
        %v3203 = vshrl.u32 %v3202, 7
        %v3204 = vsub.s32 7, %v3203
        %v3205 = vrot.slane %v2244, %v3204
        %v3206 = vlaneseq
        %v3207 = vshrl.u32 %v3206, 7
        %v3208 = vsub.s32 7, %v3207
        %v3209 = vrot.slane %v2246, %v3208
        %v3210 = vlaneseq
        %v3211 = vshrl.u32 %v3210, 7
        %v3212 = vsub.s32 7, %v3211
        %v3213 = vrot.slane %v2256, %v3212
        %v3214 = vlaneseq
        %v3215 = vshrl.u32 %v3214, 7
        %v3216 = vsub.s32 7, %v3215
        %v3217 = vrot.slane %v2258, %v3216
        %v3218 = vmul.f32 %v3191, %v3205
        %v3219 = vmul.f32 %v3192, %v3209
        %v3220 = vmul.f32 %v3193, %v3205
        %v3221 = vmul.f32 %v3194, %v3209
        %v3222 = vmul.f32 %v3191, %v3213
        %v3223 = vmul.f32 %v3192, %v3217
        %v3224 = vmul.f32 %v3193, %v3213
        %v3225 = vmul.f32 %v3194, %v3217
        %v3226 = vmul.f32 %v3198, %v3209
        %v3227 = vmul.f32 %v3199, %v3205
        %v3228 = vmul.f32 %v3200, %v3209
        %v3229 = vmul.f32 %v3201, %v3205
        %v3230 = vmul.f32 %v3198, %v3217
        %v3231 = vmul.f32 %v3199, %v3213
        %v3232 = vmul.f32 %v3200, %v3217
        %v3233 = vmul.f32 %v3201, %v3213
        %v3234 = vadd.f32 %v3218, %v3226
        %v3235 = vadd.f32 %v3219, %v3227
        %v3236 = vadd.f32 %v3220, %v3228
        %v3237 = vadd.f32 %v3221, %v3229
        %v3238 = vadd.f32 %v3222, %v3230
        %v3239 = vadd.f32 %v3223, %v3231
        %v3240 = vadd.f32 %v3224, %v3232
        %v3241 = vadd.f32 %v3225, %v3233
        %v3242 = vadd.f32 %v3118, %v3234
        %v3243 = vadd.f32 %v3119, %v3235
        %v3244 = vadd.f32 %v3120, %v3236
        %v3245 = vadd.f32 %v3121, %v3237
        %v3246 = vadd.f32 %v3122, %v3238
        %v3247 = vadd.f32 %v3123, %v3239
        %v3248 = vadd.f32 %v3124, %v3240
        %v3249 = vadd.f32 %v3125, %v3241
        %v3250 = vadd.f32 %v3180, %v3242
        %v3251 = vadd.f32 %v3181, %v3243
        %v3252 = vadd.f32 %v3182, %v3244
        %v3253 = vadd.f32 %v3183, %v3245
        %v3254 = vadd.f32 %v3184, %v3246
        %v3255 = vadd.f32 %v3185, %v3247
        %v3256 = vadd.f32 %v3186, %v3248
        %v3257 = vadd.f32 %v3187, %v3249
        %v3258 = vld [vmem:[#allocation7] sm:$0xff]
        %v3259 = vld [vmem:[#allocation7 + $0x8] sm:$0xff]
        %v3260 = vld [vmem:[#allocation7 + $0x10] sm:$0xff]
        %v3261 = vld [vmem:[#allocation7 + $0x18] sm:$0xff]
        %v3262 = vld [vmem:[#allocation7 + $0x20] sm:$0xff]
        %v3263 = vld [vmem:[#allocation7 + $0x28] sm:$0xff]
        %v3264 = vld [vmem:[#allocation7 + $0x30] sm:$0xff]
        %v3265 = vld [vmem:[#allocation7 + $0x38] sm:$0xff]
        %v3266 = vld [vmem:[#allocation7 + $0x40] sm:$0xff]
        %v3267 = vld [vmem:[#allocation7 + $0x48] sm:$0xff]
        %v3268 = vld [vmem:[#allocation7 + $0x50] sm:$0xff]
        %v3269 = vld [vmem:[#allocation7 + $0x58] sm:$0xff]
        %v3270 = vld [vmem:[#allocation7 + $0x60] sm:$0xff]
        %v3271 = vld [vmem:[#allocation7 + $0x68] sm:$0xff]
        %v3272 = vld [vmem:[#allocation7 + $0x70] sm:$0xff]
        %v3273 = vld [vmem:[#allocation7 + $0x78] sm:$0xff]
        %v3274 = vld [vmem:[#allocation7 + $0x80] sm:$0xff]
        %v3275 = vld [vmem:[#allocation7 + $0x88] sm:$0xff]
        %v3276 = vld [vmem:[#allocation7 + $0x90] sm:$0xff]
        %v3277 = vld [vmem:[#allocation7 + $0x98] sm:$0xff]
        %v3278 = vld [vmem:[#allocation7 + $0xa0] sm:$0xff]
        %v3279 = vld [vmem:[#allocation7 + $0xa8] sm:$0xff]
        %v3280 = vld [vmem:[#allocation7 + $0xb0] sm:$0xff]
        %v3281 = vld [vmem:[#allocation7 + $0xb8] sm:$0xff]
        %v3282 = vld [vmem:[#allocation7 + $0xc0] sm:$0xff]
        %v3283 = vld [vmem:[#allocation7 + $0xc8] sm:$0xff]
        %v3284 = vld [vmem:[#allocation7 + $0xd0] sm:$0xff]
        %v3285 = vld [vmem:[#allocation7 + $0xd8] sm:$0xff]
        %v3286 = vld [vmem:[#allocation7 + $0xe0] sm:$0xff]
        %v3287 = vld [vmem:[#allocation7 + $0xe8] sm:$0xff]
        %v3288 = vld [vmem:[#allocation7 + $0xf0] sm:$0xff]
        %v3289 = vld [vmem:[#allocation7 + $0xf8] sm:$0xff]
        %3290 = vmatprep.subr.mxu0 0.0
        %3291 = vmatpush1.msra.mxu0 %v3273
        %3292 = vmatprep.subr.mxu0 0.0
        %3293 = vmatpush1.msra.mxu0 %v3272
        %3294 = vmatprep.subr.mxu0 0.0
        %3295 = vmatpush1.msra.mxu0 %v3271
        %3296 = vmatprep.subr.mxu0 0.0
        %3297 = vmatpush1.msra.mxu0 %v3270
        %3298 = vmatprep.subr.mxu0 0.0
        %3299 = vmatpush1.msra.mxu0 %v3269
        %3300 = vmatprep.subr.mxu0 0.0
        %3301 = vmatpush1.msra.mxu0 %v3268
        %3302 = vmatprep.subr.mxu0 0.0
        %3303 = vmatpush1.msra.mxu0 %v3267
        %3304 = vmatprep.subr.mxu0 0.0
        %3305 = vmatpush1.msra.mxu0 %v3266
        %3306 = vmatprep.subr.mxu0 0.0
        %3307 = vmatpush1.msra.mxu0 %v3265
        %3308 = vmatprep.subr.mxu0 0.0
        %3309 = vmatpush1.msra.mxu0 %v3264
        %3310 = vmatprep.subr.mxu0 0.0
        %3311 = vmatpush1.msra.mxu0 %v3263
        %3312 = vmatprep.subr.mxu0 0.0
        %3313 = vmatpush1.msra.mxu0 %v3262
        %3314 = vmatprep.subr.mxu0 0.0
        %3315 = vmatpush1.msra.mxu0 %v3261
        %3316 = vmatprep.subr.mxu0 0.0
        %3317 = vmatpush1.msra.mxu0 %v3260
        %3318 = vmatprep.subr.mxu0 0.0
        %3319 = vmatpush1.msra.mxu0 %v3259
        %3320 = vmatprep.subr.mxu0 0.0
        %3321 = vmatpush1.msra.mxu0 %v3258
        %3322 = vmatprep.subr.mxu0 0.0
        %3323 = vmatpush2.msra.mxu0 %v3289
        %3324 = vmatprep.subr.mxu0 0.0
        %3325 = vmatpush2.msra.mxu0 %v3288
        %3326 = vmatprep.subr.mxu0 0.0
        %3327 = vmatpush2.msra.mxu0 %v3287
        %3328 = vmatprep.subr.mxu0 0.0
        %3329 = vmatpush2.msra.mxu0 %v3286
        %3330 = vmatprep.subr.mxu0 0.0
        %3331 = vmatpush2.msra.mxu0 %v3285
        %3332 = vmatprep.subr.mxu0 0.0
        %3333 = vmatpush2.msra.mxu0 %v3284
        %3334 = vmatprep.subr.mxu0 0.0
        %3335 = vmatpush2.msra.mxu0 %v3283
        %3336 = vmatprep.subr.mxu0 0.0
        %3337 = vmatpush2.msra.mxu0 %v3282
        %3338 = vmatprep.subr.mxu0 0.0
        %3339 = vmatpush2.msra.mxu0 %v3281
        %3340 = vmatprep.subr.mxu0 0.0
        %3341 = vmatpush2.msra.mxu0 %v3280
        %3342 = vmatprep.subr.mxu0 0.0
        %3343 = vmatpush2.msra.mxu0 %v3279
        %3344 = vmatprep.subr.mxu0 0.0
        %3345 = vmatpush2.msra.mxu0 %v3278
        %3346 = vmatprep.subr.mxu0 0.0
        %3347 = vmatpush2.msra.mxu0 %v3277
        %3348 = vmatprep.subr.mxu0 0.0
        %3349 = vmatpush2.msra.mxu0 %v3276
        %3350 = vmatprep.subr.mxu0 0.0
        %3351 = vmatpush2.msra.mxu0 %v3275
        %3352 = vmatprep.subr.mxu0 0.0
        %3353 = vmatpush2.msra.mxu0 %v3274
        %3354 = vmatprep.mubr.f32.mxu0 %v3251
        %3355 = vmatmul.mubr.f32.gmra.mxu0 %v3250
        %v3356 = vpop.f32.mrf.mxu0
        %v3357 = vadd.f32 0.0, %v3356
        %v3358 = vpop.f32.mrf.mxu0
        %3359 = vmatprep.mubr.f32.mxu0 %v3253
        %3360 = vmatmul.mubr.f32.gmra.mxu0 %v3252
        %v3361 = vpop.f32.mrf.mxu0
        %v3362 = vadd.f32 0.0, %v3361
        %v3363 = vpop.f32.mrf.mxu0
        %3364 = vmatprep.mubr.f32.mxu0 %v3255
        %3365 = vmatmul.mubr.f32.gmra.mxu0 %v3254
        %v3366 = vpop.f32.mrf.mxu0
        %v3367 = vadd.f32 0.0, %v3366
        %v3368 = vpop.f32.mrf.mxu0
        %3369 = vmatprep.mubr.f32.mxu0 %v3257
        %3370 = vmatmul.mubr.f32.gmra.mxu0 %v3256
        %v3371 = vpop.f32.mrf.mxu0
        %v3372 = vadd.f32 0.0, %v3371
        %v3373 = vpop.f32.mrf.mxu0
        %3374 = vdwg.mxu0
        %v3375 = vld [vmem:[%s454] sm:$0xff]
        %v3376 = vld [vmem:[%s454 + $0x8] sm:$0xff]
        %v3377 = vadd.f32 %v3357, %v3375
        %v3378 = vadd.f32 %v3362, %v3376
        %v3379 = vadd.f32 %v3367, %v3375
        %v3380 = vadd.f32 %v3372, %v3376
        %v3381 = vmax.f32 %v3377, 0.0
        %v3382 = vmax.f32 %v3378, 0.0
        %v3383 = vmax.f32 %v3379, 0.0
        %v3384 = vmax.f32 %v3380, 0.0
        %3385 = vst [vmem:[#allocation2] sm:$0xff] %v3381
        %3386 = vst [vmem:[#allocation2 + $0x8] sm:$0xff] %v3382
        %3387 = vst [vmem:[#allocation2 + $0x10] sm:$0xff] %v3383
        %3388 = vst [vmem:[#allocation2 + $0x18] sm:$0xff] %v3384
        %p3389 = scmp.eq.s32.totalorder %s29, 2
        // Predicated region
        $region93: #{spherical_cnn_forward.1} parent=59 // pred_check
          %p3390 = pneg %p3389
        $region94: #{spherical_cnn_forward.1} parent=59 // pred_check_branch
          %3392 = sbr.rel (%p3390) target = $region96
        $region95: #{spherical_cnn_forward.1} parent=59 // pred_region
          %v3395 = vrot.slane %v3383, 7
          %vm3396 = vcmask 1041409
          %v3397 = vsel %vm3396, %v3395, %v3381
          %v3399 = vrot.slane %v3381, 1
          %v3400 = vsel %vm3396, %v3383, %v3399
          %v3402 = vrot.slane %v3381, 2
          %v3403 = vrot.slane %v3383, 1
          %v3404 = vsel %vm3396, %v3403, %v3402
          %v3406 = vrot.slane %v3381, 3
          %v3407 = vrot.slane %v3383, 2
          %v3408 = vsel %vm3396, %v3407, %v3406
          %v3410 = vrot.slane %v3381, 4
          %v3411 = vrot.slane %v3383, 3
          %v3412 = vsel %vm3396, %v3411, %v3410
          %v3414 = vrot.slane %v3381, 5
          %v3415 = vrot.slane %v3383, 4
          %v3416 = vsel %vm3396, %v3415, %v3414
          %v3418 = vrot.slane %v3381, 6
          %v3419 = vrot.slane %v3383, 5
          %v3420 = vsel %vm3396, %v3419, %v3418
          %v3422 = vrot.slane %v3381, 7
          %v3423 = vrot.slane %v3383, 6
          %v3424 = vsel %vm3396, %v3423, %v3422
          %v3428 = vrot.slane %v3384, 7
          %v3429 = vsel %vm3396, %v3428, %v3382
          %v3431 = vrot.slane %v3382, 1
          %v3432 = vsel %vm3396, %v3384, %v3431
          %v3434 = vrot.slane %v3382, 2
          %v3435 = vrot.slane %v3384, 1
          %v3436 = vsel %vm3396, %v3435, %v3434
          %v3438 = vrot.slane %v3382, 3
          %v3439 = vrot.slane %v3384, 2
          %v3440 = vsel %vm3396, %v3439, %v3438
          %v3442 = vrot.slane %v3382, 4
          %v3443 = vrot.slane %v3384, 3
          %v3444 = vsel %vm3396, %v3443, %v3442
          %v3446 = vrot.slane %v3382, 5
          %v3447 = vrot.slane %v3384, 4
          %v3448 = vsel %vm3396, %v3447, %v3446
          %v3450 = vrot.slane %v3382, 6
          %v3451 = vrot.slane %v3384, 5
          %v3452 = vsel %vm3396, %v3451, %v3450
          %v3454 = vrot.slane %v3382, 7
          %v3455 = vrot.slane %v3384, 6
          %v3456 = vsel %vm3396, %v3455, %v3454
          %v3458 = vpack.c.bf16 %v3397, %v3397
          %v3459 = vpack.c.bf16 %v3400, %v3400
          %v3460 = vpack.c.bf16 %v3404, %v3404
          %v3461 = vpack.c.bf16 %v3408, %v3408
          %v3462 = vpack.c.bf16 %v3412, %v3412
          %v3463 = vpack.c.bf16 %v3416, %v3416
          %v3464 = vpack.c.bf16 %v3420, %v3420
          %v3465 = vpack.c.bf16 %v3424, %v3424
          %v3466 = vpack.c.bf16 %v3429, %v3429
          %v3467 = vpack.c.bf16 %v3432, %v3432
          %v3468 = vpack.c.bf16 %v3436, %v3436
          %v3469 = vpack.c.bf16 %v3440, %v3440
          %v3470 = vpack.c.bf16 %v3444, %v3444
          %v3471 = vpack.c.bf16 %v3448, %v3448
          %v3472 = vpack.c.bf16 %v3452, %v3452
          %v3473 = vpack.c.bf16 %v3456, %v3456
          %v3474 = vld [vmem:[#allocation13] sm:$0xf]
          %v3475 = vld [vmem:[#allocation13 + $0x4] sm:$0xf]
          %v3476 = vld [vmem:[#allocation13 + $0x8] sm:$0xf]
          %v3477 = vld [vmem:[#allocation13 + $0xc] sm:$0xf]
          %v3478 = vld [vmem:[#allocation13 + $0x10] sm:$0xf]
          %v3479 = vld [vmem:[#allocation13 + $0x14] sm:$0xf]
          %v3480 = vld [vmem:[#allocation13 + $0x18] sm:$0xf]
          %v3481 = vld [vmem:[#allocation13 + $0x1c] sm:$0xf]
          %v3482 = vld [vmem:[#allocation13 + $0x20] sm:$0xf]
          %v3483 = vld [vmem:[#allocation13 + $0x24] sm:$0xf]
          %v3484 = vld [vmem:[#allocation13 + $0x28] sm:$0xf]
          %v3485 = vld [vmem:[#allocation13 + $0x2c] sm:$0xf]
          %v3486 = vld [vmem:[#allocation13 + $0x30] sm:$0xf]
          %v3487 = vld [vmem:[#allocation13 + $0x34] sm:$0xf]
          %v3488 = vld [vmem:[#allocation13 + $0x38] sm:$0xf]
          %v3489 = vld [vmem:[#allocation13 + $0x3c] sm:$0xf]
          %v3490 = vld [vmem:[#allocation13 + $0x40] sm:$0xf]
          %v3491 = vld [vmem:[#allocation13 + $0x44] sm:$0xf]
          %v3492 = vld [vmem:[#allocation13 + $0x48] sm:$0xf]
          %v3493 = vld [vmem:[#allocation13 + $0x4c] sm:$0xf]
          %v3494 = vld [vmem:[#allocation13 + $0x50] sm:$0xf]
          %v3495 = vld [vmem:[#allocation13 + $0x54] sm:$0xf]
          %v3496 = vld [vmem:[#allocation13 + $0x58] sm:$0xf]
          %v3497 = vld [vmem:[#allocation13 + $0x5c] sm:$0xf]
          %v3498 = vld [vmem:[#allocation13 + $0x60] sm:$0xf]
          %v3499 = vld [vmem:[#allocation13 + $0x64] sm:$0xf]
          %v3500 = vld [vmem:[#allocation13 + $0x68] sm:$0xf]
          %v3501 = vld [vmem:[#allocation13 + $0x6c] sm:$0xf]
          %v3502 = vld [vmem:[#allocation13 + $0x70] sm:$0xf]
          %v3503 = vld [vmem:[#allocation13 + $0x74] sm:$0xf]
          %v3504 = vld [vmem:[#allocation13 + $0x78] sm:$0xf]
          %v3505 = vld [vmem:[#allocation13 + $0x7c] sm:$0xf]
          %v3506 = vld [vmem:[#allocation13 + $0x80] sm:$0xf]
          %v3507 = vld [vmem:[#allocation13 + $0x84] sm:$0xf]
          %v3508 = vld [vmem:[#allocation13 + $0x88] sm:$0xf]
          %v3509 = vld [vmem:[#allocation13 + $0x8c] sm:$0xf]
          %v3510 = vld [vmem:[#allocation13 + $0x90] sm:$0xf]
          %v3511 = vld [vmem:[#allocation13 + $0x94] sm:$0xf]
          %v3512 = vld [vmem:[#allocation13 + $0x98] sm:$0xf]
          %v3513 = vld [vmem:[#allocation13 + $0x9c] sm:$0xf]
          %v3514 = vld [vmem:[#allocation13 + $0xa0] sm:$0xf]
          %v3515 = vld [vmem:[#allocation13 + $0xa4] sm:$0xf]
          %v3516 = vld [vmem:[#allocation13 + $0xa8] sm:$0xf]
          %v3517 = vld [vmem:[#allocation13 + $0xac] sm:$0xf]
          %v3518 = vld [vmem:[#allocation13 + $0xb0] sm:$0xf]
          %v3519 = vld [vmem:[#allocation13 + $0xb4] sm:$0xf]
          %v3520 = vld [vmem:[#allocation13 + $0xb8] sm:$0xf]
          %v3521 = vld [vmem:[#allocation13 + $0xbc] sm:$0xf]
          %v3522 = vld [vmem:[#allocation13 + $0xc0] sm:$0xf]
          %v3523 = vld [vmem:[#allocation13 + $0xc4] sm:$0xf]
          %v3524 = vld [vmem:[#allocation13 + $0xc8] sm:$0xf]
          %v3525 = vld [vmem:[#allocation13 + $0xcc] sm:$0xf]
          %v3526 = vld [vmem:[#allocation13 + $0xd0] sm:$0xf]
          %v3527 = vld [vmem:[#allocation13 + $0xd4] sm:$0xf]
          %v3528 = vld [vmem:[#allocation13 + $0xd8] sm:$0xf]
          %v3529 = vld [vmem:[#allocation13 + $0xdc] sm:$0xf]
          %v3530 = vld [vmem:[#allocation13 + $0xe0] sm:$0xf]
          %v3531 = vld [vmem:[#allocation13 + $0xe4] sm:$0xf]
          %v3532 = vld [vmem:[#allocation13 + $0xe8] sm:$0xf]
          %v3533 = vld [vmem:[#allocation13 + $0xec] sm:$0xf]
          %v3534 = vld [vmem:[#allocation13 + $0xf0] sm:$0xf]
          %v3535 = vld [vmem:[#allocation13 + $0xf4] sm:$0xf]
          %v3536 = vld [vmem:[#allocation13 + $0xf8] sm:$0xf]
          %v3537 = vld [vmem:[#allocation13 + $0xfc] sm:$0xf]
          %v3538 = vld [vmem:[#allocation13 + $0x100] sm:$0xf]
          %v3539 = vld [vmem:[#allocation13 + $0x104] sm:$0xf]
          %v3540 = vld [vmem:[#allocation13 + $0x108] sm:$0xf]
          %v3541 = vld [vmem:[#allocation13 + $0x10c] sm:$0xf]
          %v3542 = vld [vmem:[#allocation13 + $0x110] sm:$0xf]
          %v3543 = vld [vmem:[#allocation13 + $0x114] sm:$0xf]
          %v3544 = vld [vmem:[#allocation13 + $0x118] sm:$0xf]
          %v3545 = vld [vmem:[#allocation13 + $0x11c] sm:$0xf]
          %v3546 = vld [vmem:[#allocation13 + $0x120] sm:$0xf]
          %v3547 = vld [vmem:[#allocation13 + $0x124] sm:$0xf]
          %v3548 = vld [vmem:[#allocation13 + $0x128] sm:$0xf]
          %v3549 = vld [vmem:[#allocation13 + $0x12c] sm:$0xf]
          %v3550 = vld [vmem:[#allocation13 + $0x130] sm:$0xf]
          %v3551 = vld [vmem:[#allocation13 + $0x134] sm:$0xf]
          %v3552 = vld [vmem:[#allocation13 + $0x138] sm:$0xf]
          %v3553 = vld [vmem:[#allocation13 + $0x13c] sm:$0xf]
          %v3554 = vld [vmem:[#allocation13 + $0x140] sm:$0xf]
          %v3555 = vld [vmem:[#allocation13 + $0x144] sm:$0xf]
          %v3556 = vld [vmem:[#allocation13 + $0x148] sm:$0xf]
          %v3557 = vld [vmem:[#allocation13 + $0x14c] sm:$0xf]
          %v3558 = vld [vmem:[#allocation13 + $0x150] sm:$0xf]
          %v3559 = vld [vmem:[#allocation13 + $0x154] sm:$0xf]
          %v3560 = vld [vmem:[#allocation13 + $0x158] sm:$0xf]
          %v3561 = vld [vmem:[#allocation13 + $0x15c] sm:$0xf]
          %v3562 = vld [vmem:[#allocation13 + $0x160] sm:$0xf]
          %v3563 = vld [vmem:[#allocation13 + $0x164] sm:$0xf]
          %v3564 = vld [vmem:[#allocation13 + $0x168] sm:$0xf]
          %v3565 = vld [vmem:[#allocation13 + $0x16c] sm:$0xf]
          %v3566 = vld [vmem:[#allocation13 + $0x170] sm:$0xf]
          %v3567 = vld [vmem:[#allocation13 + $0x174] sm:$0xf]
          %v3568 = vld [vmem:[#allocation13 + $0x178] sm:$0xf]
          %v3569 = vld [vmem:[#allocation13 + $0x17c] sm:$0xf]
          %v3570 = vld [vmem:[#allocation13 + $0x180] sm:$0xf]
          %v3571 = vld [vmem:[#allocation13 + $0x184] sm:$0xf]
          %v3572 = vld [vmem:[#allocation13 + $0x188] sm:$0xf]
          %v3573 = vld [vmem:[#allocation13 + $0x18c] sm:$0xf]
          %v3574 = vld [vmem:[#allocation13 + $0x190] sm:$0xf]
          %v3575 = vld [vmem:[#allocation13 + $0x194] sm:$0xf]
          %v3576 = vld [vmem:[#allocation13 + $0x198] sm:$0xf]
          %v3577 = vld [vmem:[#allocation13 + $0x19c] sm:$0xf]
          %v3578 = vld [vmem:[#allocation13 + $0x1a0] sm:$0xf]
          %v3579 = vld [vmem:[#allocation13 + $0x1a4] sm:$0xf]
          %v3580 = vld [vmem:[#allocation13 + $0x1a8] sm:$0xf]
          %v3581 = vld [vmem:[#allocation13 + $0x1ac] sm:$0xf]
          %v3582 = vld [vmem:[#allocation13 + $0x1b0] sm:$0xf]
          %v3583 = vld [vmem:[#allocation13 + $0x1b4] sm:$0xf]
          %v3584 = vld [vmem:[#allocation13 + $0x1b8] sm:$0xf]
          %v3585 = vld [vmem:[#allocation13 + $0x1bc] sm:$0xf]
          %v3586 = vld [vmem:[#allocation13 + $0x1c0] sm:$0xf]
          %v3587 = vld [vmem:[#allocation13 + $0x1c4] sm:$0xf]
          %v3588 = vld [vmem:[#allocation13 + $0x1c8] sm:$0xf]
          %v3589 = vld [vmem:[#allocation13 + $0x1cc] sm:$0xf]
          %v3590 = vld [vmem:[#allocation13 + $0x1d0] sm:$0xf]
          %v3591 = vld [vmem:[#allocation13 + $0x1d4] sm:$0xf]
          %v3592 = vld [vmem:[#allocation13 + $0x1d8] sm:$0xf]
          %v3593 = vld [vmem:[#allocation13 + $0x1dc] sm:$0xf]
          %v3594 = vld [vmem:[#allocation13 + $0x1e0] sm:$0xf]
          %v3595 = vld [vmem:[#allocation13 + $0x1e4] sm:$0xf]
          %v3596 = vld [vmem:[#allocation13 + $0x1e8] sm:$0xf]
          %v3597 = vld [vmem:[#allocation13 + $0x1ec] sm:$0xf]
          %v3598 = vld [vmem:[#allocation13 + $0x1f0] sm:$0xf]
          %v3599 = vld [vmem:[#allocation13 + $0x1f4] sm:$0xf]
          %v3600 = vld [vmem:[#allocation13 + $0x1f8] sm:$0xf]
          %v3601 = vld [vmem:[#allocation13 + $0x1fc] sm:$0xf]
          %v3602 = vld [vmem:[#allocation13 + $0x200] sm:$0xf]
          %v3603 = vld [vmem:[#allocation13 + $0x204] sm:$0xf]
          %v3604 = vld [vmem:[#allocation13 + $0x208] sm:$0xf]
          %v3605 = vld [vmem:[#allocation13 + $0x20c] sm:$0xf]
          %v3606 = vld [vmem:[#allocation13 + $0x210] sm:$0xf]
          %v3607 = vld [vmem:[#allocation13 + $0x214] sm:$0xf]
          %v3608 = vld [vmem:[#allocation13 + $0x218] sm:$0xf]
          %v3609 = vld [vmem:[#allocation13 + $0x21c] sm:$0xf]
          %v3610 = vld [vmem:[#allocation13 + $0x220] sm:$0xf]
          %v3611 = vld [vmem:[#allocation13 + $0x224] sm:$0xf]
          %v3612 = vld [vmem:[#allocation13 + $0x228] sm:$0xf]
          %v3613 = vld [vmem:[#allocation13 + $0x22c] sm:$0xf]
          %v3614 = vld [vmem:[#allocation13 + $0x230] sm:$0xf]
          %v3615 = vld [vmem:[#allocation13 + $0x234] sm:$0xf]
          %v3616 = vld [vmem:[#allocation13 + $0x238] sm:$0xf]
          %v3617 = vld [vmem:[#allocation13 + $0x23c] sm:$0xf]
          %v3618 = vld [vmem:[#allocation13 + $0x240] sm:$0xf]
          %v3619 = vld [vmem:[#allocation13 + $0x244] sm:$0xf]
          %v3620 = vld [vmem:[#allocation13 + $0x248] sm:$0xf]
          %v3621 = vld [vmem:[#allocation13 + $0x24c] sm:$0xf]
          %v3622 = vld [vmem:[#allocation13 + $0x250] sm:$0xf]
          %v3623 = vld [vmem:[#allocation13 + $0x254] sm:$0xf]
          %v3624 = vld [vmem:[#allocation13 + $0x258] sm:$0xf]
          %v3625 = vld [vmem:[#allocation13 + $0x25c] sm:$0xf]
          %v3626 = vld [vmem:[#allocation13 + $0x260] sm:$0xf]
          %v3627 = vld [vmem:[#allocation13 + $0x264] sm:$0xf]
          %v3628 = vld [vmem:[#allocation13 + $0x268] sm:$0xf]
          %v3629 = vld [vmem:[#allocation13 + $0x26c] sm:$0xf]
          %v3630 = vld [vmem:[#allocation13 + $0x270] sm:$0xf]
          %v3631 = vld [vmem:[#allocation13 + $0x274] sm:$0xf]
          %v3632 = vld [vmem:[#allocation13 + $0x278] sm:$0xf]
          %v3633 = vld [vmem:[#allocation13 + $0x27c] sm:$0xf]
          %v3634 = vld [vmem:[#allocation13 + $0x280] sm:$0xf]
          %v3635 = vld [vmem:[#allocation13 + $0x284] sm:$0xf]
          %v3636 = vld [vmem:[#allocation13 + $0x288] sm:$0xf]
          %v3637 = vld [vmem:[#allocation13 + $0x28c] sm:$0xf]
          %v3638 = vld [vmem:[#allocation13 + $0x290] sm:$0xf]
          %v3639 = vld [vmem:[#allocation13 + $0x294] sm:$0xf]
          %v3640 = vld [vmem:[#allocation13 + $0x298] sm:$0xf]
          %v3641 = vld [vmem:[#allocation13 + $0x29c] sm:$0xf]
          %v3642 = vld [vmem:[#allocation13 + $0x2a0] sm:$0xf]
          %v3643 = vld [vmem:[#allocation13 + $0x2a4] sm:$0xf]
          %v3644 = vld [vmem:[#allocation13 + $0x2a8] sm:$0xf]
          %v3645 = vld [vmem:[#allocation13 + $0x2ac] sm:$0xf]
          %v3646 = vld [vmem:[#allocation13 + $0x2b0] sm:$0xf]
          %v3647 = vld [vmem:[#allocation13 + $0x2b4] sm:$0xf]
          %v3648 = vld [vmem:[#allocation13 + $0x2b8] sm:$0xf]
          %v3649 = vld [vmem:[#allocation13 + $0x2bc] sm:$0xf]
          %v3650 = vld [vmem:[#allocation13 + $0x2c0] sm:$0xf]
          %v3651 = vld [vmem:[#allocation13 + $0x2c4] sm:$0xf]
          %v3652 = vld [vmem:[#allocation13 + $0x2c8] sm:$0xf]
          %v3653 = vld [vmem:[#allocation13 + $0x2cc] sm:$0xf]
          %v3654 = vld [vmem:[#allocation13 + $0x2d0] sm:$0xf]
          %v3655 = vld [vmem:[#allocation13 + $0x2d4] sm:$0xf]
          %v3656 = vld [vmem:[#allocation13 + $0x2d8] sm:$0xf]
          %v3657 = vld [vmem:[#allocation13 + $0x2dc] sm:$0xf]
          %v3658 = vld [vmem:[#allocation13 + $0x2e0] sm:$0xf]
          %v3659 = vld [vmem:[#allocation13 + $0x2e4] sm:$0xf]
          %v3660 = vld [vmem:[#allocation13 + $0x2e8] sm:$0xf]
          %v3661 = vld [vmem:[#allocation13 + $0x2ec] sm:$0xf]
          %v3662 = vld [vmem:[#allocation13 + $0x2f0] sm:$0xf]
          %v3663 = vld [vmem:[#allocation13 + $0x2f4] sm:$0xf]
          %v3664 = vld [vmem:[#allocation13 + $0x2f8] sm:$0xf]
          %v3665 = vld [vmem:[#allocation13 + $0x2fc] sm:$0xf]
          %v3666 = vld [vmem:[#allocation13 + $0x300] sm:$0xf]
          %v3667 = vld [vmem:[#allocation13 + $0x304] sm:$0xf]
          %v3668 = vld [vmem:[#allocation13 + $0x308] sm:$0xf]
          %v3669 = vld [vmem:[#allocation13 + $0x30c] sm:$0xf]
          %v3670 = vld [vmem:[#allocation13 + $0x310] sm:$0xf]
          %v3671 = vld [vmem:[#allocation13 + $0x314] sm:$0xf]
          %v3672 = vld [vmem:[#allocation13 + $0x318] sm:$0xf]
          %v3673 = vld [vmem:[#allocation13 + $0x31c] sm:$0xf]
          %v3674 = vld [vmem:[#allocation13 + $0x320] sm:$0xf]
          %v3675 = vld [vmem:[#allocation13 + $0x324] sm:$0xf]
          %v3676 = vld [vmem:[#allocation13 + $0x328] sm:$0xf]
          %v3677 = vld [vmem:[#allocation13 + $0x32c] sm:$0xf]
          %v3678 = vld [vmem:[#allocation13 + $0x330] sm:$0xf]
          %v3679 = vld [vmem:[#allocation13 + $0x334] sm:$0xf]
          %v3680 = vld [vmem:[#allocation13 + $0x338] sm:$0xf]
          %v3681 = vld [vmem:[#allocation13 + $0x33c] sm:$0xf]
          %v3682 = vld [vmem:[#allocation13 + $0x340] sm:$0xf]
          %v3683 = vld [vmem:[#allocation13 + $0x344] sm:$0xf]
          %v3684 = vld [vmem:[#allocation13 + $0x348] sm:$0xf]
          %v3685 = vld [vmem:[#allocation13 + $0x34c] sm:$0xf]
          %v3686 = vld [vmem:[#allocation13 + $0x350] sm:$0xf]
          %v3687 = vld [vmem:[#allocation13 + $0x354] sm:$0xf]
          %v3688 = vld [vmem:[#allocation13 + $0x358] sm:$0xf]
          %v3689 = vld [vmem:[#allocation13 + $0x35c] sm:$0xf]
          %v3690 = vld [vmem:[#allocation13 + $0x360] sm:$0xf]
          %v3691 = vld [vmem:[#allocation13 + $0x364] sm:$0xf]
          %v3692 = vld [vmem:[#allocation13 + $0x368] sm:$0xf]
          %v3693 = vld [vmem:[#allocation13 + $0x36c] sm:$0xf]
          %v3694 = vld [vmem:[#allocation13 + $0x370] sm:$0xf]
          %v3695 = vld [vmem:[#allocation13 + $0x374] sm:$0xf]
          %v3696 = vld [vmem:[#allocation13 + $0x378] sm:$0xf]
          %v3697 = vld [vmem:[#allocation13 + $0x37c] sm:$0xf]
          %v3698 = vld [vmem:[#allocation13 + $0x380] sm:$0xf]
          %v3699 = vld [vmem:[#allocation13 + $0x384] sm:$0xf]
          %v3700 = vld [vmem:[#allocation13 + $0x388] sm:$0xf]
          %v3701 = vld [vmem:[#allocation13 + $0x38c] sm:$0xf]
          %v3702 = vld [vmem:[#allocation13 + $0x390] sm:$0xf]
          %v3703 = vld [vmem:[#allocation13 + $0x394] sm:$0xf]
          %v3704 = vld [vmem:[#allocation13 + $0x398] sm:$0xf]
          %v3705 = vld [vmem:[#allocation13 + $0x39c] sm:$0xf]
          %v3706 = vld [vmem:[#allocation13 + $0x3a0] sm:$0xf]
          %v3707 = vld [vmem:[#allocation13 + $0x3a4] sm:$0xf]
          %v3708 = vld [vmem:[#allocation13 + $0x3a8] sm:$0xf]
          %v3709 = vld [vmem:[#allocation13 + $0x3ac] sm:$0xf]
          %v3710 = vld [vmem:[#allocation13 + $0x3b0] sm:$0xf]
          %v3711 = vld [vmem:[#allocation13 + $0x3b4] sm:$0xf]
          %v3712 = vld [vmem:[#allocation13 + $0x3b8] sm:$0xf]
          %v3713 = vld [vmem:[#allocation13 + $0x3bc] sm:$0xf]
          %v3714 = vld [vmem:[#allocation13 + $0x3c0] sm:$0xf]
          %v3715 = vld [vmem:[#allocation13 + $0x3c4] sm:$0xf]
          %v3716 = vld [vmem:[#allocation13 + $0x3c8] sm:$0xf]
          %v3717 = vld [vmem:[#allocation13 + $0x3cc] sm:$0xf]
          %v3718 = vld [vmem:[#allocation13 + $0x3d0] sm:$0xf]
          %v3719 = vld [vmem:[#allocation13 + $0x3d4] sm:$0xf]
          %v3720 = vld [vmem:[#allocation13 + $0x3d8] sm:$0xf]
          %v3721 = vld [vmem:[#allocation13 + $0x3dc] sm:$0xf]
          %v3722 = vld [vmem:[#allocation13 + $0x3e0] sm:$0xf]
          %v3723 = vld [vmem:[#allocation13 + $0x3e4] sm:$0xf]
          %v3724 = vld [vmem:[#allocation13 + $0x3e8] sm:$0xf]
          %v3725 = vld [vmem:[#allocation13 + $0x3ec] sm:$0xf]
          %v3726 = vld [vmem:[#allocation13 + $0x3f0] sm:$0xf]
          %v3727 = vld [vmem:[#allocation13 + $0x3f4] sm:$0xf]
          %v3728 = vld [vmem:[#allocation13 + $0x3f8] sm:$0xf]
          %v3729 = vld [vmem:[#allocation13 + $0x3fc] sm:$0xf]
          %v3730 = vld [vmem:[%s9] sm:$0x1]
          %v3732 = vlaneseq
          %v3733 = vshrl.u32 %v3732, 7
          %v3734 = vsub.s32 0, %v3733
          %v3735 = vrot.slane %v3730, %v3734
          %v3993 = vunpack.c.l.b16 %v3474
          %v3994 = vunpack.c.l.b16 %v3475
          %v3995 = vunpack.c.l.b16 %v3476
          %v3996 = vunpack.c.l.b16 %v3477
          %v3997 = vunpack.c.l.b16 %v3478
          %v3998 = vunpack.c.l.b16 %v3479
          %v3999 = vunpack.c.l.b16 %v3480
          %v4000 = vunpack.c.l.b16 %v3481
          %v4001 = vunpack.c.l.b16 %v3482
          %v4002 = vunpack.c.l.b16 %v3483
          %v4003 = vunpack.c.l.b16 %v3484
          %v4004 = vunpack.c.l.b16 %v3485
          %v4005 = vunpack.c.l.b16 %v3486
          %v4006 = vunpack.c.l.b16 %v3487
          %v4007 = vunpack.c.l.b16 %v3488
          %v4008 = vunpack.c.l.b16 %v3489
          %v4009 = vunpack.c.l.b16 %v3490
          %v4010 = vunpack.c.l.b16 %v3491
          %v4011 = vunpack.c.l.b16 %v3492
          %v4012 = vunpack.c.l.b16 %v3493
          %v4013 = vunpack.c.l.b16 %v3494
          %v4014 = vunpack.c.l.b16 %v3495
          %v4015 = vunpack.c.l.b16 %v3496
          %v4016 = vunpack.c.l.b16 %v3497
          %v4017 = vunpack.c.l.b16 %v3498
          %v4018 = vunpack.c.l.b16 %v3499
          %v4019 = vunpack.c.l.b16 %v3500
          %v4020 = vunpack.c.l.b16 %v3501
          %v4021 = vunpack.c.l.b16 %v3502
          %v4022 = vunpack.c.l.b16 %v3503
          %v4023 = vunpack.c.l.b16 %v3504
          %v4024 = vunpack.c.l.b16 %v3505
          %v4025 = vunpack.c.l.b16 %v3506
          %v4026 = vunpack.c.l.b16 %v3507
          %v4027 = vunpack.c.l.b16 %v3508
          %v4028 = vunpack.c.l.b16 %v3509
          %v4029 = vunpack.c.l.b16 %v3510
          %v4030 = vunpack.c.l.b16 %v3511
          %v4031 = vunpack.c.l.b16 %v3512
          %v4032 = vunpack.c.l.b16 %v3513
          %v4033 = vunpack.c.l.b16 %v3514
          %v4034 = vunpack.c.l.b16 %v3515
          %v4035 = vunpack.c.l.b16 %v3516
          %v4036 = vunpack.c.l.b16 %v3517
          %v4037 = vunpack.c.l.b16 %v3518
          %v4038 = vunpack.c.l.b16 %v3519
          %v4039 = vunpack.c.l.b16 %v3520
          %v4040 = vunpack.c.l.b16 %v3521
          %v4041 = vunpack.c.l.b16 %v3522
          %v4042 = vunpack.c.l.b16 %v3523
          %v4043 = vunpack.c.l.b16 %v3524
          %v4044 = vunpack.c.l.b16 %v3525
          %v4045 = vunpack.c.l.b16 %v3526
          %v4046 = vunpack.c.l.b16 %v3527
          %v4047 = vunpack.c.l.b16 %v3528
          %v4048 = vunpack.c.l.b16 %v3529
          %v4049 = vunpack.c.l.b16 %v3530
          %v4050 = vunpack.c.l.b16 %v3531
          %v4051 = vunpack.c.l.b16 %v3532
          %v4052 = vunpack.c.l.b16 %v3533
          %v4053 = vunpack.c.l.b16 %v3534
          %v4054 = vunpack.c.l.b16 %v3535
          %v4055 = vunpack.c.l.b16 %v3536
          %v4056 = vunpack.c.l.b16 %v3537
          %v4057 = vunpack.c.l.b16 %v3538
          %v4058 = vunpack.c.l.b16 %v3539
          %v4059 = vunpack.c.l.b16 %v3540
          %v4060 = vunpack.c.l.b16 %v3541
          %v4061 = vunpack.c.l.b16 %v3542
          %v4062 = vunpack.c.l.b16 %v3543
          %v4063 = vunpack.c.l.b16 %v3544
          %v4064 = vunpack.c.l.b16 %v3545
          %v4065 = vunpack.c.l.b16 %v3546
          %v4066 = vunpack.c.l.b16 %v3547
          %v4067 = vunpack.c.l.b16 %v3548
          %v4068 = vunpack.c.l.b16 %v3549
          %v4069 = vunpack.c.l.b16 %v3550
          %v4070 = vunpack.c.l.b16 %v3551
          %v4071 = vunpack.c.l.b16 %v3552
          %v4072 = vunpack.c.l.b16 %v3553
          %v4073 = vunpack.c.l.b16 %v3554
          %v4074 = vunpack.c.l.b16 %v3555
          %v4075 = vunpack.c.l.b16 %v3556
          %v4076 = vunpack.c.l.b16 %v3557
          %v4077 = vunpack.c.l.b16 %v3558
          %v4078 = vunpack.c.l.b16 %v3559
          %v4079 = vunpack.c.l.b16 %v3560
          %v4080 = vunpack.c.l.b16 %v3561
          %v4081 = vunpack.c.l.b16 %v3562
          %v4082 = vunpack.c.l.b16 %v3563
          %v4083 = vunpack.c.l.b16 %v3564
          %v4084 = vunpack.c.l.b16 %v3565
          %v4085 = vunpack.c.l.b16 %v3566
          %v4086 = vunpack.c.l.b16 %v3567
          %v4087 = vunpack.c.l.b16 %v3568
          %v4088 = vunpack.c.l.b16 %v3569
          %v4089 = vunpack.c.l.b16 %v3570
          %v4090 = vunpack.c.l.b16 %v3571
          %v4091 = vunpack.c.l.b16 %v3572
          %v4092 = vunpack.c.l.b16 %v3573
          %v4093 = vunpack.c.l.b16 %v3574
          %v4094 = vunpack.c.l.b16 %v3575
          %v4095 = vunpack.c.l.b16 %v3576
          %v4096 = vunpack.c.l.b16 %v3577
          %v4097 = vunpack.c.l.b16 %v3578
          %v4098 = vunpack.c.l.b16 %v3579
          %v4099 = vunpack.c.l.b16 %v3580
          %v4100 = vunpack.c.l.b16 %v3581
          %v4101 = vunpack.c.l.b16 %v3582
          %v4102 = vunpack.c.l.b16 %v3583
          %v4103 = vunpack.c.l.b16 %v3584
          %v4104 = vunpack.c.l.b16 %v3585
          %v4105 = vunpack.c.l.b16 %v3586
          %v4106 = vunpack.c.l.b16 %v3587
          %v4107 = vunpack.c.l.b16 %v3588
          %v4108 = vunpack.c.l.b16 %v3589
          %v4109 = vunpack.c.l.b16 %v3590
          %v4110 = vunpack.c.l.b16 %v3591
          %v4111 = vunpack.c.l.b16 %v3592
          %v4112 = vunpack.c.l.b16 %v3593
          %v4113 = vunpack.c.l.b16 %v3594
          %v4114 = vunpack.c.l.b16 %v3595
          %v4115 = vunpack.c.l.b16 %v3596
          %v4116 = vunpack.c.l.b16 %v3597
          %v4117 = vunpack.c.l.b16 %v3598
          %v4118 = vunpack.c.l.b16 %v3599
          %v4119 = vunpack.c.l.b16 %v3600
          %v4120 = vunpack.c.l.b16 %v3601
          %v4121 = vunpack.c.l.b16 %v3602
          %v4122 = vunpack.c.l.b16 %v3603
          %v4123 = vunpack.c.l.b16 %v3604
          %v4124 = vunpack.c.l.b16 %v3605
          %v4125 = vunpack.c.l.b16 %v3606
          %v4126 = vunpack.c.l.b16 %v3607
          %v4127 = vunpack.c.l.b16 %v3608
          %v4128 = vunpack.c.l.b16 %v3609
          %v4129 = vunpack.c.l.b16 %v3610
          %v4130 = vunpack.c.l.b16 %v3611
          %v4131 = vunpack.c.l.b16 %v3612
          %v4132 = vunpack.c.l.b16 %v3613
          %v4133 = vunpack.c.l.b16 %v3614
          %v4134 = vunpack.c.l.b16 %v3615
          %v4135 = vunpack.c.l.b16 %v3616
          %v4136 = vunpack.c.l.b16 %v3617
          %v4137 = vunpack.c.l.b16 %v3618
          %v4138 = vunpack.c.l.b16 %v3619
          %v4139 = vunpack.c.l.b16 %v3620
          %v4140 = vunpack.c.l.b16 %v3621
          %v4141 = vunpack.c.l.b16 %v3622
          %v4142 = vunpack.c.l.b16 %v3623
          %v4143 = vunpack.c.l.b16 %v3624
          %v4144 = vunpack.c.l.b16 %v3625
          %v4145 = vunpack.c.l.b16 %v3626
          %v4146 = vunpack.c.l.b16 %v3627
          %v4147 = vunpack.c.l.b16 %v3628
          %v4148 = vunpack.c.l.b16 %v3629
          %v4149 = vunpack.c.l.b16 %v3630
          %v4150 = vunpack.c.l.b16 %v3631
          %v4151 = vunpack.c.l.b16 %v3632
          %v4152 = vunpack.c.l.b16 %v3633
          %v4153 = vunpack.c.l.b16 %v3634
          %v4154 = vunpack.c.l.b16 %v3635
          %v4155 = vunpack.c.l.b16 %v3636
          %v4156 = vunpack.c.l.b16 %v3637
          %v4157 = vunpack.c.l.b16 %v3638
          %v4158 = vunpack.c.l.b16 %v3639
          %v4159 = vunpack.c.l.b16 %v3640
          %v4160 = vunpack.c.l.b16 %v3641
          %v4161 = vunpack.c.l.b16 %v3642
          %v4162 = vunpack.c.l.b16 %v3643
          %v4163 = vunpack.c.l.b16 %v3644
          %v4164 = vunpack.c.l.b16 %v3645
          %v4165 = vunpack.c.l.b16 %v3646
          %v4166 = vunpack.c.l.b16 %v3647
          %v4167 = vunpack.c.l.b16 %v3648
          %v4168 = vunpack.c.l.b16 %v3649
          %v4169 = vunpack.c.l.b16 %v3650
          %v4170 = vunpack.c.l.b16 %v3651
          %v4171 = vunpack.c.l.b16 %v3652
          %v4172 = vunpack.c.l.b16 %v3653
          %v4173 = vunpack.c.l.b16 %v3654
          %v4174 = vunpack.c.l.b16 %v3655
          %v4175 = vunpack.c.l.b16 %v3656
          %v4176 = vunpack.c.l.b16 %v3657
          %v4177 = vunpack.c.l.b16 %v3658
          %v4178 = vunpack.c.l.b16 %v3659
          %v4179 = vunpack.c.l.b16 %v3660
          %v4180 = vunpack.c.l.b16 %v3661
          %v4181 = vunpack.c.l.b16 %v3662
          %v4182 = vunpack.c.l.b16 %v3663
          %v4183 = vunpack.c.l.b16 %v3664
          %v4184 = vunpack.c.l.b16 %v3665
          %v4185 = vunpack.c.l.b16 %v3666
          %v4186 = vunpack.c.l.b16 %v3667
          %v4187 = vunpack.c.l.b16 %v3668
          %v4188 = vunpack.c.l.b16 %v3669
          %v4189 = vunpack.c.l.b16 %v3670
          %v4190 = vunpack.c.l.b16 %v3671
          %v4191 = vunpack.c.l.b16 %v3672
          %v4192 = vunpack.c.l.b16 %v3673
          %v4193 = vunpack.c.l.b16 %v3674
          %v4194 = vunpack.c.l.b16 %v3675
          %v4195 = vunpack.c.l.b16 %v3676
          %v4196 = vunpack.c.l.b16 %v3677
          %v4197 = vunpack.c.l.b16 %v3678
          %v4198 = vunpack.c.l.b16 %v3679
          %v4199 = vunpack.c.l.b16 %v3680
          %v4200 = vunpack.c.l.b16 %v3681
          %v4201 = vunpack.c.l.b16 %v3682
          %v4202 = vunpack.c.l.b16 %v3683
          %v4203 = vunpack.c.l.b16 %v3684
          %v4204 = vunpack.c.l.b16 %v3685
          %v4205 = vunpack.c.l.b16 %v3686
          %v4206 = vunpack.c.l.b16 %v3687
          %v4207 = vunpack.c.l.b16 %v3688
          %v4208 = vunpack.c.l.b16 %v3689
          %v4209 = vunpack.c.l.b16 %v3690
          %v4210 = vunpack.c.l.b16 %v3691
          %v4211 = vunpack.c.l.b16 %v3692
          %v4212 = vunpack.c.l.b16 %v3693
          %v4213 = vunpack.c.l.b16 %v3694
          %v4214 = vunpack.c.l.b16 %v3695
          %v4215 = vunpack.c.l.b16 %v3696
          %v4216 = vunpack.c.l.b16 %v3697
          %v4217 = vunpack.c.l.b16 %v3698
          %v4218 = vunpack.c.l.b16 %v3699
          %v4219 = vunpack.c.l.b16 %v3700
          %v4220 = vunpack.c.l.b16 %v3701
          %v4221 = vunpack.c.l.b16 %v3702
          %v4222 = vunpack.c.l.b16 %v3703
          %v4223 = vunpack.c.l.b16 %v3704
          %v4224 = vunpack.c.l.b16 %v3705
          %v4225 = vunpack.c.l.b16 %v3706
          %v4226 = vunpack.c.l.b16 %v3707
          %v4227 = vunpack.c.l.b16 %v3708
          %v4228 = vunpack.c.l.b16 %v3709
          %v4229 = vunpack.c.l.b16 %v3710
          %v4230 = vunpack.c.l.b16 %v3711
          %v4231 = vunpack.c.l.b16 %v3712
          %v4232 = vunpack.c.l.b16 %v3713
          %v4233 = vunpack.c.l.b16 %v3714
          %v4234 = vunpack.c.l.b16 %v3715
          %v4235 = vunpack.c.l.b16 %v3716
          %v4236 = vunpack.c.l.b16 %v3717
          %v4237 = vunpack.c.l.b16 %v3718
          %v4238 = vunpack.c.l.b16 %v3719
          %v4239 = vunpack.c.l.b16 %v3720
          %v4240 = vunpack.c.l.b16 %v3721
          %v4241 = vunpack.c.l.b16 %v3722
          %v4242 = vunpack.c.l.b16 %v3723
          %v4243 = vunpack.c.l.b16 %v3724
          %v4244 = vunpack.c.l.b16 %v3725
          %v4245 = vunpack.c.l.b16 %v3726
          %v4246 = vunpack.c.l.b16 %v3727
          %v4247 = vunpack.c.l.b16 %v3728
          %v4248 = vunpack.c.l.b16 %v3729
          %v4249 = vpack.c.b16 %v3994, %v3993
          %v4250 = vpack.c.b16 %v3996, %v3995
          %v4251 = vpack.c.b16 %v3998, %v3997
          %v4252 = vpack.c.b16 %v4000, %v3999
          %v4253 = vpack.c.b16 %v4002, %v4001
          %v4254 = vpack.c.b16 %v4004, %v4003
          %v4255 = vpack.c.b16 %v4006, %v4005
          %v4256 = vpack.c.b16 %v4008, %v4007
          %v4257 = vpack.c.b16 %v4010, %v4009
          %v4258 = vpack.c.b16 %v4012, %v4011
          %v4259 = vpack.c.b16 %v4014, %v4013
          %v4260 = vpack.c.b16 %v4016, %v4015
          %v4261 = vpack.c.b16 %v4018, %v4017
          %v4262 = vpack.c.b16 %v4020, %v4019
          %v4263 = vpack.c.b16 %v4022, %v4021
          %v4264 = vpack.c.b16 %v4024, %v4023
          %v4265 = vpack.c.b16 %v4026, %v4025
          %v4266 = vpack.c.b16 %v4028, %v4027
          %v4267 = vpack.c.b16 %v4030, %v4029
          %v4268 = vpack.c.b16 %v4032, %v4031
          %v4269 = vpack.c.b16 %v4034, %v4033
          %v4270 = vpack.c.b16 %v4036, %v4035
          %v4271 = vpack.c.b16 %v4038, %v4037
          %v4272 = vpack.c.b16 %v4040, %v4039
          %v4273 = vpack.c.b16 %v4042, %v4041
          %v4274 = vpack.c.b16 %v4044, %v4043
          %v4275 = vpack.c.b16 %v4046, %v4045
          %v4276 = vpack.c.b16 %v4048, %v4047
          %v4277 = vpack.c.b16 %v4050, %v4049
          %v4278 = vpack.c.b16 %v4052, %v4051
          %v4279 = vpack.c.b16 %v4054, %v4053
          %v4280 = vpack.c.b16 %v4056, %v4055
          %v4281 = vpack.c.b16 %v4058, %v4057
          %v4282 = vpack.c.b16 %v4060, %v4059
          %v4283 = vpack.c.b16 %v4062, %v4061
          %v4284 = vpack.c.b16 %v4064, %v4063
          %v4285 = vpack.c.b16 %v4066, %v4065
          %v4286 = vpack.c.b16 %v4068, %v4067
          %v4287 = vpack.c.b16 %v4070, %v4069
          %v4288 = vpack.c.b16 %v4072, %v4071
          %v4289 = vpack.c.b16 %v4074, %v4073
          %v4290 = vpack.c.b16 %v4076, %v4075
          %v4291 = vpack.c.b16 %v4078, %v4077
          %v4292 = vpack.c.b16 %v4080, %v4079
          %v4293 = vpack.c.b16 %v4082, %v4081
          %v4294 = vpack.c.b16 %v4084, %v4083
          %v4295 = vpack.c.b16 %v4086, %v4085
          %v4296 = vpack.c.b16 %v4088, %v4087
          %v4297 = vpack.c.b16 %v4090, %v4089
          %v4298 = vpack.c.b16 %v4092, %v4091
          %v4299 = vpack.c.b16 %v4094, %v4093
          %v4300 = vpack.c.b16 %v4096, %v4095
          %v4301 = vpack.c.b16 %v4098, %v4097
          %v4302 = vpack.c.b16 %v4100, %v4099
          %v4303 = vpack.c.b16 %v4102, %v4101
          %v4304 = vpack.c.b16 %v4104, %v4103
          %v4305 = vpack.c.b16 %v4106, %v4105
          %v4306 = vpack.c.b16 %v4108, %v4107
          %v4307 = vpack.c.b16 %v4110, %v4109
          %v4308 = vpack.c.b16 %v4112, %v4111
          %v4309 = vpack.c.b16 %v4114, %v4113
          %v4310 = vpack.c.b16 %v4116, %v4115
          %v4311 = vpack.c.b16 %v4118, %v4117
          %v4312 = vpack.c.b16 %v4120, %v4119
          %v4313 = vpack.c.b16 %v4122, %v4121
          %v4314 = vpack.c.b16 %v4124, %v4123
          %v4315 = vpack.c.b16 %v4126, %v4125
          %v4316 = vpack.c.b16 %v4128, %v4127
          %v4317 = vpack.c.b16 %v4130, %v4129
          %v4318 = vpack.c.b16 %v4132, %v4131
          %v4319 = vpack.c.b16 %v4134, %v4133
          %v4320 = vpack.c.b16 %v4136, %v4135
          %v4321 = vpack.c.b16 %v4138, %v4137
          %v4322 = vpack.c.b16 %v4140, %v4139
          %v4323 = vpack.c.b16 %v4142, %v4141
          %v4324 = vpack.c.b16 %v4144, %v4143
          %v4325 = vpack.c.b16 %v4146, %v4145
          %v4326 = vpack.c.b16 %v4148, %v4147
          %v4327 = vpack.c.b16 %v4150, %v4149
          %v4328 = vpack.c.b16 %v4152, %v4151
          %v4329 = vpack.c.b16 %v4154, %v4153
          %v4330 = vpack.c.b16 %v4156, %v4155
          %v4331 = vpack.c.b16 %v4158, %v4157
          %v4332 = vpack.c.b16 %v4160, %v4159
          %v4333 = vpack.c.b16 %v4162, %v4161
          %v4334 = vpack.c.b16 %v4164, %v4163
          %v4335 = vpack.c.b16 %v4166, %v4165
          %v4336 = vpack.c.b16 %v4168, %v4167
          %v4337 = vpack.c.b16 %v4170, %v4169
          %v4338 = vpack.c.b16 %v4172, %v4171
          %v4339 = vpack.c.b16 %v4174, %v4173
          %v4340 = vpack.c.b16 %v4176, %v4175
          %v4341 = vpack.c.b16 %v4178, %v4177
          %v4342 = vpack.c.b16 %v4180, %v4179
          %v4343 = vpack.c.b16 %v4182, %v4181
          %v4344 = vpack.c.b16 %v4184, %v4183
          %v4345 = vpack.c.b16 %v4186, %v4185
          %v4346 = vpack.c.b16 %v4188, %v4187
          %v4347 = vpack.c.b16 %v4190, %v4189
          %v4348 = vpack.c.b16 %v4192, %v4191
          %v4349 = vpack.c.b16 %v4194, %v4193
          %v4350 = vpack.c.b16 %v4196, %v4195
          %v4351 = vpack.c.b16 %v4198, %v4197
          %v4352 = vpack.c.b16 %v4200, %v4199
          %v4353 = vpack.c.b16 %v4202, %v4201
          %v4354 = vpack.c.b16 %v4204, %v4203
          %v4355 = vpack.c.b16 %v4206, %v4205
          %v4356 = vpack.c.b16 %v4208, %v4207
          %v4357 = vpack.c.b16 %v4210, %v4209
          %v4358 = vpack.c.b16 %v4212, %v4211
          %v4359 = vpack.c.b16 %v4214, %v4213
          %v4360 = vpack.c.b16 %v4216, %v4215
          %v4361 = vpack.c.b16 %v4218, %v4217
          %v4362 = vpack.c.b16 %v4220, %v4219
          %v4363 = vpack.c.b16 %v4222, %v4221
          %v4364 = vpack.c.b16 %v4224, %v4223
          %v4365 = vpack.c.b16 %v4226, %v4225
          %v4366 = vpack.c.b16 %v4228, %v4227
          %v4367 = vpack.c.b16 %v4230, %v4229
          %v4368 = vpack.c.b16 %v4232, %v4231
          %v4369 = vpack.c.b16 %v4234, %v4233
          %v4370 = vpack.c.b16 %v4236, %v4235
          %v4371 = vpack.c.b16 %v4238, %v4237
          %v4372 = vpack.c.b16 %v4240, %v4239
          %v4373 = vpack.c.b16 %v4242, %v4241
          %v4374 = vpack.c.b16 %v4244, %v4243
          %v4375 = vpack.c.b16 %v4246, %v4245
          %v4376 = vpack.c.b16 %v4248, %v4247
          %4505 = vmatprep.subr.bf16.mxu0 0
          %4506 = vmatpush1.bf16.msra.mxu0 %v4256
          %4507 = vmatprep.subr.bf16.mxu0 0
          %4508 = vmatpush1.bf16.msra.mxu0 %v4255
          %4509 = vmatprep.subr.bf16.mxu0 0
          %4510 = vmatpush1.bf16.msra.mxu0 %v4254
          %4511 = vmatprep.subr.bf16.mxu0 0
          %4512 = vmatpush1.bf16.msra.mxu0 %v4253
          %4513 = vmatprep.subr.bf16.mxu0 0
          %4514 = vmatpush1.bf16.msra.mxu0 %v4252
          %4515 = vmatprep.subr.bf16.mxu0 0
          %4516 = vmatpush1.bf16.msra.mxu0 %v4251
          %4517 = vmatprep.subr.bf16.mxu0 0
          %4518 = vmatpush1.bf16.msra.mxu0 %v4250
          %4519 = vmatprep.subr.bf16.mxu0 0
          %4520 = vmatpush1.bf16.msra.mxu0 %v4249
          %4521 = vmatprep.subr.bf16.mxu0 0
          %4522 = vmatpush2.bf16.msra.mxu0 %v4264
          %4523 = vmatprep.subr.bf16.mxu0 0
          %4524 = vmatpush2.bf16.msra.mxu0 %v4263
          %4525 = vmatprep.subr.bf16.mxu0 0
          %4526 = vmatpush2.bf16.msra.mxu0 %v4262
          %4527 = vmatprep.subr.bf16.mxu0 0
          %4528 = vmatpush2.bf16.msra.mxu0 %v4261
          %4529 = vmatprep.subr.bf16.mxu0 0
          %4530 = vmatpush2.bf16.msra.mxu0 %v4260
          %4531 = vmatprep.subr.bf16.mxu0 0
          %4532 = vmatpush2.bf16.msra.mxu0 %v4259
          %4533 = vmatprep.subr.bf16.mxu0 0
          %4534 = vmatpush2.bf16.msra.mxu0 %v4258
          %4535 = vmatprep.subr.bf16.mxu0 0
          %4536 = vmatpush2.bf16.msra.mxu0 %v4257
          %4537 = vmatprep.mubr.bf16.mxu0 %v3459
          %4538 = vmatmul.mubr.bf16.gmra.mxu0 %v3458
          %v4539 = vpop.f32.mrf.mxu0
          %v4540 = vadd.f32 %v3735, %v4539
          %v4541 = vpop.f32.mrf.mxu0
          %v4542 = vpop.f32.mrf.mxu0
          %v4543 = vpop.f32.mrf.mxu0
          %4544 = vdwg.mxu0
          %4545 = vmatprep.subr.bf16.mxu0 0
          %4546 = vmatpush1.bf16.msra.mxu0 %v4272
          %4547 = vmatprep.subr.bf16.mxu0 0
          %4548 = vmatpush1.bf16.msra.mxu0 %v4271
          %4549 = vmatprep.subr.bf16.mxu0 0
          %4550 = vmatpush1.bf16.msra.mxu0 %v4270
          %4551 = vmatprep.subr.bf16.mxu0 0
          %4552 = vmatpush1.bf16.msra.mxu0 %v4269
          %4553 = vmatprep.subr.bf16.mxu0 0
          %4554 = vmatpush1.bf16.msra.mxu0 %v4268
          %4555 = vmatprep.subr.bf16.mxu0 0
          %4556 = vmatpush1.bf16.msra.mxu0 %v4267
          %4557 = vmatprep.subr.bf16.mxu0 0
          %4558 = vmatpush1.bf16.msra.mxu0 %v4266
          %4559 = vmatprep.subr.bf16.mxu0 0
          %4560 = vmatpush1.bf16.msra.mxu0 %v4265
          %4561 = vmatprep.subr.bf16.mxu0 0
          %4562 = vmatpush2.bf16.msra.mxu0 %v4280
          %4563 = vmatprep.subr.bf16.mxu0 0
          %4564 = vmatpush2.bf16.msra.mxu0 %v4279
          %4565 = vmatprep.subr.bf16.mxu0 0
          %4566 = vmatpush2.bf16.msra.mxu0 %v4278
          %4567 = vmatprep.subr.bf16.mxu0 0
          %4568 = vmatpush2.bf16.msra.mxu0 %v4277
          %4569 = vmatprep.subr.bf16.mxu0 0
          %4570 = vmatpush2.bf16.msra.mxu0 %v4276
          %4571 = vmatprep.subr.bf16.mxu0 0
          %4572 = vmatpush2.bf16.msra.mxu0 %v4275
          %4573 = vmatprep.subr.bf16.mxu0 0
          %4574 = vmatpush2.bf16.msra.mxu0 %v4274
          %4575 = vmatprep.subr.bf16.mxu0 0
          %4576 = vmatpush2.bf16.msra.mxu0 %v4273
          %4577 = vmatprep.mubr.bf16.mxu0 %v3461
          %4578 = vmatmul.mubr.bf16.gmra.mxu0 %v3460
          %v4579 = vpop.f32.mrf.mxu0
          %v4580 = vadd.f32 %v4540, %v4579
          %v4581 = vpop.f32.mrf.mxu0
          %v4582 = vpop.f32.mrf.mxu0
          %v4583 = vpop.f32.mrf.mxu0
          %4584 = vdwg.mxu0
          %4585 = vmatprep.subr.bf16.mxu0 0
          %4586 = vmatpush1.bf16.msra.mxu0 %v4288
          %4587 = vmatprep.subr.bf16.mxu0 0
          %4588 = vmatpush1.bf16.msra.mxu0 %v4287
          %4589 = vmatprep.subr.bf16.mxu0 0
          %4590 = vmatpush1.bf16.msra.mxu0 %v4286
          %4591 = vmatprep.subr.bf16.mxu0 0
          %4592 = vmatpush1.bf16.msra.mxu0 %v4285
          %4593 = vmatprep.subr.bf16.mxu0 0
          %4594 = vmatpush1.bf16.msra.mxu0 %v4284
          %4595 = vmatprep.subr.bf16.mxu0 0
          %4596 = vmatpush1.bf16.msra.mxu0 %v4283
          %4597 = vmatprep.subr.bf16.mxu0 0
          %4598 = vmatpush1.bf16.msra.mxu0 %v4282
          %4599 = vmatprep.subr.bf16.mxu0 0
          %4600 = vmatpush1.bf16.msra.mxu0 %v4281
          %4601 = vmatprep.subr.bf16.mxu0 0
          %4602 = vmatpush2.bf16.msra.mxu0 %v4296
          %4603 = vmatprep.subr.bf16.mxu0 0
          %4604 = vmatpush2.bf16.msra.mxu0 %v4295
          %4605 = vmatprep.subr.bf16.mxu0 0
          %4606 = vmatpush2.bf16.msra.mxu0 %v4294
          %4607 = vmatprep.subr.bf16.mxu0 0
          %4608 = vmatpush2.bf16.msra.mxu0 %v4293
          %4609 = vmatprep.subr.bf16.mxu0 0
          %4610 = vmatpush2.bf16.msra.mxu0 %v4292
          %4611 = vmatprep.subr.bf16.mxu0 0
          %4612 = vmatpush2.bf16.msra.mxu0 %v4291
          %4613 = vmatprep.subr.bf16.mxu0 0
          %4614 = vmatpush2.bf16.msra.mxu0 %v4290
          %4615 = vmatprep.subr.bf16.mxu0 0
          %4616 = vmatpush2.bf16.msra.mxu0 %v4289
          %4617 = vmatprep.mubr.bf16.mxu0 %v3463
          %4618 = vmatmul.mubr.bf16.gmra.mxu0 %v3462
          %v4619 = vpop.f32.mrf.mxu0
          %v4620 = vadd.f32 %v4580, %v4619
          %v4621 = vpop.f32.mrf.mxu0
          %v4622 = vpop.f32.mrf.mxu0
          %v4623 = vpop.f32.mrf.mxu0
          %4624 = vdwg.mxu0
          %4625 = vmatprep.subr.bf16.mxu0 0
          %4626 = vmatpush1.bf16.msra.mxu0 %v4304
          %4627 = vmatprep.subr.bf16.mxu0 0
          %4628 = vmatpush1.bf16.msra.mxu0 %v4303
          %4629 = vmatprep.subr.bf16.mxu0 0
          %4630 = vmatpush1.bf16.msra.mxu0 %v4302
          %4631 = vmatprep.subr.bf16.mxu0 0
          %4632 = vmatpush1.bf16.msra.mxu0 %v4301
          %4633 = vmatprep.subr.bf16.mxu0 0
          %4634 = vmatpush1.bf16.msra.mxu0 %v4300
          %4635 = vmatprep.subr.bf16.mxu0 0
          %4636 = vmatpush1.bf16.msra.mxu0 %v4299
          %4637 = vmatprep.subr.bf16.mxu0 0
          %4638 = vmatpush1.bf16.msra.mxu0 %v4298
          %4639 = vmatprep.subr.bf16.mxu0 0
          %4640 = vmatpush1.bf16.msra.mxu0 %v4297
          %4641 = vmatprep.subr.bf16.mxu0 0
          %4642 = vmatpush2.bf16.msra.mxu0 %v4312
          %4643 = vmatprep.subr.bf16.mxu0 0
          %4644 = vmatpush2.bf16.msra.mxu0 %v4311
          %4645 = vmatprep.subr.bf16.mxu0 0
          %4646 = vmatpush2.bf16.msra.mxu0 %v4310
          %4647 = vmatprep.subr.bf16.mxu0 0
          %4648 = vmatpush2.bf16.msra.mxu0 %v4309
          %4649 = vmatprep.subr.bf16.mxu0 0
          %4650 = vmatpush2.bf16.msra.mxu0 %v4308
          %4651 = vmatprep.subr.bf16.mxu0 0
          %4652 = vmatpush2.bf16.msra.mxu0 %v4307
          %4653 = vmatprep.subr.bf16.mxu0 0
          %4654 = vmatpush2.bf16.msra.mxu0 %v4306
          %4655 = vmatprep.subr.bf16.mxu0 0
          %4656 = vmatpush2.bf16.msra.mxu0 %v4305
          %4657 = vmatprep.mubr.bf16.mxu0 %v3465
          %4658 = vmatmul.mubr.bf16.gmra.mxu0 %v3464
          %v4659 = vpop.f32.mrf.mxu0
          %v4660 = vadd.f32 %v4620, %v4659
          %v4661 = vpop.f32.mrf.mxu0
          %v4662 = vpop.f32.mrf.mxu0
          %v4663 = vpop.f32.mrf.mxu0
          %4664 = vdwg.mxu0
          %4665 = vmatprep.subr.bf16.mxu0 0
          %4666 = vmatpush1.bf16.msra.mxu0 %v4320
          %4667 = vmatprep.subr.bf16.mxu0 0
          %4668 = vmatpush1.bf16.msra.mxu0 %v4319
          %4669 = vmatprep.subr.bf16.mxu0 0
          %4670 = vmatpush1.bf16.msra.mxu0 %v4318
          %4671 = vmatprep.subr.bf16.mxu0 0
          %4672 = vmatpush1.bf16.msra.mxu0 %v4317
          %4673 = vmatprep.subr.bf16.mxu0 0
          %4674 = vmatpush1.bf16.msra.mxu0 %v4316
          %4675 = vmatprep.subr.bf16.mxu0 0
          %4676 = vmatpush1.bf16.msra.mxu0 %v4315
          %4677 = vmatprep.subr.bf16.mxu0 0
          %4678 = vmatpush1.bf16.msra.mxu0 %v4314
          %4679 = vmatprep.subr.bf16.mxu0 0
          %4680 = vmatpush1.bf16.msra.mxu0 %v4313
          %4681 = vmatprep.subr.bf16.mxu0 0
          %4682 = vmatpush2.bf16.msra.mxu0 %v4328
          %4683 = vmatprep.subr.bf16.mxu0 0
          %4684 = vmatpush2.bf16.msra.mxu0 %v4327
          %4685 = vmatprep.subr.bf16.mxu0 0
          %4686 = vmatpush2.bf16.msra.mxu0 %v4326
          %4687 = vmatprep.subr.bf16.mxu0 0
          %4688 = vmatpush2.bf16.msra.mxu0 %v4325
          %4689 = vmatprep.subr.bf16.mxu0 0
          %4690 = vmatpush2.bf16.msra.mxu0 %v4324
          %4691 = vmatprep.subr.bf16.mxu0 0
          %4692 = vmatpush2.bf16.msra.mxu0 %v4323
          %4693 = vmatprep.subr.bf16.mxu0 0
          %4694 = vmatpush2.bf16.msra.mxu0 %v4322
          %4695 = vmatprep.subr.bf16.mxu0 0
          %4696 = vmatpush2.bf16.msra.mxu0 %v4321
          %4697 = vmatprep.mubr.bf16.mxu0 %v3467
          %4698 = vmatmul.mubr.bf16.gmra.mxu0 %v3466
          %v4699 = vpop.f32.mrf.mxu0
          %v4700 = vadd.f32 %v4660, %v4699
          %v4701 = vpop.f32.mrf.mxu0
          %v4702 = vpop.f32.mrf.mxu0
          %v4703 = vpop.f32.mrf.mxu0
          %4704 = vdwg.mxu0
          %4705 = vmatprep.subr.bf16.mxu0 0
          %4706 = vmatpush1.bf16.msra.mxu0 %v4336
          %4707 = vmatprep.subr.bf16.mxu0 0
          %4708 = vmatpush1.bf16.msra.mxu0 %v4335
          %4709 = vmatprep.subr.bf16.mxu0 0
          %4710 = vmatpush1.bf16.msra.mxu0 %v4334
          %4711 = vmatprep.subr.bf16.mxu0 0
          %4712 = vmatpush1.bf16.msra.mxu0 %v4333
          %4713 = vmatprep.subr.bf16.mxu0 0
          %4714 = vmatpush1.bf16.msra.mxu0 %v4332
          %4715 = vmatprep.subr.bf16.mxu0 0
          %4716 = vmatpush1.bf16.msra.mxu0 %v4331
          %4717 = vmatprep.subr.bf16.mxu0 0
          %4718 = vmatpush1.bf16.msra.mxu0 %v4330
          %4719 = vmatprep.subr.bf16.mxu0 0
          %4720 = vmatpush1.bf16.msra.mxu0 %v4329
          %4721 = vmatprep.subr.bf16.mxu0 0
          %4722 = vmatpush2.bf16.msra.mxu0 %v4344
          %4723 = vmatprep.subr.bf16.mxu0 0
          %4724 = vmatpush2.bf16.msra.mxu0 %v4343
          %4725 = vmatprep.subr.bf16.mxu0 0
          %4726 = vmatpush2.bf16.msra.mxu0 %v4342
          %4727 = vmatprep.subr.bf16.mxu0 0
          %4728 = vmatpush2.bf16.msra.mxu0 %v4341
          %4729 = vmatprep.subr.bf16.mxu0 0
          %4730 = vmatpush2.bf16.msra.mxu0 %v4340
          %4731 = vmatprep.subr.bf16.mxu0 0
          %4732 = vmatpush2.bf16.msra.mxu0 %v4339
          %4733 = vmatprep.subr.bf16.mxu0 0
          %4734 = vmatpush2.bf16.msra.mxu0 %v4338
          %4735 = vmatprep.subr.bf16.mxu0 0
          %4736 = vmatpush2.bf16.msra.mxu0 %v4337
          %4737 = vmatprep.mubr.bf16.mxu0 %v3469
          %4738 = vmatmul.mubr.bf16.gmra.mxu0 %v3468
          %v4739 = vpop.f32.mrf.mxu0
          %v4740 = vadd.f32 %v4700, %v4739
          %v4741 = vpop.f32.mrf.mxu0
          %v4742 = vpop.f32.mrf.mxu0
          %v4743 = vpop.f32.mrf.mxu0
          %4744 = vdwg.mxu0
          %4745 = vmatprep.subr.bf16.mxu0 0
          %4746 = vmatpush1.bf16.msra.mxu0 %v4352
          %4747 = vmatprep.subr.bf16.mxu0 0
          %4748 = vmatpush1.bf16.msra.mxu0 %v4351
          %4749 = vmatprep.subr.bf16.mxu0 0
          %4750 = vmatpush1.bf16.msra.mxu0 %v4350
          %4751 = vmatprep.subr.bf16.mxu0 0
          %4752 = vmatpush1.bf16.msra.mxu0 %v4349
          %4753 = vmatprep.subr.bf16.mxu0 0
          %4754 = vmatpush1.bf16.msra.mxu0 %v4348
          %4755 = vmatprep.subr.bf16.mxu0 0
          %4756 = vmatpush1.bf16.msra.mxu0 %v4347
          %4757 = vmatprep.subr.bf16.mxu0 0
          %4758 = vmatpush1.bf16.msra.mxu0 %v4346
          %4759 = vmatprep.subr.bf16.mxu0 0
          %4760 = vmatpush1.bf16.msra.mxu0 %v4345
          %4761 = vmatprep.subr.bf16.mxu0 0
          %4762 = vmatpush2.bf16.msra.mxu0 %v4360
          %4763 = vmatprep.subr.bf16.mxu0 0
          %4764 = vmatpush2.bf16.msra.mxu0 %v4359
          %4765 = vmatprep.subr.bf16.mxu0 0
          %4766 = vmatpush2.bf16.msra.mxu0 %v4358
          %4767 = vmatprep.subr.bf16.mxu0 0
          %4768 = vmatpush2.bf16.msra.mxu0 %v4357
          %4769 = vmatprep.subr.bf16.mxu0 0
          %4770 = vmatpush2.bf16.msra.mxu0 %v4356
          %4771 = vmatprep.subr.bf16.mxu0 0
          %4772 = vmatpush2.bf16.msra.mxu0 %v4355
          %4773 = vmatprep.subr.bf16.mxu0 0
          %4774 = vmatpush2.bf16.msra.mxu0 %v4354
          %4775 = vmatprep.subr.bf16.mxu0 0
          %4776 = vmatpush2.bf16.msra.mxu0 %v4353
          %4777 = vmatprep.mubr.bf16.mxu0 %v3471
          %4778 = vmatmul.mubr.bf16.gmra.mxu0 %v3470
          %v4779 = vpop.f32.mrf.mxu0
          %v4780 = vadd.f32 %v4740, %v4779
          %v4781 = vpop.f32.mrf.mxu0
          %v4782 = vpop.f32.mrf.mxu0
          %v4783 = vpop.f32.mrf.mxu0
          %4784 = vdwg.mxu0
          %4785 = vmatprep.subr.bf16.mxu0 0
          %4786 = vmatpush1.bf16.msra.mxu0 %v4368
          %4787 = vmatprep.subr.bf16.mxu0 0
          %4788 = vmatpush1.bf16.msra.mxu0 %v4367
          %4789 = vmatprep.subr.bf16.mxu0 0
          %4790 = vmatpush1.bf16.msra.mxu0 %v4366
          %4791 = vmatprep.subr.bf16.mxu0 0
          %4792 = vmatpush1.bf16.msra.mxu0 %v4365
          %4793 = vmatprep.subr.bf16.mxu0 0
          %4794 = vmatpush1.bf16.msra.mxu0 %v4364
          %4795 = vmatprep.subr.bf16.mxu0 0
          %4796 = vmatpush1.bf16.msra.mxu0 %v4363
          %4797 = vmatprep.subr.bf16.mxu0 0
          %4798 = vmatpush1.bf16.msra.mxu0 %v4362
          %4799 = vmatprep.subr.bf16.mxu0 0
          %4800 = vmatpush1.bf16.msra.mxu0 %v4361
          %4801 = vmatprep.subr.bf16.mxu0 0
          %4802 = vmatpush2.bf16.msra.mxu0 %v4376
          %4803 = vmatprep.subr.bf16.mxu0 0
          %4804 = vmatpush2.bf16.msra.mxu0 %v4375
          %4805 = vmatprep.subr.bf16.mxu0 0
          %4806 = vmatpush2.bf16.msra.mxu0 %v4374
          %4807 = vmatprep.subr.bf16.mxu0 0
          %4808 = vmatpush2.bf16.msra.mxu0 %v4373
          %4809 = vmatprep.subr.bf16.mxu0 0
          %4810 = vmatpush2.bf16.msra.mxu0 %v4372
          %4811 = vmatprep.subr.bf16.mxu0 0
          %4812 = vmatpush2.bf16.msra.mxu0 %v4371
          %4813 = vmatprep.subr.bf16.mxu0 0
          %4814 = vmatpush2.bf16.msra.mxu0 %v4370
          %4815 = vmatprep.subr.bf16.mxu0 0
          %4816 = vmatpush2.bf16.msra.mxu0 %v4369
          %4817 = vmatprep.mubr.bf16.mxu0 %v3473
          %4818 = vmatmul.mubr.bf16.gmra.mxu0 %v3472
          %v4819 = vpop.f32.mrf.mxu0
          %v4820 = vadd.f32 %v4780, %v4819
          %v4821 = vpop.f32.mrf.mxu0
          %v4822 = vpop.f32.mrf.mxu0
          %v4823 = vpop.f32.mrf.mxu0
          %4824 = vdwg.mxu0
          %4825 = vst [vmem:[%s10] sm:$0x3] %v4820
        $region96: #{spherical_cnn_forward.1} parent=59 // pred_fallthru
          _
        // Predicated region
        $region97: #{spherical_cnn_forward.1} parent=59 // pred_check
          %p4826 = pneg %p267
        $region98: #{spherical_cnn_forward.1} parent=59 // pred_check_branch
          %4828 = sbr.rel (%p4826) target = $region100
        $region99: #{spherical_cnn_forward.1} parent=59 // pred_region
          _
        $region100: #{spherical_cnn_forward.1} parent=59 // pred_fallthru
          _
        // Predicated region
        $region101: #{spherical_cnn_forward.1} parent=59 // pred_check
          %p4829 = pneg %p267
        $region102: #{spherical_cnn_forward.1} parent=59 // pred_check_branch
          %4831 = sbr.rel (%p4829) target = $region104
        $region103: #{spherical_cnn_forward.1} parent=59 // pred_region
          _
        $region104: #{spherical_cnn_forward.1} parent=59 // pred_fallthru
          _
      $region60: #{spherical_cnn_forward.1} parent=5 // pred_fallthru
        _
      %p4832 = scmp.le.s32.totalorder 2, %s24
      // Predicated region
      $region105: #{spherical_cnn_forward.1} parent=5 // pred_check
        %p4833 = pneg %p4832
      $region106: #{spherical_cnn_forward.1} parent=5 // pred_check_branch
        %4835 = sbr.rel (%p4833) target = $region108
      $region107: #{spherical_cnn_forward.1} parent=5 // pred_region
        %s4836 = ssub.s32 %s24, 2
      $region108: #{spherical_cnn_forward.1} parent=5 // pred_fallthru
        _
    $region6: #{spherical_cnn_forward.1} parent=1 // loop_footer
      %s28 = sadd.s32 1, %s24
    $region7: #{spherical_cnn_forward.1} parent=1 // loop_footer_branch
      %23 = sbr.rel target = $region3
    $region8: #{spherical_cnn_forward.1} parent=1 // loop_exit
      _
    %4837 = vsyncpa [#allocation4], 1
    %s4838 = scalar_lea.sflag [#allocation4], 1
    %4839 = vsyncpa %s4838, 1
    %4840 = vsyncpa [#allocation6], 1
    %4841 = vsyncpa [#allocation9], 1
    %s4842 = scalar_lea.sflag [#allocation9], 1
    %4843 = vsyncpa %s4842, 1
    %4844 = vsyncpa [#allocation12], 1
    %s4845 = scalar_lea.sflag [#allocation12], 1
    %4846 = vsyncpa %s4845, 1

</llo_original>
